<compile_context>
chip_gen: v6e
topology: v6e:2x2x1
jax: 0.10.0
libtpu: 0.0.40
codegen_flags: <defaults>
</compile_context>

<pallas_src>
import jax
import jax.numpy as jnp
from jax.experimental import pallas as pl
from jax.experimental.pallas import tpu as pltpu


def _elu(v):
    # ELU(alpha=1) == CELU(alpha=1). Clamp the exp argument so large positive
    # activations never hit the EUP (result would be discarded by the select).
    return jnp.where(v > 0.0, v, jnp.exp(jnp.minimum(v, 0.0)) - 1.0)


def funcvae_forward_kernel(
    x_ref,                                                    # (tile_b, D_pad) bf16
    w1_ref, b1_ref, w2_ref, b2_ref, wm_ref, bm_ref,           # encoder (mean path)
    wt1_ref, bt1_ref, wt2_ref, bt2_ref, wt3_ref, bt3_ref,     # translator
    wd1_ref, bd1_ref, wd2_ref, bd2_ref, wd3_ref, bd3_ref,     # decoder
    out_ref,                                                  # (tile_b, D_pad) f32
):
    f32 = jnp.float32
    bf16 = jnp.bfloat16

    def linear(a_bf16, w_ref, b_ref):
        # bf16 operands on the MXU, f32 accumulation, f32 bias add.
        return jnp.dot(a_bf16, w_ref[...], preferred_element_type=f32) + b_ref[...]

    x = x_ref[...]                                           # already bf16

    # ---- Encoder (only the mean branch feeds forward()) ----
    h = jnp.maximum(linear(x, w1_ref, b1_ref), 0.0)
    h = jnp.maximum(linear(h.astype(bf16), w2_ref, b2_ref), 0.0)
    mean = linear(h.astype(bf16), wm_ref, bm_ref)

    # ---- Translator (Linear -> CELU -> Linear -> CELU -> Linear) ----
    t = _elu(linear(mean.astype(bf16), wt1_ref, bt1_ref))
    t = _elu(linear(t.astype(bf16), wt2_ref, bt2_ref))
    z = linear(t.astype(bf16), wt3_ref, bt3_ref)

    # ---- Decoder (Linear -> ELU -> Linear -> ELU -> Linear) ----
    d = _elu(linear(z.astype(bf16), wd1_ref, bd1_ref))
    d = _elu(linear(d.astype(bf16), wd2_ref, bd2_ref))
    x_hat = linear(d.astype(bf16), wd3_ref, bd3_ref)

    out_ref[...] = x_hat.astype(out_ref.dtype)


def make_params(key, input_dim, latent_dim, scale=0.05):
    """Deterministic synthetic parameters at the module's native shapes.
    Weights are (in, out), biases (1, out), all f32 (padded/cast in wrapper)."""
    dims = [
        # encoder (mean branch)
        (input_dim, 400), (400, 128), (128, latent_dim),
        # translator
        (latent_dim, latent_dim), (latent_dim, latent_dim), (latent_dim, latent_dim),
        # decoder
        (latent_dim, 128), (128, 400), (400, input_dim),
    ]
    params = []
    for i, (din, dout) in enumerate(dims):
        kw, kb = jax.random.split(jax.random.fold_in(key, i))
        w = scale * jax.random.normal(kw, (din, dout), dtype=jnp.float32)
        b = scale * jax.random.normal(kb, (1, dout), dtype=jnp.float32)
        params += [w, b]
    return params


def _round_up(n, m):
    return ((n + m - 1) // m) * m


def _pad2d(a, rows, cols):
    return jnp.pad(a, ((0, rows - a.shape[0]), (0, cols - a.shape[1])))


def funcvae_forward(x, params, *, tile_b=128):
    """Run the fused 9-layer forward pass.  Handles ragged batch / feature dims
    by zero-padding to (8,128)-friendly shapes and slicing the result back."""
    n, input_dim = x.shape
    (w1, b1, w2, b2, wm, bm,
     wt1, bt1, wt2, bt2, wt3, bt3,
     wd1, bd1, wd2, bd2, wd3, bd3) = params
    latent_dim = wm.shape[1]

    # --- padded dims: every feature axis becomes a multiple of 128 ---
    d_pad = _round_up(input_dim, 128)        # e.g. 256 -> 256
    h1_pad = _round_up(w1.shape[1], 128)     # 400 -> 512
    h2_pad = _round_up(w2.shape[1], 128)     # 128 -> 128
    l_pad = _round_up(latent_dim, 128)       # 32  -> 128

    # --- batch tile: multiple of 8, clamped so tiny batches don't over-pad ---
    tile_b = _round_up(max(8, min(tile_b, _round_up(n, 8))), 8)
    n_pad = _round_up(n, tile_b)

    # --- zero-pad + cast parameters (weights -> bf16, biases stay f32) ---
    layer_params = [(w1, b1), (w2, b2), (wm, bm),
                    (wt1, bt1), (wt2, bt2), (wt3, bt3),
                    (wd1, bd1), (wd2, bd2), (wd3, bd3)]
    layer_dims = [(d_pad, h1_pad), (h1_pad, h2_pad), (h2_pad, l_pad),
                  (l_pad, l_pad), (l_pad, l_pad), (l_pad, l_pad),
                  (l_pad, h2_pad), (h2_pad, h1_pad), (h1_pad, d_pad)]
    padded = []
    for (w, b), (din, dout) in zip(layer_params, layer_dims):
        padded.append(_pad2d(w, din, dout).astype(jnp.bfloat16))
        padded.append(_pad2d(b, 1, dout).astype(jnp.float32))

    # --- pad + cast input ---
    x_p = jnp.pad(x, ((0, n_pad - n), (0, d_pad - input_dim))).astype(jnp.bfloat16)

    # x / out are tiled over the batch axis; every parameter is a full block
    # with a constant index_map (fetched once, stays VMEM-resident).
    x_spec = pl.BlockSpec((tile_b, d_pad), lambda i: (i, 0))
    param_specs = [pl.BlockSpec(p.shape, lambda i: (0, 0)) for p in padded]
    out_spec = pl.BlockSpec((tile_b, d_pad), lambda i: (i, 0))

    out = pl.pallas_call(
        funcvae_forward_kernel,
        out_shape=jax.ShapeDtypeStruct((n_pad, d_pad), jnp.float32),
        grid_spec=pltpu.PrefetchScalarGridSpec(
            num_scalar_prefetch=0,
            grid=(n_pad // tile_b,),
            in_specs=[x_spec] + param_specs,
            out_specs=out_spec,
        ),
        compiler_params=pltpu.CompilerParams(
            dimension_semantics=("parallel",),   # batch tiles shard across TCs
        ),
    )(x_p, *padded)

    return out[:n, :input_dim]


def funcvae_forward_ref(x, params):
    """Pure-JAX reference mirroring the kernel numerics (bf16 operands,
    f32 accumulation, f32 bias/activation math)."""
    (w1, b1, w2, b2, wm, bm,
     wt1, bt1, wt2, bt2, wt3, bt3,
     wd1, bd1, wd2, bd2, wd3, bd3) = params
    bf16 = jnp.bfloat16

    def lin(a, w, b):
        return jnp.dot(a.astype(bf16), w.astype(bf16),
                       preferred_element_type=jnp.float32) + b

    h = jnp.maximum(lin(x, w1, b1), 0.0)
    h = jnp.maximum(lin(h, w2, b2), 0.0)
    mean = lin(h, wm, bm)
    t = _elu(lin(mean, wt1, bt1))
    t = _elu(lin(t, wt2, bt2))
    z = lin(t, wt3, bt3)
    d = _elu(lin(z, wd1, bd1))
    d = _elu(lin(d, wd2, bd2))
    return lin(d, wd3, bd3)


if __name__ == "__main__":
    key = jax.random.PRNGKey(0)

    # Shapes consistent with the module: input_dim=256, latent_dim=32,
    # interpretation_dims=[3, 5] (interpretator heads and logvar branch are
    # not used by forward(), so they do not appear in this kernel).
    # batch=300 is deliberately not a multiple of tile_b to exercise the
    # ragged-batch padding path; padded grid = 384/128 = 3 steps.
    input_dim, latent_dim, batch = 256, 32, 300

    k_x, k_p = jax.random.split(key)
    x = jax.random.normal(k_x, (batch, input_dim), dtype=jnp.float32)
    params = make_params(k_p, input_dim, latent_dim)

    x_hat = funcvae_forward(x, params, tile_b=128)
    x_hat = jax.block_until_ready(x_hat)

    ref = funcvae_forward_ref(x, params)
    assert x_hat.shape == (batch, input_dim)
    assert jnp.allclose(x_hat, ref, atol=2e-2, rtol=2e-2), "mismatch vs JAX reference"

    print("KERNEL_OK")
</pallas_src>

<mosaic_0001>
module attributes {stable_mosaic.version = 11 : i64} {
  func.func @funcvae_forward_kernel(%arg0: i32, %arg1: memref<128x256xbf16, #tpu.memory_space<vmem>>, %arg2: memref<256x512xbf16, #tpu.memory_space<vmem>>, %arg3: memref<1x512xf32, #tpu.memory_space<vmem>>, %arg4: memref<512x128xbf16, #tpu.memory_space<vmem>>, %arg5: memref<1x128xf32, #tpu.memory_space<vmem>>, %arg6: memref<128x128xbf16, #tpu.memory_space<vmem>>, %arg7: memref<1x128xf32, #tpu.memory_space<vmem>>, %arg8: memref<128x128xbf16, #tpu.memory_space<vmem>>, %arg9: memref<1x128xf32, #tpu.memory_space<vmem>>, %arg10: memref<128x128xbf16, #tpu.memory_space<vmem>>, %arg11: memref<1x128xf32, #tpu.memory_space<vmem>>, %arg12: memref<128x128xbf16, #tpu.memory_space<vmem>>, %arg13: memref<1x128xf32, #tpu.memory_space<vmem>>, %arg14: memref<128x128xbf16, #tpu.memory_space<vmem>>, %arg15: memref<1x128xf32, #tpu.memory_space<vmem>>, %arg16: memref<128x512xbf16, #tpu.memory_space<vmem>>, %arg17: memref<1x512xf32, #tpu.memory_space<vmem>>, %arg18: memref<512x256xbf16, #tpu.memory_space<vmem>>, %arg19: memref<1x256xf32, #tpu.memory_space<vmem>>, %arg20: memref<128x256xf32, #tpu.memory_space<vmem>>) attributes {dimension_semantics = [#tpu.dimension_semantics<parallel>], iteration_bounds = array<i64: 3>, scalar_prefetch = 0 : i64, scratch_operands = 0 : i64, tpu.core_type = #tpu.core_type<tc>, window_params = [{transform_indices = @transform_0, window_bounds = array<i64: 128, 256>}, {pipeline_mode = #tpu.pipeline_mode<synchronous>, transform_indices = @transform_1, window_bounds = array<i64: 256, 512>}, {pipeline_mode = #tpu.pipeline_mode<synchronous>, transform_indices = @transform_2, window_bounds = array<i64: 1, 512>}, {pipeline_mode = #tpu.pipeline_mode<synchronous>, transform_indices = @transform_3, window_bounds = array<i64: 512, 128>}, {pipeline_mode = #tpu.pipeline_mode<synchronous>, transform_indices = @transform_4, window_bounds = array<i64: 1, 128>}, {pipeline_mode = #tpu.pipeline_mode<synchronous>, transform_indices = @transform_5, window_bounds = array<i64: 128, 128>}, {pipeline_mode = #tpu.pipeline_mode<synchronous>, transform_indices = @transform_6, window_bounds = array<i64: 1, 128>}, {pipeline_mode = #tpu.pipeline_mode<synchronous>, transform_indices = @transform_7, window_bounds = array<i64: 128, 128>}, {pipeline_mode = #tpu.pipeline_mode<synchronous>, transform_indices = @transform_8, window_bounds = array<i64: 1, 128>}, {pipeline_mode = #tpu.pipeline_mode<synchronous>, transform_indices = @transform_9, window_bounds = array<i64: 128, 128>}, {pipeline_mode = #tpu.pipeline_mode<synchronous>, transform_indices = @transform_10, window_bounds = array<i64: 1, 128>}, {pipeline_mode = #tpu.pipeline_mode<synchronous>, transform_indices = @transform_11, window_bounds = array<i64: 128, 128>}, {pipeline_mode = #tpu.pipeline_mode<synchronous>, transform_indices = @transform_12, window_bounds = array<i64: 1, 128>}, {pipeline_mode = #tpu.pipeline_mode<synchronous>, transform_indices = @transform_13, window_bounds = array<i64: 128, 128>}, {pipeline_mode = #tpu.pipeline_mode<synchronous>, transform_indices = @transform_14, window_bounds = array<i64: 1, 128>}, {pipeline_mode = #tpu.pipeline_mode<synchronous>, transform_indices = @transform_15, window_bounds = array<i64: 128, 512>}, {pipeline_mode = #tpu.pipeline_mode<synchronous>, transform_indices = @transform_16, window_bounds = array<i64: 1, 512>}, {pipeline_mode = #tpu.pipeline_mode<synchronous>, transform_indices = @transform_17, window_bounds = array<i64: 512, 256>}, {pipeline_mode = #tpu.pipeline_mode<synchronous>, transform_indices = @transform_18, window_bounds = array<i64: 1, 256>}, {transform_indices = @transform_19, window_bounds = array<i64: 128, 256>}]} {
    %c0 = arith.constant 0 : index
    %c0_0 = arith.constant 0 : index
    %0 = vector.load %arg1[%c0, %c0_0] : memref<128x256xbf16, #tpu.memory_space<vmem>>, vector<128x256xbf16>
    %c0_1 = arith.constant 0 : index
    %c0_2 = arith.constant 0 : index
    %1 = vector.load %arg2[%c0_1, %c0_2] : memref<256x512xbf16, #tpu.memory_space<vmem>>, vector<256x512xbf16>
    %cst = arith.constant dense<0.000000e+00> : vector<128x512xf32>
    %2 = tpu.matmul %0, %1, %cst {dimension_numbers = #tpu.dot_dimension_numbers<[1], [0], [0], [1], [0, 0, 1, 1], [], []>} : vector<128x256xbf16>, vector<256x512xbf16>, vector<128x512xf32> -> vector<128x512xf32>
    %c0_3 = arith.constant 0 : index
    %c0_4 = arith.constant 0 : index
    %3 = vector.load %arg3[%c0_3, %c0_4] : memref<1x512xf32, #tpu.memory_space<vmem>>, vector<1x512xf32>
    %4 = vector.broadcast %3 : vector<1x512xf32> to vector<128x512xf32>
    %5 = arith.addf %2, %4 : vector<128x512xf32>
    %cst_5 = arith.constant 0.000000e+00 : f32
    %6 = vector.broadcast %cst_5 : f32 to vector<128x512xf32>
    %7 = arith.maximumf %5, %6 : vector<128x512xf32>
    %8 = arith.truncf %7 : vector<128x512xf32> to vector<128x512xbf16>
    %c0_6 = arith.constant 0 : index
    %c0_7 = arith.constant 0 : index
    %9 = vector.load %arg4[%c0_6, %c0_7] : memref<512x128xbf16, #tpu.memory_space<vmem>>, vector<512x128xbf16>
    %cst_8 = arith.constant dense<0.000000e+00> : vector<128x128xf32>
    %10 = tpu.matmul %8, %9, %cst_8 {dimension_numbers = #tpu.dot_dimension_numbers<[1], [0], [0], [1], [0, 0, 1, 1], [], []>} : vector<128x512xbf16>, vector<512x128xbf16>, vector<128x128xf32> -> vector<128x128xf32>
    %c0_9 = arith.constant 0 : index
    %c0_10 = arith.constant 0 : index
    %11 = vector.load %arg5[%c0_9, %c0_10] : memref<1x128xf32, #tpu.memory_space<vmem>>, vector<1x128xf32>
    %12 = vector.broadcast %11 : vector<1x128xf32> to vector<128x128xf32>
    %13 = arith.addf %10, %12 : vector<128x128xf32>
    %cst_11 = arith.constant 0.000000e+00 : f32
    %14 = vector.broadcast %cst_11 : f32 to vector<128x128xf32>
    %15 = arith.maximumf %13, %14 : vector<128x128xf32>
    %16 = arith.truncf %15 : vector<128x128xf32> to vector<128x128xbf16>
    %c0_12 = arith.constant 0 : index
    %c0_13 = arith.constant 0 : index
    %17 = vector.load %arg6[%c0_12, %c0_13] : memref<128x128xbf16, #tpu.memory_space<vmem>>, vector<128x128xbf16>
    %cst_14 = arith.constant dense<0.000000e+00> : vector<128x128xf32>
    %18 = tpu.matmul %16, %17, %cst_14 {dimension_numbers = #tpu.dot_dimension_numbers<[1], [0], [0], [1], [0, 0, 1, 1], [], []>} : vector<128x128xbf16>, vector<128x128xbf16>, vector<128x128xf32> -> vector<128x128xf32>
    %c0_15 = arith.constant 0 : index
    %c0_16 = arith.constant 0 : index
    %19 = vector.load %arg7[%c0_15, %c0_16] : memref<1x128xf32, #tpu.memory_space<vmem>>, vector<1x128xf32>
    %20 = vector.broadcast %19 : vector<1x128xf32> to vector<128x128xf32>
    %21 = arith.addf %18, %20 : vector<128x128xf32>
    %22 = arith.truncf %21 : vector<128x128xf32> to vector<128x128xbf16>
    %c0_17 = arith.constant 0 : index
    %c0_18 = arith.constant 0 : index
    %23 = vector.load %arg8[%c0_17, %c0_18] : memref<128x128xbf16, #tpu.memory_space<vmem>>, vector<128x128xbf16>
    %cst_19 = arith.constant dense<0.000000e+00> : vector<128x128xf32>
    %24 = tpu.matmul %22, %23, %cst_19 {dimension_numbers = #tpu.dot_dimension_numbers<[1], [0], [0], [1], [0, 0, 1, 1], [], []>} : vector<128x128xbf16>, vector<128x128xbf16>, vector<128x128xf32> -> vector<128x128xf32>
    %c0_20 = arith.constant 0 : index
    %c0_21 = arith.constant 0 : index
    %25 = vector.load %arg9[%c0_20, %c0_21] : memref<1x128xf32, #tpu.memory_space<vmem>>, vector<1x128xf32>
    %26 = vector.broadcast %25 : vector<1x128xf32> to vector<128x128xf32>
    %27 = arith.addf %24, %26 : vector<128x128xf32>
    %cst_22 = arith.constant 0.000000e+00 : f32
    %28 = vector.broadcast %cst_22 : f32 to vector<128x128xf32>
    %29 = arith.cmpf ogt, %27, %28 : vector<128x128xf32>
    %cst_23 = arith.constant 0.000000e+00 : f32
    %30 = vector.broadcast %cst_23 : f32 to vector<128x128xf32>
    %31 = arith.minimumf %27, %30 : vector<128x128xf32>
    %32 = math.exp %31 : vector<128x128xf32>
    %cst_24 = arith.constant 1.000000e+00 : f32
    %33 = vector.broadcast %cst_24 : f32 to vector<128x128xf32>
    %34 = arith.subf %32, %33 : vector<128x128xf32>
    %35 = arith.select %29, %27, %34 : vector<128x128xi1>, vector<128x128xf32>
    %36 = arith.truncf %35 : vector<128x128xf32> to vector<128x128xbf16>
    %c0_25 = arith.constant 0 : index
    %c0_26 = arith.constant 0 : index
    %37 = vector.load %arg10[%c0_25, %c0_26] : memref<128x128xbf16, #tpu.memory_space<vmem>>, vector<128x128xbf16>
    %cst_27 = arith.constant dense<0.000000e+00> : vector<128x128xf32>
    %38 = tpu.matmul %36, %37, %cst_27 {dimension_numbers = #tpu.dot_dimension_numbers<[1], [0], [0], [1], [0, 0, 1, 1], [], []>} : vector<128x128xbf16>, vector<128x128xbf16>, vector<128x128xf32> -> vector<128x128xf32>
    %c0_28 = arith.constant 0 : index
    %c0_29 = arith.constant 0 : index
    %39 = vector.load %arg11[%c0_28, %c0_29] : memref<1x128xf32, #tpu.memory_space<vmem>>, vector<1x128xf32>
    %40 = vector.broadcast %39 : vector<1x128xf32> to vector<128x128xf32>
    %41 = arith.addf %38, %40 : vector<128x128xf32>
    %cst_30 = arith.constant 0.000000e+00 : f32
    %42 = vector.broadcast %cst_30 : f32 to vector<128x128xf32>
    %43 = arith.cmpf ogt, %41, %42 : vector<128x128xf32>
    %cst_31 = arith.constant 0.000000e+00 : f32
    %44 = vector.broadcast %cst_31 : f32 to vector<128x128xf32>
    %45 = arith.minimumf %41, %44 : vector<128x128xf32>
    %46 = math.exp %45 : vector<128x128xf32>
    %cst_32 = arith.constant 1.000000e+00 : f32
    %47 = vector.broadcast %cst_32 : f32 to vector<128x128xf32>
    %48 = arith.subf %46, %47 : vector<128x128xf32>
    %49 = arith.select %43, %41, %48 : vector<128x128xi1>, vector<128x128xf32>
    %50 = arith.truncf %49 : vector<128x128xf32> to vector<128x128xbf16>
    %c0_33 = arith.constant 0 : index
    %c0_34 = arith.constant 0 : index
    %51 = vector.load %arg12[%c0_33, %c0_34] : memref<128x128xbf16, #tpu.memory_space<vmem>>, vector<128x128xbf16>
    %cst_35 = arith.constant dense<0.000000e+00> : vector<128x128xf32>
    %52 = tpu.matmul %50, %51, %cst_35 {dimension_numbers = #tpu.dot_dimension_numbers<[1], [0], [0], [1], [0, 0, 1, 1], [], []>} : vector<128x128xbf16>, vector<128x128xbf16>, vector<128x128xf32> -> vector<128x128xf32>
    %c0_36 = arith.constant 0 : index
    %c0_37 = arith.constant 0 : index
    %53 = vector.load %arg13[%c0_36, %c0_37] : memref<1x128xf32, #tpu.memory_space<vmem>>, vector<1x128xf32>
    %54 = vector.broadcast %53 : vector<1x128xf32> to vector<128x128xf32>
    %55 = arith.addf %52, %54 : vector<128x128xf32>
    %56 = arith.truncf %55 : vector<128x128xf32> to vector<128x128xbf16>
    %c0_38 = arith.constant 0 : index
    %c0_39 = arith.constant 0 : index
    %57 = vector.load %arg14[%c0_38, %c0_39] : memref<128x128xbf16, #tpu.memory_space<vmem>>, vector<128x128xbf16>
    %cst_40 = arith.constant dense<0.000000e+00> : vector<128x128xf32>
    %58 = tpu.matmul %56, %57, %cst_40 {dimension_numbers = #tpu.dot_dimension_numbers<[1], [0], [0], [1], [0, 0, 1, 1], [], []>} : vector<128x128xbf16>, vector<128x128xbf16>, vector<128x128xf32> -> vector<128x128xf32>
    %c0_41 = arith.constant 0 : index
    %c0_42 = arith.constant 0 : index
    %59 = vector.load %arg15[%c0_41, %c0_42] : memref<1x128xf32, #tpu.memory_space<vmem>>, vector<1x128xf32>
    %60 = vector.broadcast %59 : vector<1x128xf32> to vector<128x128xf32>
    %61 = arith.addf %58, %60 : vector<128x128xf32>
    %cst_43 = arith.constant 0.000000e+00 : f32
    %62 = vector.broadcast %cst_43 : f32 to vector<128x128xf32>
    %63 = arith.cmpf ogt, %61, %62 : vector<128x128xf32>
    %cst_44 = arith.constant 0.000000e+00 : f32
    %64 = vector.broadcast %cst_44 : f32 to vector<128x128xf32>
    %65 = arith.minimumf %61, %64 : vector<128x128xf32>
    %66 = math.exp %65 : vector<128x128xf32>
    %cst_45 = arith.constant 1.000000e+00 : f32
    %67 = vector.broadcast %cst_45 : f32 to vector<128x128xf32>
    %68 = arith.subf %66, %67 : vector<128x128xf32>
    %69 = arith.select %63, %61, %68 : vector<128x128xi1>, vector<128x128xf32>
    %70 = arith.truncf %69 : vector<128x128xf32> to vector<128x128xbf16>
    %c0_46 = arith.constant 0 : index
    %c0_47 = arith.constant 0 : index
    %71 = vector.load %arg16[%c0_46, %c0_47] : memref<128x512xbf16, #tpu.memory_space<vmem>>, vector<128x512xbf16>
    %cst_48 = arith.constant dense<0.000000e+00> : vector<128x512xf32>
    %72 = tpu.matmul %70, %71, %cst_48 {dimension_numbers = #tpu.dot_dimension_numbers<[1], [0], [0], [1], [0, 0, 1, 1], [], []>} : vector<128x128xbf16>, vector<128x512xbf16>, vector<128x512xf32> -> vector<128x512xf32>
    %c0_49 = arith.constant 0 : index
    %c0_50 = arith.constant 0 : index
    %73 = vector.load %arg17[%c0_49, %c0_50] : memref<1x512xf32, #tpu.memory_space<vmem>>, vector<1x512xf32>
    %74 = vector.broadcast %73 : vector<1x512xf32> to vector<128x512xf32>
    %75 = arith.addf %72, %74 : vector<128x512xf32>
    %cst_51 = arith.constant 0.000000e+00 : f32
    %76 = vector.broadcast %cst_51 : f32 to vector<128x512xf32>
    %77 = arith.cmpf ogt, %75, %76 : vector<128x512xf32>
    %cst_52 = arith.constant 0.000000e+00 : f32
    %78 = vector.broadcast %cst_52 : f32 to vector<128x512xf32>
    %79 = arith.minimumf %75, %78 : vector<128x512xf32>
    %80 = math.exp %79 : vector<128x512xf32>
    %cst_53 = arith.constant 1.000000e+00 : f32
    %81 = vector.broadcast %cst_53 : f32 to vector<128x512xf32>
    %82 = arith.subf %80, %81 : vector<128x512xf32>
    %83 = arith.select %77, %75, %82 : vector<128x512xi1>, vector<128x512xf32>
    %84 = arith.truncf %83 : vector<128x512xf32> to vector<128x512xbf16>
    %c0_54 = arith.constant 0 : index
    %c0_55 = arith.constant 0 : index
    %85 = vector.load %arg18[%c0_54, %c0_55] : memref<512x256xbf16, #tpu.memory_space<vmem>>, vector<512x256xbf16>
    %cst_56 = arith.constant dense<0.000000e+00> : vector<128x256xf32>
    %86 = tpu.matmul %84, %85, %cst_56 {dimension_numbers = #tpu.dot_dimension_numbers<[1], [0], [0], [1], [0, 0, 1, 1], [], []>} : vector<128x512xbf16>, vector<512x256xbf16>, vector<128x256xf32> -> vector<128x256xf32>
    %c0_57 = arith.constant 0 : index
    %c0_58 = arith.constant 0 : index
    %87 = vector.load %arg19[%c0_57, %c0_58] : memref<1x256xf32, #tpu.memory_space<vmem>>, vector<1x256xf32>
    %88 = vector.broadcast %87 : vector<1x256xf32> to vector<128x256xf32>
    %89 = arith.addf %86, %88 : vector<128x256xf32>
    %c0_59 = arith.constant 0 : index
    %c0_60 = arith.constant 0 : index
    %90 = vector.load %arg20[%c0_59, %c0_60] : memref<128x256xf32, #tpu.memory_space<vmem>>, vector<128x256xf32>
    tpu.vector_store %arg20[%c0_59, %c0_60], %89 {strides = array<i32>} : memref<128x256xf32, #tpu.memory_space<vmem>>, vector<128x256xf32>,
    return
  }
  func.func @transform_0(%arg0: i32) -> (i32, i32) {
    %c0_i32 = arith.constant 0 : i32
    %c0_i32_0 = arith.constant 0 : i32
    return %arg0, %c0_i32 : i32, i32
  }
  func.func @transform_1(%arg0: i32) -> (i32, i32) {
    %c0_i32 = arith.constant 0 : i32
    %c0_i32_0 = arith.constant 0 : i32
    %c0_i32_1 = arith.constant 0 : i32
    return %c0_i32, %c0_i32_0 : i32, i32
  }
  func.func @transform_2(%arg0: i32) -> (i32, i32) {
    %c0_i32 = arith.constant 0 : i32
    %c0_i32_0 = arith.constant 0 : i32
    %c0_i32_1 = arith.constant 0 : i32
    return %c0_i32, %c0_i32_0 : i32, i32
  }
  func.func @transform_3(%arg0: i32) -> (i32, i32) {
    %c0_i32 = arith.constant 0 : i32
    %c0_i32_0 = arith.constant 0 : i32
    %c0_i32_1 = arith.constant 0 : i32
    return %c0_i32, %c0_i32_0 : i32, i32
  }
  func.func @transform_4(%arg0: i32) -> (i32, i32) {
    %c0_i32 = arith.constant 0 : i32
    %c0_i32_0 = arith.constant 0 : i32
    %c0_i32_1 = arith.constant 0 : i32
    return %c0_i32, %c0_i32_0 : i32, i32
  }
  func.func @transform_5(%arg0: i32) -> (i32, i32) {
    %c0_i32 = arith.constant 0 : i32
    %c0_i32_0 = arith.constant 0 : i32
    %c0_i32_1 = arith.constant 0 : i32
    return %c0_i32, %c0_i32_0 : i32, i32
  }
  func.func @transform_6(%arg0: i32) -> (i32, i32) {
    %c0_i32 = arith.constant 0 : i32
    %c0_i32_0 = arith.constant 0 : i32
    %c0_i32_1 = arith.constant 0 : i32
    return %c0_i32, %c0_i32_0 : i32, i32
  }
  func.func @transform_7(%arg0: i32) -> (i32, i32) {
    %c0_i32 = arith.constant 0 : i32
    %c0_i32_0 = arith.constant 0 : i32
    %c0_i32_1 = arith.constant 0 : i32
    return %c0_i32, %c0_i32_0 : i32, i32
  }
  func.func @transform_8(%arg0: i32) -> (i32, i32) {
    %c0_i32 = arith.constant 0 : i32
    %c0_i32_0 = arith.constant 0 : i32
    %c0_i32_1 = arith.constant 0 : i32
    return %c0_i32, %c0_i32_0 : i32, i32
  }
  func.func @transform_9(%arg0: i32) -> (i32, i32) {
    %c0_i32 = arith.constant 0 : i32
    %c0_i32_0 = arith.constant 0 : i32
    %c0_i32_1 = arith.constant 0 : i32
    return %c0_i32, %c0_i32_0 : i32, i32
  }
  func.func @transform_10(%arg0: i32) -> (i32, i32) {
    %c0_i32 = arith.constant 0 : i32
    %c0_i32_0 = arith.constant 0 : i32
    %c0_i32_1 = arith.constant 0 : i32
    return %c0_i32, %c0_i32_0 : i32, i32
  }
  func.func @transform_11(%arg0: i32) -> (i32, i32) {
    %c0_i32 = arith.constant 0 : i32
    %c0_i32_0 = arith.constant 0 : i32
    %c0_i32_1 = arith.constant 0 : i32
    return %c0_i32, %c0_i32_0 : i32, i32
  }
  func.func @transform_12(%arg0: i32) -> (i32, i32) {
    %c0_i32 = arith.constant 0 : i32
    %c0_i32_0 = arith.constant 0 : i32
    %c0_i32_1 = arith.constant 0 : i32
    return %c0_i32, %c0_i32_0 : i32, i32
  }
  func.func @transform_13(%arg0: i32) -> (i32, i32) {
    %c0_i32 = arith.constant 0 : i32
    %c0_i32_0 = arith.constant 0 : i32
    %c0_i32_1 = arith.constant 0 : i32
    return %c0_i32, %c0_i32_0 : i32, i32
  }
  func.func @transform_14(%arg0: i32) -> (i32, i32) {
    %c0_i32 = arith.constant 0 : i32
    %c0_i32_0 = arith.constant 0 : i32
    %c0_i32_1 = arith.constant 0 : i32
    return %c0_i32, %c0_i32_0 : i32, i32
  }
  func.func @transform_15(%arg0: i32) -> (i32, i32) {
    %c0_i32 = arith.constant 0 : i32
    %c0_i32_0 = arith.constant 0 : i32
    %c0_i32_1 = arith.constant 0 : i32
    return %c0_i32, %c0_i32_0 : i32, i32
  }
  func.func @transform_16(%arg0: i32) -> (i32, i32) {
    %c0_i32 = arith.constant 0 : i32
    %c0_i32_0 = arith.constant 0 : i32
    %c0_i32_1 = arith.constant 0 : i32
    return %c0_i32, %c0_i32_0 : i32, i32
  }
  func.func @transform_17(%arg0: i32) -> (i32, i32) {
    %c0_i32 = arith.constant 0 : i32
    %c0_i32_0 = arith.constant 0 : i32
    %c0_i32_1 = arith.constant 0 : i32
    return %c0_i32, %c0_i32_0 : i32, i32
  }
  func.func @transform_18(%arg0: i32) -> (i32, i32) {
    %c0_i32 = arith.constant 0 : i32
    %c0_i32_0 = arith.constant 0 : i32
    %c0_i32_1 = arith.constant 0 : i32
    return %c0_i32, %c0_i32_0 : i32, i32
  }
  func.func @transform_19(%arg0: i32) -> (i32, i32) {
    %c0_i32 = arith.constant 0 : i32
    %c0_i32_0 = arith.constant 0 : i32
    return %arg0, %c0_i32 : i32, i32
  }
}

</mosaic_0001>

<llo_original>
// kernel: tpu_custom_call.1
$region0: #{tpu_custom_call.1}
  #allocation0 [shape = 'u32[]', space=smem, size = 0x4, offset = 0x4, fixed_abs, tag = 'smem constant byte address 0x4 - core index']
  #allocation1 [shape = 'u32[144,128]{1,0:T(1,128)}', space=vmem, size = 0x12000, scoped, tag = 'internal scratch']
  %s0 = inlined_call_operand.hbm [shape: bf16[384,256], index: 0, kind: input, shape index: {}]
  %s1 = inlined_call_operand.hbm [shape: bf16[256,512], index: 1, kind: input, shape index: {}]
  %s2 = inlined_call_operand.hbm [shape: f32[1,512], index: 2, kind: input, shape index: {}]
  %s3 = inlined_call_operand.hbm [shape: bf16[512,128], index: 3, kind: input, shape index: {}]
  %s4 = inlined_call_operand.vmem [shape: f32[1,128], index: 4, kind: input, shape index: {}]
  %s5 = inlined_call_operand.hbm [shape: bf16[128,128], index: 5, kind: input, shape index: {}]
  %s6 = inlined_call_operand.vmem [shape: f32[1,128], index: 6, kind: input, shape index: {}]
  %s7 = inlined_call_operand.hbm [shape: bf16[128,128], index: 7, kind: input, shape index: {}]
  %s8 = inlined_call_operand.vmem [shape: f32[1,128], index: 8, kind: input, shape index: {}]
  %s9 = inlined_call_operand.hbm [shape: bf16[128,128], index: 9, kind: input, shape index: {}]
  %s10 = inlined_call_operand.vmem [shape: f32[1,128], index: 10, kind: input, shape index: {}]
  %s11 = inlined_call_operand.hbm [shape: bf16[128,128], index: 11, kind: input, shape index: {}]
  %s12 = inlined_call_operand.vmem [shape: f32[1,128], index: 12, kind: input, shape index: {}]
  %s13 = inlined_call_operand.hbm [shape: bf16[128,128], index: 13, kind: input, shape index: {}]
  %s14 = inlined_call_operand.vmem [shape: f32[1,128], index: 14, kind: input, shape index: {}]
  %s15 = inlined_call_operand.hbm [shape: bf16[128,512], index: 15, kind: input, shape index: {}]
  %s16 = inlined_call_operand.vmem [shape: f32[1,512], index: 16, kind: input, shape index: {}]
  %s17 = inlined_call_operand.hbm [shape: bf16[512,256], index: 17, kind: input, shape index: {}]
  %s18 = inlined_call_operand.vmem [shape: f32[1,256], index: 18, kind: input, shape index: {}]
  %s19 = inlined_call_operand.hbm [shape: f32[384,256], index: 19, kind: output, shape index: {}]
  %s20 = sld [smem:[#allocation0]]
  $region153: #{tpu_custom_call.1} parent=0
    _
  %s22 = ssub.s32 1, %s20
  %s23 = scalar_select 0, %s22, %s20
  $region1: #{tpu_custom_call.1} parent=0
    #allocation2 [shape = 'u8[131072]{0}', space=vmem, size = 0x20000, scoped, tag = 'input window, operand 0']
    #allocation3 [shape = 's32[2]{0}', space=sflag, size = 0x8, scoped, tag = 'scoped memory for tpu_custom_call.1']
    #allocation4 [shape = 's32[2]{0}', space=sflag, size = 0x8, scoped, tag = 'scoped memory for tpu_custom_call.1']
    #allocation5 [shape = 'u8[262144]{0}', space=vmem, size = 0x40000, scoped, tag = 'input window, operand 1, single buffered']
    #allocation6 [shape = 's32[1]{0}', space=sflag, size = 0x4, scoped, tag = 'scoped memory for tpu_custom_call.1']
    #allocation7 [shape = 'u8[2048]{0}', space=vmem, size = 0x800, scoped, tag = 'input window, operand 2, single buffered']
    #allocation8 [shape = 'u8[131072]{0}', space=vmem, size = 0x20000, scoped, tag = 'input window, operand 3, single buffered']
    #allocation9 [shape = 's32[1]{0}', space=sflag, size = 0x4, scoped, tag = 'scoped memory for tpu_custom_call.1']
    #allocation10 [shape = 'u8[32768]{0}', space=vmem, size = 0x8000, scoped, tag = 'input window, operand 5, single buffered']
    #allocation11 [shape = 'u8[32768]{0}', space=vmem, size = 0x8000, scoped, tag = 'input window, operand 7, single buffered']
    #allocation12 [shape = 's32[1]{0}', space=sflag, size = 0x4, scoped, tag = 'scoped memory for tpu_custom_call.1']
    #allocation13 [shape = 'u8[32768]{0}', space=vmem, size = 0x8000, scoped, tag = 'input window, operand 9, single buffered']
    #allocation14 [shape = 'u8[32768]{0}', space=vmem, size = 0x8000, scoped, tag = 'input window, operand 11, single buffered']
    #allocation15 [shape = 's32[1]{0}', space=sflag, size = 0x4, scoped, tag = 'scoped memory for tpu_custom_call.1']
    #allocation16 [shape = 'u8[32768]{0}', space=vmem, size = 0x8000, scoped, tag = 'input window, operand 13, single buffered']
    #allocation17 [shape = 'u8[131072]{0}', space=vmem, size = 0x20000, scoped, tag = 'input window, operand 15, single buffered']
    #allocation18 [shape = 's32[1]{0}', space=sflag, size = 0x4, scoped, tag = 'scoped memory for tpu_custom_call.1']
    #allocation19 [shape = 'u8[262144]{0}', space=vmem, size = 0x40000, scoped, tag = 'input window, operand 17, single buffered']
    #allocation20 [shape = 'u8[262144]{0}', space=vmem, size = 0x40000, scoped, tag = 'output window, operand 0']
    %24 = vsyncpa [#allocation3], 0
    %s25 = scalar_lea.sflag [#allocation3], 1
    %26 = vsyncpa %s25, 0
    %27 = vsyncpa [#allocation6], 0
    %28 = vsyncpa [#allocation9], 0
    %29 = vsyncpa [#allocation12], 0
    %30 = vsyncpa [#allocation15], 0
    %31 = vsyncpa [#allocation18], 0
    %32 = vsyncpa [#allocation4], 0
    %s33 = scalar_lea.sflag [#allocation4], 1
    %34 = vsyncpa %s33, 0
    loop: start=0, step=1, limit=5
    $region2: #{tpu_custom_call.1} parent=1 // loop_pre_header
      _
    $region3: #{tpu_custom_call.1} parent=1 // loop_header
      %s36 = sphi 0, %s40
      %p37 = scmp.ge.s32.totalorder %s36, 5
      %s46 = sphi 0, %s48
      %s49 = sphi 0, %s46
      %s50 = sphi 0, %s49
      %s66 = sphi 0, %s50
      %s70 = sphi 0, %s70
      %s72 = sphi 0, %s70
      %s73 = sphi 0, %s72
      %s87 = sphi 0, %s73
      %s91 = sphi 0, %s91
      %s93 = sphi 0, %s91
      %s94 = sphi 0, %s93
      %s108 = sphi 0, %s94
      %s112 = sphi 0, %s112
      %s114 = sphi 0, %s112
      %s115 = sphi 0, %s114
      %s129 = sphi 0, %s115
      %s133 = sphi 0, %s133
      %s135 = sphi 0, %s133
      %s136 = sphi 0, %s135
      %s150 = sphi 0, %s136
      %s154 = sphi 0, %s154
      %s156 = sphi 0, %s154
      %s157 = sphi 0, %s156
      %s171 = sphi 0, %s157
      %s175 = sphi 0, %s175
      %s177 = sphi 0, %s175
      %s178 = sphi 0, %s177
      %s192 = sphi 0, %s178
      %s196 = sphi 0, %s196
      %s198 = sphi 0, %s196
      %s199 = sphi 0, %s198
      %s213 = sphi 0, %s199
      %s217 = sphi 0, %s217
      %s219 = sphi 0, %s217
      %s220 = sphi 0, %s219
      %s234 = sphi 0, %s220
      %s238 = sphi 0, %s238
      %s240 = sphi 0, %s238
      %s241 = sphi 0, %s240
      %s255 = sphi 0, %s241
      %s259 = sphi 0, %s259
      %s261 = sphi 0, %s259
      %s262 = sphi 0, %s261
      %s276 = sphi 0, %s262
      %s280 = sphi 0, %s280
      %s282 = sphi 0, %s280
      %s283 = sphi 0, %s282
      %s297 = sphi 0, %s283
      %s301 = sphi 0, %s301
      %s303 = sphi 0, %s301
      %s304 = sphi 0, %s303
      %s318 = sphi 0, %s304
      %s322 = sphi 0, %s322
      %s324 = sphi 0, %s322
      %s325 = sphi 0, %s324
      %s339 = sphi 0, %s325
      %s343 = sphi 0, %s343
      %s345 = sphi 0, %s343
      %s346 = sphi 0, %s345
      %s360 = sphi 0, %s346
      %s364 = sphi 0, %s364
      %s366 = sphi 0, %s364
      %s367 = sphi 0, %s366
      %s381 = sphi 0, %s367
      %s385 = sphi 0, %s385
      %s387 = sphi 0, %s385
      %s388 = sphi 0, %s387
      %s402 = sphi 0, %s388
      %s406 = sphi 0, %s406
      %s408 = sphi 0, %s406
      %s409 = sphi 0, %s408
      %s423 = sphi 0, %s409
      %s427 = sphi 0, %s427
      %s429 = sphi 0, %s427
      %s430 = sphi 0, %s429
      %s444 = sphi 0, %s430
      %s450 = sphi 0, %s452
      %s453 = sphi 0, %s450
      %s454 = sphi 0, %s453
      %s470 = sphi 0, %s454
    $region4: #{tpu_custom_call.1} parent=1 // loop_header_branch
      %39 = sbr.rel (%p37) target = $region8
    $region5: #{tpu_custom_call.1} parent=1 // loop_body
      %s41 = ssub.s32 %s36, 1
      %s42 = ssub.s32 %s36, 2
      %s43 = sadd.s32 %s36, 1
      %s44 = ssub.s32 %s36, %s43
      %p45 = scmp.eq.s32.totalorder %s44, 0
      %s47 = sadd.s32 %s46, 1
      %s48 = scalar_select %p45, %s46, %s47
      %p51 = pneg %p45
      %p52 = scmp.eq.s32.totalorder %s36, 2
      %p53 = por %p51, %p52
      %p54 = scmp.ne.s32.totalorder %s46, %s49
      %p55 = scmp.eq.s32.totalorder %s36, 0
      %p56 = por %p54, %p55
      %p57 = scmp.ne.s32.totalorder %s46, %s49
      %p58 = scmp.eq.s32.totalorder %s41, 2
      %p59 = por %p57, %p58
      %p60 = scmp.ne.s32.totalorder %s49, %s50
      %p61 = scmp.eq.s32.totalorder %s41, 0
      %p62 = por %p60, %p61
      %p63 = scmp.ne.s32.totalorder %s49, %s50
      %p64 = scmp.eq.s32.totalorder %s42, 2
      %p65 = por %p63, %p64
      %p67 = scmp.ne.s32.totalorder %s50, %s66
      %p68 = scmp.eq.s32.totalorder %s42, 0
      %p69 = por %p67, %p68
      %s71 = sadd.s32 %s70, 1
      %p74 = scmp.eq.s32.totalorder %s36, 2
      %p75 = scmp.ne.s32.totalorder %s70, %s72
      %p76 = scmp.eq.s32.totalorder %s36, 0
      %p77 = por %p75, %p76
      %p78 = scmp.ne.s32.totalorder %s70, %s72
      %p79 = scmp.eq.s32.totalorder %s41, 2
      %p80 = por %p78, %p79
      %p81 = scmp.ne.s32.totalorder %s72, %s73
      %p82 = scmp.eq.s32.totalorder %s41, 0
      %p83 = por %p81, %p82
      %p84 = scmp.ne.s32.totalorder %s72, %s73
      %p85 = scmp.eq.s32.totalorder %s42, 2
      %p86 = por %p84, %p85
      %p88 = scmp.ne.s32.totalorder %s73, %s87
      %p89 = scmp.eq.s32.totalorder %s42, 0
      %p90 = por %p88, %p89
      %s92 = sadd.s32 %s91, 1
      %p95 = scmp.eq.s32.totalorder %s36, 2
      %p96 = scmp.ne.s32.totalorder %s91, %s93
      %p97 = scmp.eq.s32.totalorder %s36, 0
      %p98 = por %p96, %p97
      %p99 = scmp.ne.s32.totalorder %s91, %s93
      %p100 = scmp.eq.s32.totalorder %s41, 2
      %p101 = por %p99, %p100
      %p102 = scmp.ne.s32.totalorder %s93, %s94
      %p103 = scmp.eq.s32.totalorder %s41, 0
      %p104 = por %p102, %p103
      %p105 = scmp.ne.s32.totalorder %s93, %s94
      %p106 = scmp.eq.s32.totalorder %s42, 2
      %p107 = por %p105, %p106
      %p109 = scmp.ne.s32.totalorder %s94, %s108
      %p110 = scmp.eq.s32.totalorder %s42, 0
      %p111 = por %p109, %p110
      %s113 = sadd.s32 %s112, 1
      %p116 = scmp.eq.s32.totalorder %s36, 2
      %p117 = scmp.ne.s32.totalorder %s112, %s114
      %p118 = scmp.eq.s32.totalorder %s36, 0
      %p119 = por %p117, %p118
      %p120 = scmp.ne.s32.totalorder %s112, %s114
      %p121 = scmp.eq.s32.totalorder %s41, 2
      %p122 = por %p120, %p121
      %p123 = scmp.ne.s32.totalorder %s114, %s115
      %p124 = scmp.eq.s32.totalorder %s41, 0
      %p125 = por %p123, %p124
      %p126 = scmp.ne.s32.totalorder %s114, %s115
      %p127 = scmp.eq.s32.totalorder %s42, 2
      %p128 = por %p126, %p127
      %p130 = scmp.ne.s32.totalorder %s115, %s129
      %p131 = scmp.eq.s32.totalorder %s42, 0
      %p132 = por %p130, %p131
      %s134 = sadd.s32 %s133, 1
      %p137 = scmp.eq.s32.totalorder %s36, 2
      %p138 = scmp.ne.s32.totalorder %s133, %s135
      %p139 = scmp.eq.s32.totalorder %s36, 0
      %p140 = por %p138, %p139
      %p141 = scmp.ne.s32.totalorder %s133, %s135
      %p142 = scmp.eq.s32.totalorder %s41, 2
      %p143 = por %p141, %p142
      %p144 = scmp.ne.s32.totalorder %s135, %s136
      %p145 = scmp.eq.s32.totalorder %s41, 0
      %p146 = por %p144, %p145
      %p147 = scmp.ne.s32.totalorder %s135, %s136
      %p148 = scmp.eq.s32.totalorder %s42, 2
      %p149 = por %p147, %p148
      %p151 = scmp.ne.s32.totalorder %s136, %s150
      %p152 = scmp.eq.s32.totalorder %s42, 0
      %p153 = por %p151, %p152
      %s155 = sadd.s32 %s154, 1
      %p158 = scmp.eq.s32.totalorder %s36, 2
      %p159 = scmp.ne.s32.totalorder %s154, %s156
      %p160 = scmp.eq.s32.totalorder %s36, 0
      %p161 = por %p159, %p160
      %p162 = scmp.ne.s32.totalorder %s154, %s156
      %p163 = scmp.eq.s32.totalorder %s41, 2
      %p164 = por %p162, %p163
      %p165 = scmp.ne.s32.totalorder %s156, %s157
      %p166 = scmp.eq.s32.totalorder %s41, 0
      %p167 = por %p165, %p166
      %p168 = scmp.ne.s32.totalorder %s156, %s157
      %p169 = scmp.eq.s32.totalorder %s42, 2
      %p170 = por %p168, %p169
      %p172 = scmp.ne.s32.totalorder %s157, %s171
      %p173 = scmp.eq.s32.totalorder %s42, 0
      %p174 = por %p172, %p173
      %s176 = sadd.s32 %s175, 1
      %p179 = scmp.eq.s32.totalorder %s36, 2
      %p180 = scmp.ne.s32.totalorder %s175, %s177
      %p181 = scmp.eq.s32.totalorder %s36, 0
      %p182 = por %p180, %p181
      %p183 = scmp.ne.s32.totalorder %s175, %s177
      %p184 = scmp.eq.s32.totalorder %s41, 2
      %p185 = por %p183, %p184
      %p186 = scmp.ne.s32.totalorder %s177, %s178
      %p187 = scmp.eq.s32.totalorder %s41, 0
      %p188 = por %p186, %p187
      %p189 = scmp.ne.s32.totalorder %s177, %s178
      %p190 = scmp.eq.s32.totalorder %s42, 2
      %p191 = por %p189, %p190
      %p193 = scmp.ne.s32.totalorder %s178, %s192
      %p194 = scmp.eq.s32.totalorder %s42, 0
      %p195 = por %p193, %p194
      %s197 = sadd.s32 %s196, 1
      %p200 = scmp.eq.s32.totalorder %s36, 2
      %p201 = scmp.ne.s32.totalorder %s196, %s198
      %p202 = scmp.eq.s32.totalorder %s36, 0
      %p203 = por %p201, %p202
      %p204 = scmp.ne.s32.totalorder %s196, %s198
      %p205 = scmp.eq.s32.totalorder %s41, 2
      %p206 = por %p204, %p205
      %p207 = scmp.ne.s32.totalorder %s198, %s199
      %p208 = scmp.eq.s32.totalorder %s41, 0
      %p209 = por %p207, %p208
      %p210 = scmp.ne.s32.totalorder %s198, %s199
      %p211 = scmp.eq.s32.totalorder %s42, 2
      %p212 = por %p210, %p211
      %p214 = scmp.ne.s32.totalorder %s199, %s213
      %p215 = scmp.eq.s32.totalorder %s42, 0
      %p216 = por %p214, %p215
      %s218 = sadd.s32 %s217, 1
      %p221 = scmp.eq.s32.totalorder %s36, 2
      %p222 = scmp.ne.s32.totalorder %s217, %s219
      %p223 = scmp.eq.s32.totalorder %s36, 0
      %p224 = por %p222, %p223
      %p225 = scmp.ne.s32.totalorder %s217, %s219
      %p226 = scmp.eq.s32.totalorder %s41, 2
      %p227 = por %p225, %p226
      %p228 = scmp.ne.s32.totalorder %s219, %s220
      %p229 = scmp.eq.s32.totalorder %s41, 0
      %p230 = por %p228, %p229
      %p231 = scmp.ne.s32.totalorder %s219, %s220
      %p232 = scmp.eq.s32.totalorder %s42, 2
      %p233 = por %p231, %p232
      %p235 = scmp.ne.s32.totalorder %s220, %s234
      %p236 = scmp.eq.s32.totalorder %s42, 0
      %p237 = por %p235, %p236
      %s239 = sadd.s32 %s238, 1
      %p242 = scmp.eq.s32.totalorder %s36, 2
      %p243 = scmp.ne.s32.totalorder %s238, %s240
      %p244 = scmp.eq.s32.totalorder %s36, 0
      %p245 = por %p243, %p244
      %p246 = scmp.ne.s32.totalorder %s238, %s240
      %p247 = scmp.eq.s32.totalorder %s41, 2
      %p248 = por %p246, %p247
      %p249 = scmp.ne.s32.totalorder %s240, %s241
      %p250 = scmp.eq.s32.totalorder %s41, 0
      %p251 = por %p249, %p250
      %p252 = scmp.ne.s32.totalorder %s240, %s241
      %p253 = scmp.eq.s32.totalorder %s42, 2
      %p254 = por %p252, %p253
      %p256 = scmp.ne.s32.totalorder %s241, %s255
      %p257 = scmp.eq.s32.totalorder %s42, 0
      %p258 = por %p256, %p257
      %s260 = sadd.s32 %s259, 1
      %p263 = scmp.eq.s32.totalorder %s36, 2
      %p264 = scmp.ne.s32.totalorder %s259, %s261
      %p265 = scmp.eq.s32.totalorder %s36, 0
      %p266 = por %p264, %p265
      %p267 = scmp.ne.s32.totalorder %s259, %s261
      %p268 = scmp.eq.s32.totalorder %s41, 2
      %p269 = por %p267, %p268
      %p270 = scmp.ne.s32.totalorder %s261, %s262
      %p271 = scmp.eq.s32.totalorder %s41, 0
      %p272 = por %p270, %p271
      %p273 = scmp.ne.s32.totalorder %s261, %s262
      %p274 = scmp.eq.s32.totalorder %s42, 2
      %p275 = por %p273, %p274
      %p277 = scmp.ne.s32.totalorder %s262, %s276
      %p278 = scmp.eq.s32.totalorder %s42, 0
      %p279 = por %p277, %p278
      %s281 = sadd.s32 %s280, 1
      %p284 = scmp.eq.s32.totalorder %s36, 2
      %p285 = scmp.ne.s32.totalorder %s280, %s282
      %p286 = scmp.eq.s32.totalorder %s36, 0
      %p287 = por %p285, %p286
      %p288 = scmp.ne.s32.totalorder %s280, %s282
      %p289 = scmp.eq.s32.totalorder %s41, 2
      %p290 = por %p288, %p289
      %p291 = scmp.ne.s32.totalorder %s282, %s283
      %p292 = scmp.eq.s32.totalorder %s41, 0
      %p293 = por %p291, %p292
      %p294 = scmp.ne.s32.totalorder %s282, %s283
      %p295 = scmp.eq.s32.totalorder %s42, 2
      %p296 = por %p294, %p295
      %p298 = scmp.ne.s32.totalorder %s283, %s297
      %p299 = scmp.eq.s32.totalorder %s42, 0
      %p300 = por %p298, %p299
      %s302 = sadd.s32 %s301, 1
      %p305 = scmp.eq.s32.totalorder %s36, 2
      %p306 = scmp.ne.s32.totalorder %s301, %s303
      %p307 = scmp.eq.s32.totalorder %s36, 0
      %p308 = por %p306, %p307
      %p309 = scmp.ne.s32.totalorder %s301, %s303
      %p310 = scmp.eq.s32.totalorder %s41, 2
      %p311 = por %p309, %p310
      %p312 = scmp.ne.s32.totalorder %s303, %s304
      %p313 = scmp.eq.s32.totalorder %s41, 0
      %p314 = por %p312, %p313
      %p315 = scmp.ne.s32.totalorder %s303, %s304
      %p316 = scmp.eq.s32.totalorder %s42, 2
      %p317 = por %p315, %p316
      %p319 = scmp.ne.s32.totalorder %s304, %s318
      %p320 = scmp.eq.s32.totalorder %s42, 0
      %p321 = por %p319, %p320
      %s323 = sadd.s32 %s322, 1
      %p326 = scmp.eq.s32.totalorder %s36, 2
      %p327 = scmp.ne.s32.totalorder %s322, %s324
      %p328 = scmp.eq.s32.totalorder %s36, 0
      %p329 = por %p327, %p328
      %p330 = scmp.ne.s32.totalorder %s322, %s324
      %p331 = scmp.eq.s32.totalorder %s41, 2
      %p332 = por %p330, %p331
      %p333 = scmp.ne.s32.totalorder %s324, %s325
      %p334 = scmp.eq.s32.totalorder %s41, 0
      %p335 = por %p333, %p334
      %p336 = scmp.ne.s32.totalorder %s324, %s325
      %p337 = scmp.eq.s32.totalorder %s42, 2
      %p338 = por %p336, %p337
      %p340 = scmp.ne.s32.totalorder %s325, %s339
      %p341 = scmp.eq.s32.totalorder %s42, 0
      %p342 = por %p340, %p341
      %s344 = sadd.s32 %s343, 1
      %p347 = scmp.eq.s32.totalorder %s36, 2
      %p348 = scmp.ne.s32.totalorder %s343, %s345
      %p349 = scmp.eq.s32.totalorder %s36, 0
      %p350 = por %p348, %p349
      %p351 = scmp.ne.s32.totalorder %s343, %s345
      %p352 = scmp.eq.s32.totalorder %s41, 2
      %p353 = por %p351, %p352
      %p354 = scmp.ne.s32.totalorder %s345, %s346
      %p355 = scmp.eq.s32.totalorder %s41, 0
      %p356 = por %p354, %p355
      %p357 = scmp.ne.s32.totalorder %s345, %s346
      %p358 = scmp.eq.s32.totalorder %s42, 2
      %p359 = por %p357, %p358
      %p361 = scmp.ne.s32.totalorder %s346, %s360
      %p362 = scmp.eq.s32.totalorder %s42, 0
      %p363 = por %p361, %p362
      %s365 = sadd.s32 %s364, 1
      %p368 = scmp.eq.s32.totalorder %s36, 2
      %p369 = scmp.ne.s32.totalorder %s364, %s366
      %p370 = scmp.eq.s32.totalorder %s36, 0
      %p371 = por %p369, %p370
      %p372 = scmp.ne.s32.totalorder %s364, %s366
      %p373 = scmp.eq.s32.totalorder %s41, 2
      %p374 = por %p372, %p373
      %p375 = scmp.ne.s32.totalorder %s366, %s367
      %p376 = scmp.eq.s32.totalorder %s41, 0
      %p377 = por %p375, %p376
      %p378 = scmp.ne.s32.totalorder %s366, %s367
      %p379 = scmp.eq.s32.totalorder %s42, 2
      %p380 = por %p378, %p379
      %p382 = scmp.ne.s32.totalorder %s367, %s381
      %p383 = scmp.eq.s32.totalorder %s42, 0
      %p384 = por %p382, %p383
      %s386 = sadd.s32 %s385, 1
      %p389 = scmp.eq.s32.totalorder %s36, 2
      %p390 = scmp.ne.s32.totalorder %s385, %s387
      %p391 = scmp.eq.s32.totalorder %s36, 0
      %p392 = por %p390, %p391
      %p393 = scmp.ne.s32.totalorder %s385, %s387
      %p394 = scmp.eq.s32.totalorder %s41, 2
      %p395 = por %p393, %p394
      %p396 = scmp.ne.s32.totalorder %s387, %s388
      %p397 = scmp.eq.s32.totalorder %s41, 0
      %p398 = por %p396, %p397
      %p399 = scmp.ne.s32.totalorder %s387, %s388
      %p400 = scmp.eq.s32.totalorder %s42, 2
      %p401 = por %p399, %p400
      %p403 = scmp.ne.s32.totalorder %s388, %s402
      %p404 = scmp.eq.s32.totalorder %s42, 0
      %p405 = por %p403, %p404
      %s407 = sadd.s32 %s406, 1
      %p410 = scmp.eq.s32.totalorder %s36, 2
      %p411 = scmp.ne.s32.totalorder %s406, %s408
      %p412 = scmp.eq.s32.totalorder %s36, 0
      %p413 = por %p411, %p412
      %p414 = scmp.ne.s32.totalorder %s406, %s408
      %p415 = scmp.eq.s32.totalorder %s41, 2
      %p416 = por %p414, %p415
      %p417 = scmp.ne.s32.totalorder %s408, %s409
      %p418 = scmp.eq.s32.totalorder %s41, 0
      %p419 = por %p417, %p418
      %p420 = scmp.ne.s32.totalorder %s408, %s409
      %p421 = scmp.eq.s32.totalorder %s42, 2
      %p422 = por %p420, %p421
      %p424 = scmp.ne.s32.totalorder %s409, %s423
      %p425 = scmp.eq.s32.totalorder %s42, 0
      %p426 = por %p424, %p425
      %s428 = sadd.s32 %s427, 1
      %p431 = scmp.eq.s32.totalorder %s36, 2
      %p432 = scmp.ne.s32.totalorder %s427, %s429
      %p433 = scmp.eq.s32.totalorder %s36, 0
      %p434 = por %p432, %p433
      %p435 = scmp.ne.s32.totalorder %s427, %s429
      %p436 = scmp.eq.s32.totalorder %s41, 2
      %p437 = por %p435, %p436
      %p438 = scmp.ne.s32.totalorder %s429, %s430
      %p439 = scmp.eq.s32.totalorder %s41, 0
      %p440 = por %p438, %p439
      %p441 = scmp.ne.s32.totalorder %s429, %s430
      %p442 = scmp.eq.s32.totalorder %s42, 2
      %p443 = por %p441, %p442
      %p445 = scmp.ne.s32.totalorder %s430, %s444
      %p446 = scmp.eq.s32.totalorder %s42, 0
      %p447 = por %p445, %p446
      %s448 = ssub.s32 %s36, %s43
      %p449 = scmp.eq.s32.totalorder %s448, 0
      %s451 = sadd.s32 %s450, 1
      %s452 = scalar_select %p449, %s450, %s451
      %p455 = pneg %p449
      %p456 = scmp.eq.s32.totalorder %s36, 2
      %p457 = por %p455, %p456
      %p458 = scmp.ne.s32.totalorder %s450, %s453
      %p459 = scmp.eq.s32.totalorder %s36, 0
      %p460 = por %p458, %p459
      %p461 = scmp.ne.s32.totalorder %s450, %s453
      %p462 = scmp.eq.s32.totalorder %s41, 2
      %p463 = por %p461, %p462
      %p464 = scmp.ne.s32.totalorder %s453, %s454
      %p465 = scmp.eq.s32.totalorder %s41, 0
      %p466 = por %p464, %p465
      %p467 = scmp.ne.s32.totalorder %s453, %s454
      %p468 = scmp.eq.s32.totalorder %s42, 2
      %p469 = por %p467, %p468
      %p471 = scmp.ne.s32.totalorder %s454, %s470
      %p472 = scmp.eq.s32.totalorder %s42, 0
      %p473 = por %p471, %p472
      %p474 = scmp.le.s32.totalorder 1, %s36
      %p475 = scmp.lt.s32.totalorder %s36, 4
      %p476 = pnand %p474, %p475
      %p477 = pneg %p476
      // Predicated region
      $region9: #{tpu_custom_call.1} parent=5 // pred_check
        _
      $region10: #{tpu_custom_call.1} parent=5 // pred_check_branch
        %479 = sbr.rel (%p476) target = $region12
      $region11: #{tpu_custom_call.1} parent=5 // pred_region
        %s480 = ssub.s32 %s36, 1
        // Predicated region
        $region13: #{tpu_custom_call.1} parent=11 // pred_check
          %p481 = pneg %p83
        $region14: #{tpu_custom_call.1} parent=11 // pred_check_branch
          %483 = sbr.rel (%p481) target = $region16
        $region15: #{tpu_custom_call.1} parent=11 // pred_region
          %s485 = ssub.s32 8192, 8192
          %486 = vsyncadd [#allocation6], %s485
          %s487 = sshll.u32 [#allocation5], 4
          %s488 = int_to_ptr.vmem [resolvable:$true] %s487
          %493 = dma.hbm_to_vmem [thread:$0]  %s1, 8192, %s488, [#allocation6], 256, 256, 16
        $region16: #{tpu_custom_call.1} parent=11 // pred_fallthru
          _
        // Predicated region
        $region17: #{tpu_custom_call.1} parent=11 // pred_check
          %p494 = pneg %p104
        $region18: #{tpu_custom_call.1} parent=11 // pred_check_branch
          %496 = sbr.rel (%p494) target = $region20
        $region19: #{tpu_custom_call.1} parent=11 // pred_region
          %s498 = ssub.s32 64, 64
          %499 = vsyncadd [#allocation6], %s498
          %s501 = sshll.u32 [#allocation7], 4
          %s502 = int_to_ptr.vmem [resolvable:$true] %s501
          %504 = dma.hbm_to_vmem [thread:$0]  %s2, 64, %s502, [#allocation6]
        $region20: #{tpu_custom_call.1} parent=11 // pred_fallthru
          _
        // Predicated region
        $region21: #{tpu_custom_call.1} parent=11 // pred_check
          %p505 = pneg %p125
        $region22: #{tpu_custom_call.1} parent=11 // pred_check_branch
          %507 = sbr.rel (%p505) target = $region24
        $region23: #{tpu_custom_call.1} parent=11 // pred_region
          %s509 = ssub.s32 4096, 4096
          %510 = vsyncadd [#allocation9], %s509
          %s511 = sshll.u32 [#allocation8], 4
          %s512 = int_to_ptr.vmem [resolvable:$true] %s511
          %517 = dma.hbm_to_vmem [thread:$0]  %s3, 4096, %s512, [#allocation9], 64, 64, 4
        $region24: #{tpu_custom_call.1} parent=11 // pred_fallthru
          _
        // Predicated region
        $region25: #{tpu_custom_call.1} parent=11 // pred_check
          %p518 = pneg %p146
        $region26: #{tpu_custom_call.1} parent=11 // pred_check_branch
          %520 = sbr.rel (%p518) target = $region28
        $region27: #{tpu_custom_call.1} parent=11 // pred_region
          _
        $region28: #{tpu_custom_call.1} parent=11 // pred_fallthru
          _
        // Predicated region
        $region29: #{tpu_custom_call.1} parent=11 // pred_check
          %p521 = pneg %p167
        $region30: #{tpu_custom_call.1} parent=11 // pred_check_branch
          %523 = sbr.rel (%p521) target = $region32
        $region31: #{tpu_custom_call.1} parent=11 // pred_region
          %s525 = ssub.s32 1024, 1024
          %526 = vsyncadd [#allocation9], %s525
          %s527 = sshll.u32 [#allocation10], 4
          %s528 = int_to_ptr.vmem [resolvable:$true] %s527
          %533 = dma.hbm_to_vmem [thread:$0]  %s5, 1024, %s528, [#allocation9], 64, 64, 4
        $region32: #{tpu_custom_call.1} parent=11 // pred_fallthru
          _
        // Predicated region
        $region33: #{tpu_custom_call.1} parent=11 // pred_check
          %p534 = pneg %p188
        $region34: #{tpu_custom_call.1} parent=11 // pred_check_branch
          %536 = sbr.rel (%p534) target = $region36
        $region35: #{tpu_custom_call.1} parent=11 // pred_region
          _
        $region36: #{tpu_custom_call.1} parent=11 // pred_fallthru
          _
        // Predicated region
        $region37: #{tpu_custom_call.1} parent=11 // pred_check
          %p537 = pneg %p209
        $region38: #{tpu_custom_call.1} parent=11 // pred_check_branch
          %539 = sbr.rel (%p537) target = $region40
        $region39: #{tpu_custom_call.1} parent=11 // pred_region
          %s541 = ssub.s32 1024, 1024
          %542 = vsyncadd [#allocation12], %s541
          %s543 = sshll.u32 [#allocation11], 4
          %s544 = int_to_ptr.vmem [resolvable:$true] %s543
          %549 = dma.hbm_to_vmem [thread:$0]  %s7, 1024, %s544, [#allocation12], 64, 64, 4
        $region40: #{tpu_custom_call.1} parent=11 // pred_fallthru
          _
        // Predicated region
        $region41: #{tpu_custom_call.1} parent=11 // pred_check
          %p550 = pneg %p230
        $region42: #{tpu_custom_call.1} parent=11 // pred_check_branch
          %552 = sbr.rel (%p550) target = $region44
        $region43: #{tpu_custom_call.1} parent=11 // pred_region
          _
        $region44: #{tpu_custom_call.1} parent=11 // pred_fallthru
          _
        // Predicated region
        $region45: #{tpu_custom_call.1} parent=11 // pred_check
          %p553 = pneg %p251
        $region46: #{tpu_custom_call.1} parent=11 // pred_check_branch
          %555 = sbr.rel (%p553) target = $region48
        $region47: #{tpu_custom_call.1} parent=11 // pred_region
          %s557 = ssub.s32 1024, 1024
          %558 = vsyncadd [#allocation12], %s557
          %s559 = sshll.u32 [#allocation13], 4
          %s560 = int_to_ptr.vmem [resolvable:$true] %s559
          %565 = dma.hbm_to_vmem [thread:$0]  %s9, 1024, %s560, [#allocation12], 64, 64, 4
        $region48: #{tpu_custom_call.1} parent=11 // pred_fallthru
          _
        // Predicated region
        $region49: #{tpu_custom_call.1} parent=11 // pred_check
          %p566 = pneg %p272
        $region50: #{tpu_custom_call.1} parent=11 // pred_check_branch
          %568 = sbr.rel (%p566) target = $region52
        $region51: #{tpu_custom_call.1} parent=11 // pred_region
          _
        $region52: #{tpu_custom_call.1} parent=11 // pred_fallthru
          _
        // Predicated region
        $region53: #{tpu_custom_call.1} parent=11 // pred_check
          %p569 = pneg %p293
        $region54: #{tpu_custom_call.1} parent=11 // pred_check_branch
          %571 = sbr.rel (%p569) target = $region56
        $region55: #{tpu_custom_call.1} parent=11 // pred_region
          %s573 = ssub.s32 1024, 1024
          %574 = vsyncadd [#allocation15], %s573
          %s575 = sshll.u32 [#allocation14], 4
          %s576 = int_to_ptr.vmem [resolvable:$true] %s575
          %581 = dma.hbm_to_vmem [thread:$0]  %s11, 1024, %s576, [#allocation15], 64, 64, 4
        $region56: #{tpu_custom_call.1} parent=11 // pred_fallthru
          _
        // Predicated region
        $region57: #{tpu_custom_call.1} parent=11 // pred_check
          %p582 = pneg %p314
        $region58: #{tpu_custom_call.1} parent=11 // pred_check_branch
          %584 = sbr.rel (%p582) target = $region60
        $region59: #{tpu_custom_call.1} parent=11 // pred_region
          _
        $region60: #{tpu_custom_call.1} parent=11 // pred_fallthru
          _
        // Predicated region
        $region61: #{tpu_custom_call.1} parent=11 // pred_check
          %p585 = pneg %p335
        $region62: #{tpu_custom_call.1} parent=11 // pred_check_branch
          %587 = sbr.rel (%p585) target = $region64
        $region63: #{tpu_custom_call.1} parent=11 // pred_region
          %s589 = ssub.s32 1024, 1024
          %590 = vsyncadd [#allocation15], %s589
          %s591 = sshll.u32 [#allocation16], 4
          %s592 = int_to_ptr.vmem [resolvable:$true] %s591
          %597 = dma.hbm_to_vmem [thread:$0]  %s13, 1024, %s592, [#allocation15], 64, 64, 4
        $region64: #{tpu_custom_call.1} parent=11 // pred_fallthru
          _
        // Predicated region
        $region65: #{tpu_custom_call.1} parent=11 // pred_check
          %p598 = pneg %p356
        $region66: #{tpu_custom_call.1} parent=11 // pred_check_branch
          %600 = sbr.rel (%p598) target = $region68
        $region67: #{tpu_custom_call.1} parent=11 // pred_region
          _
        $region68: #{tpu_custom_call.1} parent=11 // pred_fallthru
          _
        // Predicated region
        $region69: #{tpu_custom_call.1} parent=11 // pred_check
          %p601 = pneg %p377
        $region70: #{tpu_custom_call.1} parent=11 // pred_check_branch
          %603 = sbr.rel (%p601) target = $region72
        $region71: #{tpu_custom_call.1} parent=11 // pred_region
          %s605 = ssub.s32 4096, 4096
          %606 = vsyncadd [#allocation18], %s605
          %s607 = sshll.u32 [#allocation17], 4
          %s608 = int_to_ptr.vmem [resolvable:$true] %s607
          %613 = dma.hbm_to_vmem [thread:$0]  %s15, 4096, %s608, [#allocation18], 256, 256, 16
        $region72: #{tpu_custom_call.1} parent=11 // pred_fallthru
          _
        // Predicated region
        $region73: #{tpu_custom_call.1} parent=11 // pred_check
          %p614 = pneg %p398
        $region74: #{tpu_custom_call.1} parent=11 // pred_check_branch
          %616 = sbr.rel (%p614) target = $region76
        $region75: #{tpu_custom_call.1} parent=11 // pred_region
          _
        $region76: #{tpu_custom_call.1} parent=11 // pred_fallthru
          _
        // Predicated region
        $region77: #{tpu_custom_call.1} parent=11 // pred_check
          %p617 = pneg %p419
        $region78: #{tpu_custom_call.1} parent=11 // pred_check_branch
          %619 = sbr.rel (%p617) target = $region80
        $region79: #{tpu_custom_call.1} parent=11 // pred_region
          %s621 = ssub.s32 8192, 8192
          %622 = vsyncadd [#allocation18], %s621
          %s623 = sshll.u32 [#allocation19], 4
          %s624 = int_to_ptr.vmem [resolvable:$true] %s623
          %629 = dma.hbm_to_vmem [thread:$0]  %s17, 8192, %s624, [#allocation18], 128, 128, 8
        $region80: #{tpu_custom_call.1} parent=11 // pred_fallthru
          _
        // Predicated region
        $region81: #{tpu_custom_call.1} parent=11 // pred_check
          %p630 = pneg %p440
        $region82: #{tpu_custom_call.1} parent=11 // pred_check_branch
          %632 = sbr.rel (%p630) target = $region84
        $region83: #{tpu_custom_call.1} parent=11 // pred_region
          _
        $region84: #{tpu_custom_call.1} parent=11 // pred_fallthru
          _
      $region12: #{tpu_custom_call.1} parent=5 // pred_fallthru
        _
      %p633 = scmp.lt.s32.totalorder %s36, 3
      // Predicated region
      $region85: #{tpu_custom_call.1} parent=5 // pred_check
        %p634 = pneg %p633
      $region86: #{tpu_custom_call.1} parent=5 // pred_check_branch
        %636 = sbr.rel (%p634) target = $region88
      $region87: #{tpu_custom_call.1} parent=5 // pred_region
        // Predicated region
        $region89: #{tpu_custom_call.1} parent=87 // pred_check
          %p637 = pneg %p56
        $region90: #{tpu_custom_call.1} parent=87 // pred_check_branch
          %639 = sbr.rel (%p637) target = $region92
        $region91: #{tpu_custom_call.1} parent=87 // pred_region
          %s640 = sand.u32 %s46, 1
          %s641 = scalar_lea.sflag [#allocation3], %s640
          %s642 = sand.u32 %s46, 1
          %s643 = smul.addr %s642, 128
          %s644 = scalar_lea.vmem [#allocation2], %s643
          %s645 = smul.u32 16, %s36
          %s647 = ssub.s32 2048, 2048
          %648 = vsyncadd %s641, %s647
          %s649 = smul.addr %s645, 2
          %s650 = smul.addr %s649, 64
          %s651 = scalar_lea.hbm %s0, %s650
          %s652 = sshll.u32 %s644, 4
          %s653 = int_to_ptr.vmem [resolvable:$true] %s652
          %658 = dma.hbm_to_vmem [thread:$0]  %s651, 2048, %s653, %s641, 128, 128, 8
        $region92: #{tpu_custom_call.1} parent=87 // pred_fallthru
          _
      $region88: #{tpu_custom_call.1} parent=5 // pred_fallthru
        _
      %p659 = scmp.le.s32.totalorder 1, %s36
      %p660 = scmp.lt.s32.totalorder %s36, 4
      %p661 = pnand %p659, %p660
      %p662 = pneg %p661
      // Predicated region
      $region93: #{tpu_custom_call.1} parent=5 // pred_check
        _
      $region94: #{tpu_custom_call.1} parent=5 // pred_check_branch
        %664 = sbr.rel (%p661) target = $region96
      $region95: #{tpu_custom_call.1} parent=5 // pred_region
        %s665 = ssub.s32 %s36, 1
        %s666 = sand.u32 %s49, 1
        %s667 = scalar_lea.sflag [#allocation3], %s666
        %s668 = sand.u32 %s49, 1
        %s669 = smul.addr %s668, 128
        %s670 = scalar_lea.vmem [#allocation2], %s669
        // Predicated region
        $region97: #{tpu_custom_call.1} parent=95 // pred_check
          %p671 = pneg %p62
        $region98: #{tpu_custom_call.1} parent=95 // pred_check_branch
          %673 = sbr.rel (%p671) target = $region100
        $region99: #{tpu_custom_call.1} parent=95 // pred_region
          %674 = dma.done %s667, 2048
        $region100: #{tpu_custom_call.1} parent=95 // pred_fallthru
          _
        // Predicated region
        $region101: #{tpu_custom_call.1} parent=95 // pred_check
          %p675 = pneg %p83
        $region102: #{tpu_custom_call.1} parent=95 // pred_check_branch
          %677 = sbr.rel (%p675) target = $region104
        $region103: #{tpu_custom_call.1} parent=95 // pred_region
          %678 = dma.done [#allocation6], 8192
        $region104: #{tpu_custom_call.1} parent=95 // pred_fallthru
          _
        // Predicated region
        $region105: #{tpu_custom_call.1} parent=95 // pred_check
          %p679 = pneg %p104
        $region106: #{tpu_custom_call.1} parent=95 // pred_check_branch
          %681 = sbr.rel (%p679) target = $region108
        $region107: #{tpu_custom_call.1} parent=95 // pred_region
          %682 = dma.done [#allocation6], 64
        $region108: #{tpu_custom_call.1} parent=95 // pred_fallthru
          _
        // Predicated region
        $region109: #{tpu_custom_call.1} parent=95 // pred_check
          %p683 = pneg %p125
        $region110: #{tpu_custom_call.1} parent=95 // pred_check_branch
          %685 = sbr.rel (%p683) target = $region112
        $region111: #{tpu_custom_call.1} parent=95 // pred_region
          %686 = dma.done [#allocation9], 4096
        $region112: #{tpu_custom_call.1} parent=95 // pred_fallthru
          _
        // Predicated region
        $region113: #{tpu_custom_call.1} parent=95 // pred_check
          %p687 = pneg %p167
        $region114: #{tpu_custom_call.1} parent=95 // pred_check_branch
          %689 = sbr.rel (%p687) target = $region116
        $region115: #{tpu_custom_call.1} parent=95 // pred_region
          %690 = dma.done [#allocation9], 1024
        $region116: #{tpu_custom_call.1} parent=95 // pred_fallthru
          _
        // Predicated region
        $region117: #{tpu_custom_call.1} parent=95 // pred_check
          %p691 = pneg %p209
        $region118: #{tpu_custom_call.1} parent=95 // pred_check_branch
          %693 = sbr.rel (%p691) target = $region120
        $region119: #{tpu_custom_call.1} parent=95 // pred_region
          %694 = dma.done [#allocation12], 1024
        $region120: #{tpu_custom_call.1} parent=95 // pred_fallthru
          _
        // Predicated region
        $region121: #{tpu_custom_call.1} parent=95 // pred_check
          %p695 = pneg %p251
        $region122: #{tpu_custom_call.1} parent=95 // pred_check_branch
          %697 = sbr.rel (%p695) target = $region124
        $region123: #{tpu_custom_call.1} parent=95 // pred_region
          %698 = dma.done [#allocation12], 1024
        $region124: #{tpu_custom_call.1} parent=95 // pred_fallthru
          _
        // Predicated region
        $region125: #{tpu_custom_call.1} parent=95 // pred_check
          %p699 = pneg %p293
        $region126: #{tpu_custom_call.1} parent=95 // pred_check_branch
          %701 = sbr.rel (%p699) target = $region128
        $region127: #{tpu_custom_call.1} parent=95 // pred_region
          %702 = dma.done [#allocation15], 1024
        $region128: #{tpu_custom_call.1} parent=95 // pred_fallthru
          _
        // Predicated region
        $region129: #{tpu_custom_call.1} parent=95 // pred_check
          %p703 = pneg %p335
        $region130: #{tpu_custom_call.1} parent=95 // pred_check_branch
          %705 = sbr.rel (%p703) target = $region132
        $region131: #{tpu_custom_call.1} parent=95 // pred_region
          %706 = dma.done [#allocation15], 1024
        $region132: #{tpu_custom_call.1} parent=95 // pred_fallthru
          _
        // Predicated region
        $region133: #{tpu_custom_call.1} parent=95 // pred_check
          %p707 = pneg %p377
        $region134: #{tpu_custom_call.1} parent=95 // pred_check_branch
          %709 = sbr.rel (%p707) target = $region136
        $region135: #{tpu_custom_call.1} parent=95 // pred_region
          %710 = dma.done [#allocation18], 4096
        $region136: #{tpu_custom_call.1} parent=95 // pred_fallthru
          _
        // Predicated region
        $region137: #{tpu_custom_call.1} parent=95 // pred_check
          %p711 = pneg %p419
        $region138: #{tpu_custom_call.1} parent=95 // pred_check_branch
          %713 = sbr.rel (%p711) target = $region140
        $region139: #{tpu_custom_call.1} parent=95 // pred_region
          %714 = dma.done [#allocation18], 8192
        $region140: #{tpu_custom_call.1} parent=95 // pred_fallthru
          _
        %s715 = sand.u32 %s49, 1
        %s716 = scalar_lea.sflag [#allocation3], %s715
        %s717 = sand.u32 %s49, 1
        %s718 = smul.addr %s717, 128
        %s719 = scalar_lea.vmem [#allocation2], %s718
        %p720 = pneg %p62
        %p721 = pneg %p59
        %p722 = pneg %p83
        %p723 = pneg %p80
        %p724 = pneg %p104
        %p725 = pneg %p101
        %p726 = pneg %p125
        %p727 = pneg %p122
        %p728 = pneg %p146
        %p729 = pneg %p143
        %p730 = pneg %p167
        %p731 = pneg %p164
        %p732 = pneg %p188
        %p733 = pneg %p185
        %p734 = pneg %p209
        %p735 = pneg %p206
        %p736 = pneg %p230
        %p737 = pneg %p227
        %p738 = pneg %p251
        %p739 = pneg %p248
        %p740 = pneg %p272
        %p741 = pneg %p269
        %p742 = pneg %p293
        %p743 = pneg %p290
        %p744 = pneg %p314
        %p745 = pneg %p311
        %p746 = pneg %p335
        %p747 = pneg %p332
        %p748 = pneg %p356
        %p749 = pneg %p353
        %p750 = pneg %p377
        %p751 = pneg %p374
        %p752 = pneg %p398
        %p753 = pneg %p395
        %p754 = pneg %p419
        %p755 = pneg %p416
        %p756 = pneg %p440
        %p757 = pneg %p437
        %p758 = pneg %p466
        %p759 = pneg %p463
        %s760 = sand.u32 %s453, 1
        %s761 = scalar_lea.sflag [#allocation4], %s760
        %s762 = sand.u32 %s453, 1
        %s763 = smul.addr %s762, 256
        %s764 = scalar_lea.vmem [#allocation20], %s763
        %s765 = smul.u32 16, %s41
        %s766 = smul.u32 16, %s41
        %v768 = vld [vmem:[%s670] sm:$0xff]
        %v769 = vld [vmem:[%s670 + $0x8] sm:$0xff]
        %v770 = vld [vmem:[%s670 + $0x10] sm:$0xff]
        %v771 = vld [vmem:[%s670 + $0x18] sm:$0xff]
        %v772 = vld [vmem:[%s670 + $0x20] sm:$0xff]
        %v773 = vld [vmem:[%s670 + $0x28] sm:$0xff]
        %v774 = vld [vmem:[%s670 + $0x30] sm:$0xff]
        %v775 = vld [vmem:[%s670 + $0x38] sm:$0xff]
        %v776 = vld [vmem:[%s670 + $0x40] sm:$0xff]
        %v777 = vld [vmem:[%s670 + $0x48] sm:$0xff]
        %v778 = vld [vmem:[%s670 + $0x50] sm:$0xff]
        %v779 = vld [vmem:[%s670 + $0x58] sm:$0xff]
        %v780 = vld [vmem:[%s670 + $0x60] sm:$0xff]
        %v781 = vld [vmem:[%s670 + $0x68] sm:$0xff]
        %v782 = vld [vmem:[%s670 + $0x70] sm:$0xff]
        %v783 = vld [vmem:[%s670 + $0x78] sm:$0xff]
        %v784 = vld [vmem:[#allocation5] sm:$0xff]
        %v785 = vld [vmem:[#allocation5 + $0x8] sm:$0xff]
        %v786 = vld [vmem:[#allocation5 + $0x10] sm:$0xff]
        %v787 = vld [vmem:[#allocation5 + $0x18] sm:$0xff]
        %v788 = vld [vmem:[#allocation5 + $0x20] sm:$0xff]
        %v789 = vld [vmem:[#allocation5 + $0x28] sm:$0xff]
        %v790 = vld [vmem:[#allocation5 + $0x30] sm:$0xff]
        %v791 = vld [vmem:[#allocation5 + $0x38] sm:$0xff]
        %v792 = vld [vmem:[#allocation5 + $0x40] sm:$0xff]
        %v793 = vld [vmem:[#allocation5 + $0x48] sm:$0xff]
        %v794 = vld [vmem:[#allocation5 + $0x50] sm:$0xff]
        %v795 = vld [vmem:[#allocation5 + $0x58] sm:$0xff]
        %v796 = vld [vmem:[#allocation5 + $0x60] sm:$0xff]
        %v797 = vld [vmem:[#allocation5 + $0x68] sm:$0xff]
        %v798 = vld [vmem:[#allocation5 + $0x70] sm:$0xff]
        %v799 = vld [vmem:[#allocation5 + $0x78] sm:$0xff]
        %v800 = vld [vmem:[#allocation5 + $0x80] sm:$0xff]
        %v801 = vld [vmem:[#allocation5 + $0x88] sm:$0xff]
        %v802 = vld [vmem:[#allocation5 + $0x90] sm:$0xff]
        %v803 = vld [vmem:[#allocation5 + $0x98] sm:$0xff]
        %v804 = vld [vmem:[#allocation5 + $0xa0] sm:$0xff]
        %v805 = vld [vmem:[#allocation5 + $0xa8] sm:$0xff]
        %v806 = vld [vmem:[#allocation5 + $0xb0] sm:$0xff]
        %v807 = vld [vmem:[#allocation5 + $0xb8] sm:$0xff]
        %v808 = vld [vmem:[#allocation5 + $0xc0] sm:$0xff]
        %v809 = vld [vmem:[#allocation5 + $0xc8] sm:$0xff]
        %v810 = vld [vmem:[#allocation5 + $0xd0] sm:$0xff]
        %v811 = vld [vmem:[#allocation5 + $0xd8] sm:$0xff]
        %v812 = vld [vmem:[#allocation5 + $0xe0] sm:$0xff]
        %v813 = vld [vmem:[#allocation5 + $0xe8] sm:$0xff]
        %v814 = vld [vmem:[#allocation5 + $0xf0] sm:$0xff]
        %v815 = vld [vmem:[#allocation5 + $0xf8] sm:$0xff]
        %v816 = vld [vmem:[#allocation5 + $0x100] sm:$0xff]
        %v817 = vld [vmem:[#allocation5 + $0x108] sm:$0xff]
        %v818 = vld [vmem:[#allocation5 + $0x110] sm:$0xff]
        %v819 = vld [vmem:[#allocation5 + $0x118] sm:$0xff]
        %v820 = vld [vmem:[#allocation5 + $0x120] sm:$0xff]
        %v821 = vld [vmem:[#allocation5 + $0x128] sm:$0xff]
        %v822 = vld [vmem:[#allocation5 + $0x130] sm:$0xff]
        %v823 = vld [vmem:[#allocation5 + $0x138] sm:$0xff]
        %v824 = vld [vmem:[#allocation5 + $0x140] sm:$0xff]
        %v825 = vld [vmem:[#allocation5 + $0x148] sm:$0xff]
        %v826 = vld [vmem:[#allocation5 + $0x150] sm:$0xff]
        %v827 = vld [vmem:[#allocation5 + $0x158] sm:$0xff]
        %v828 = vld [vmem:[#allocation5 + $0x160] sm:$0xff]
        %v829 = vld [vmem:[#allocation5 + $0x168] sm:$0xff]
        %v830 = vld [vmem:[#allocation5 + $0x170] sm:$0xff]
        %v831 = vld [vmem:[#allocation5 + $0x178] sm:$0xff]
        %v832 = vld [vmem:[#allocation5 + $0x180] sm:$0xff]
        %v833 = vld [vmem:[#allocation5 + $0x188] sm:$0xff]
        %v834 = vld [vmem:[#allocation5 + $0x190] sm:$0xff]
        %v835 = vld [vmem:[#allocation5 + $0x198] sm:$0xff]
        %v836 = vld [vmem:[#allocation5 + $0x1a0] sm:$0xff]
        %v837 = vld [vmem:[#allocation5 + $0x1a8] sm:$0xff]
        %v838 = vld [vmem:[#allocation5 + $0x1b0] sm:$0xff]
        %v839 = vld [vmem:[#allocation5 + $0x1b8] sm:$0xff]
        %v840 = vld [vmem:[#allocation5 + $0x1c0] sm:$0xff]
        %v841 = vld [vmem:[#allocation5 + $0x1c8] sm:$0xff]
        %v842 = vld [vmem:[#allocation5 + $0x1d0] sm:$0xff]
        %v843 = vld [vmem:[#allocation5 + $0x1d8] sm:$0xff]
        %v844 = vld [vmem:[#allocation5 + $0x1e0] sm:$0xff]
        %v845 = vld [vmem:[#allocation5 + $0x1e8] sm:$0xff]
        %v846 = vld [vmem:[#allocation5 + $0x1f0] sm:$0xff]
        %v847 = vld [vmem:[#allocation5 + $0x1f8] sm:$0xff]
        %v848 = vld [vmem:[#allocation7] sm:$0xf]
        %v850 = vlaneseq
        %v851 = vshrl.u32 %v850, 7
        %v852 = vsub.s32 0, %v851
        %v853 = vrot.slane %v848, %v852
        %v854 = vlaneseq
        %v855 = vshrl.u32 %v854, 7
        %v856 = vsub.s32 1, %v855
        %v857 = vrot.slane %v848, %v856
        %v858 = vlaneseq
        %v859 = vshrl.u32 %v858, 7
        %v860 = vsub.s32 2, %v859
        %v861 = vrot.slane %v848, %v860
        %v862 = vlaneseq
        %v863 = vshrl.u32 %v862, 7
        %v864 = vsub.s32 3, %v863
        %v865 = vrot.slane %v848, %v864
        %v886 = vunpack.c.l.b16 %v768
        %v887 = vunpack.c.h.b16 %v768
        %v888 = vunpack.c.l.b16 %v769
        %v889 = vunpack.c.h.b16 %v769
        %v890 = vunpack.c.l.b16 %v770
        %v891 = vunpack.c.h.b16 %v770
        %v892 = vunpack.c.l.b16 %v771
        %v893 = vunpack.c.h.b16 %v771
        %v894 = vunpack.c.l.b16 %v772
        %v895 = vunpack.c.h.b16 %v772
        %v896 = vunpack.c.l.b16 %v773
        %v897 = vunpack.c.h.b16 %v773
        %v898 = vunpack.c.l.b16 %v774
        %v899 = vunpack.c.h.b16 %v774
        %v900 = vunpack.c.l.b16 %v775
        %v901 = vunpack.c.h.b16 %v775
        %v902 = vunpack.c.l.b16 %v776
        %v903 = vunpack.c.h.b16 %v776
        %v904 = vunpack.c.l.b16 %v777
        %v905 = vunpack.c.h.b16 %v777
        %v906 = vunpack.c.l.b16 %v778
        %v907 = vunpack.c.h.b16 %v778
        %v908 = vunpack.c.l.b16 %v779
        %v909 = vunpack.c.h.b16 %v779
        %v910 = vunpack.c.l.b16 %v780
        %v911 = vunpack.c.h.b16 %v780
        %v912 = vunpack.c.l.b16 %v781
        %v913 = vunpack.c.h.b16 %v781
        %v914 = vunpack.c.l.b16 %v782
        %v915 = vunpack.c.h.b16 %v782
        %v916 = vunpack.c.l.b16 %v783
        %v917 = vunpack.c.h.b16 %v783
        %v918 = vpack.c.b16 %v888, %v886
        %v919 = vpack.c.b16 %v889, %v887
        %v920 = vpack.c.b16 %v892, %v890
        %v921 = vpack.c.b16 %v893, %v891
        %v922 = vpack.c.b16 %v896, %v894
        %v923 = vpack.c.b16 %v897, %v895
        %v924 = vpack.c.b16 %v900, %v898
        %v925 = vpack.c.b16 %v901, %v899
        %v926 = vpack.c.b16 %v904, %v902
        %v927 = vpack.c.b16 %v905, %v903
        %v928 = vpack.c.b16 %v908, %v906
        %v929 = vpack.c.b16 %v909, %v907
        %v930 = vpack.c.b16 %v912, %v910
        %v931 = vpack.c.b16 %v913, %v911
        %v932 = vpack.c.b16 %v916, %v914
        %v933 = vpack.c.b16 %v917, %v915
        %v1014 = vunpack.c.l.b16 %v784
        %v1015 = vunpack.c.h.b16 %v784
        %v1016 = vunpack.c.l.b16 %v785
        %v1017 = vunpack.c.h.b16 %v785
        %v1018 = vunpack.c.l.b16 %v786
        %v1019 = vunpack.c.h.b16 %v786
        %v1020 = vunpack.c.l.b16 %v787
        %v1021 = vunpack.c.h.b16 %v787
        %v1022 = vunpack.c.l.b16 %v788
        %v1023 = vunpack.c.h.b16 %v788
        %v1024 = vunpack.c.l.b16 %v789
        %v1025 = vunpack.c.h.b16 %v789
        %v1026 = vunpack.c.l.b16 %v790
        %v1027 = vunpack.c.h.b16 %v790
        %v1028 = vunpack.c.l.b16 %v791
        %v1029 = vunpack.c.h.b16 %v791
        %v1030 = vunpack.c.l.b16 %v792
        %v1031 = vunpack.c.h.b16 %v792
        %v1032 = vunpack.c.l.b16 %v793
        %v1033 = vunpack.c.h.b16 %v793
        %v1034 = vunpack.c.l.b16 %v794
        %v1035 = vunpack.c.h.b16 %v794
        %v1036 = vunpack.c.l.b16 %v795
        %v1037 = vunpack.c.h.b16 %v795
        %v1038 = vunpack.c.l.b16 %v796
        %v1039 = vunpack.c.h.b16 %v796
        %v1040 = vunpack.c.l.b16 %v797
        %v1041 = vunpack.c.h.b16 %v797
        %v1042 = vunpack.c.l.b16 %v798
        %v1043 = vunpack.c.h.b16 %v798
        %v1044 = vunpack.c.l.b16 %v799
        %v1045 = vunpack.c.h.b16 %v799
        %v1046 = vunpack.c.l.b16 %v800
        %v1047 = vunpack.c.h.b16 %v800
        %v1048 = vunpack.c.l.b16 %v801
        %v1049 = vunpack.c.h.b16 %v801
        %v1050 = vunpack.c.l.b16 %v802
        %v1051 = vunpack.c.h.b16 %v802
        %v1052 = vunpack.c.l.b16 %v803
        %v1053 = vunpack.c.h.b16 %v803
        %v1054 = vunpack.c.l.b16 %v804
        %v1055 = vunpack.c.h.b16 %v804
        %v1056 = vunpack.c.l.b16 %v805
        %v1057 = vunpack.c.h.b16 %v805
        %v1058 = vunpack.c.l.b16 %v806
        %v1059 = vunpack.c.h.b16 %v806
        %v1060 = vunpack.c.l.b16 %v807
        %v1061 = vunpack.c.h.b16 %v807
        %v1062 = vunpack.c.l.b16 %v808
        %v1063 = vunpack.c.h.b16 %v808
        %v1064 = vunpack.c.l.b16 %v809
        %v1065 = vunpack.c.h.b16 %v809
        %v1066 = vunpack.c.l.b16 %v810
        %v1067 = vunpack.c.h.b16 %v810
        %v1068 = vunpack.c.l.b16 %v811
        %v1069 = vunpack.c.h.b16 %v811
        %v1070 = vunpack.c.l.b16 %v812
        %v1071 = vunpack.c.h.b16 %v812
        %v1072 = vunpack.c.l.b16 %v813
        %v1073 = vunpack.c.h.b16 %v813
        %v1074 = vunpack.c.l.b16 %v814
        %v1075 = vunpack.c.h.b16 %v814
        %v1076 = vunpack.c.l.b16 %v815
        %v1077 = vunpack.c.h.b16 %v815
        %v1078 = vunpack.c.l.b16 %v816
        %v1079 = vunpack.c.h.b16 %v816
        %v1080 = vunpack.c.l.b16 %v817
        %v1081 = vunpack.c.h.b16 %v817
        %v1082 = vunpack.c.l.b16 %v818
        %v1083 = vunpack.c.h.b16 %v818
        %v1084 = vunpack.c.l.b16 %v819
        %v1085 = vunpack.c.h.b16 %v819
        %v1086 = vunpack.c.l.b16 %v820
        %v1087 = vunpack.c.h.b16 %v820
        %v1088 = vunpack.c.l.b16 %v821
        %v1089 = vunpack.c.h.b16 %v821
        %v1090 = vunpack.c.l.b16 %v822
        %v1091 = vunpack.c.h.b16 %v822
        %v1092 = vunpack.c.l.b16 %v823
        %v1093 = vunpack.c.h.b16 %v823
        %v1094 = vunpack.c.l.b16 %v824
        %v1095 = vunpack.c.h.b16 %v824
        %v1096 = vunpack.c.l.b16 %v825
        %v1097 = vunpack.c.h.b16 %v825
        %v1098 = vunpack.c.l.b16 %v826
        %v1099 = vunpack.c.h.b16 %v826
        %v1100 = vunpack.c.l.b16 %v827
        %v1101 = vunpack.c.h.b16 %v827
        %v1102 = vunpack.c.l.b16 %v828
        %v1103 = vunpack.c.h.b16 %v828
        %v1104 = vunpack.c.l.b16 %v829
        %v1105 = vunpack.c.h.b16 %v829
        %v1106 = vunpack.c.l.b16 %v830
        %v1107 = vunpack.c.h.b16 %v830
        %v1108 = vunpack.c.l.b16 %v831
        %v1109 = vunpack.c.h.b16 %v831
        %v1110 = vunpack.c.l.b16 %v832
        %v1111 = vunpack.c.h.b16 %v832
        %v1112 = vunpack.c.l.b16 %v833
        %v1113 = vunpack.c.h.b16 %v833
        %v1114 = vunpack.c.l.b16 %v834
        %v1115 = vunpack.c.h.b16 %v834
        %v1116 = vunpack.c.l.b16 %v835
        %v1117 = vunpack.c.h.b16 %v835
        %v1118 = vunpack.c.l.b16 %v836
        %v1119 = vunpack.c.h.b16 %v836
        %v1120 = vunpack.c.l.b16 %v837
        %v1121 = vunpack.c.h.b16 %v837
        %v1122 = vunpack.c.l.b16 %v838
        %v1123 = vunpack.c.h.b16 %v838
        %v1124 = vunpack.c.l.b16 %v839
        %v1125 = vunpack.c.h.b16 %v839
        %v1126 = vunpack.c.l.b16 %v840
        %v1127 = vunpack.c.h.b16 %v840
        %v1128 = vunpack.c.l.b16 %v841
        %v1129 = vunpack.c.h.b16 %v841
        %v1130 = vunpack.c.l.b16 %v842
        %v1131 = vunpack.c.h.b16 %v842
        %v1132 = vunpack.c.l.b16 %v843
        %v1133 = vunpack.c.h.b16 %v843
        %v1134 = vunpack.c.l.b16 %v844
        %v1135 = vunpack.c.h.b16 %v844
        %v1136 = vunpack.c.l.b16 %v845
        %v1137 = vunpack.c.h.b16 %v845
        %v1138 = vunpack.c.l.b16 %v846
        %v1139 = vunpack.c.h.b16 %v846
        %v1140 = vunpack.c.l.b16 %v847
        %v1141 = vunpack.c.h.b16 %v847
        %v1142 = vpack.c.b16 %v1018, %v1014
        %v1143 = vpack.c.b16 %v1019, %v1015
        %v1144 = vpack.c.b16 %v1020, %v1016
        %v1145 = vpack.c.b16 %v1021, %v1017
        %v1146 = vpack.c.b16 %v1026, %v1022
        %v1147 = vpack.c.b16 %v1027, %v1023
        %v1148 = vpack.c.b16 %v1028, %v1024
        %v1149 = vpack.c.b16 %v1029, %v1025
        %v1150 = vpack.c.b16 %v1034, %v1030
        %v1151 = vpack.c.b16 %v1035, %v1031
        %v1152 = vpack.c.b16 %v1036, %v1032
        %v1153 = vpack.c.b16 %v1037, %v1033
        %v1154 = vpack.c.b16 %v1042, %v1038
        %v1155 = vpack.c.b16 %v1043, %v1039
        %v1156 = vpack.c.b16 %v1044, %v1040
        %v1157 = vpack.c.b16 %v1045, %v1041
        %v1158 = vpack.c.b16 %v1050, %v1046
        %v1159 = vpack.c.b16 %v1051, %v1047
        %v1160 = vpack.c.b16 %v1052, %v1048
        %v1161 = vpack.c.b16 %v1053, %v1049
        %v1162 = vpack.c.b16 %v1058, %v1054
        %v1163 = vpack.c.b16 %v1059, %v1055
        %v1164 = vpack.c.b16 %v1060, %v1056
        %v1165 = vpack.c.b16 %v1061, %v1057
        %v1166 = vpack.c.b16 %v1066, %v1062
        %v1167 = vpack.c.b16 %v1067, %v1063
        %v1168 = vpack.c.b16 %v1068, %v1064
        %v1169 = vpack.c.b16 %v1069, %v1065
        %v1170 = vpack.c.b16 %v1074, %v1070
        %v1171 = vpack.c.b16 %v1075, %v1071
        %v1172 = vpack.c.b16 %v1076, %v1072
        %v1173 = vpack.c.b16 %v1077, %v1073
        %v1174 = vpack.c.b16 %v1082, %v1078
        %v1175 = vpack.c.b16 %v1083, %v1079
        %v1176 = vpack.c.b16 %v1084, %v1080
        %v1177 = vpack.c.b16 %v1085, %v1081
        %v1178 = vpack.c.b16 %v1090, %v1086
        %v1179 = vpack.c.b16 %v1091, %v1087
        %v1180 = vpack.c.b16 %v1092, %v1088
        %v1181 = vpack.c.b16 %v1093, %v1089
        %v1182 = vpack.c.b16 %v1098, %v1094
        %v1183 = vpack.c.b16 %v1099, %v1095
        %v1184 = vpack.c.b16 %v1100, %v1096
        %v1185 = vpack.c.b16 %v1101, %v1097
        %v1186 = vpack.c.b16 %v1106, %v1102
        %v1187 = vpack.c.b16 %v1107, %v1103
        %v1188 = vpack.c.b16 %v1108, %v1104
        %v1189 = vpack.c.b16 %v1109, %v1105
        %v1190 = vpack.c.b16 %v1114, %v1110
        %v1191 = vpack.c.b16 %v1115, %v1111
        %v1192 = vpack.c.b16 %v1116, %v1112
        %v1193 = vpack.c.b16 %v1117, %v1113
        %v1194 = vpack.c.b16 %v1122, %v1118
        %v1195 = vpack.c.b16 %v1123, %v1119
        %v1196 = vpack.c.b16 %v1124, %v1120
        %v1197 = vpack.c.b16 %v1125, %v1121
        %v1198 = vpack.c.b16 %v1130, %v1126
        %v1199 = vpack.c.b16 %v1131, %v1127
        %v1200 = vpack.c.b16 %v1132, %v1128
        %v1201 = vpack.c.b16 %v1133, %v1129
        %v1202 = vpack.c.b16 %v1138, %v1134
        %v1203 = vpack.c.b16 %v1139, %v1135
        %v1204 = vpack.c.b16 %v1140, %v1136
        %v1205 = vpack.c.b16 %v1141, %v1137
        %1270 = vmatprep.subr.bf16.mxu0 %v1171
        %1271 = vmatpush1.bf16.msra.mxu0 %v1170
        %1272 = vmatprep.subr.bf16.mxu0 %v1167
        %1273 = vmatpush1.bf16.msra.mxu0 %v1166
        %1274 = vmatprep.subr.bf16.mxu0 %v1163
        %1275 = vmatpush1.bf16.msra.mxu0 %v1162
        %1276 = vmatprep.subr.bf16.mxu0 %v1159
        %1277 = vmatpush1.bf16.msra.mxu0 %v1158
        %1278 = vmatprep.subr.bf16.mxu0 %v1155
        %1279 = vmatpush1.bf16.msra.mxu0 %v1154
        %1280 = vmatprep.subr.bf16.mxu0 %v1151
        %1281 = vmatpush1.bf16.msra.mxu0 %v1150
        %1282 = vmatprep.subr.bf16.mxu0 %v1147
        %1283 = vmatpush1.bf16.msra.mxu0 %v1146
        %1284 = vmatprep.subr.bf16.mxu0 %v1143
        %1285 = vmatpush1.bf16.msra.mxu0 %v1142
        %1286 = vmatprep.subr.bf16.mxu0 %v1203
        %1287 = vmatpush2.bf16.msra.mxu0 %v1202
        %1288 = vmatprep.subr.bf16.mxu0 %v1199
        %1289 = vmatpush2.bf16.msra.mxu0 %v1198
        %1290 = vmatprep.subr.bf16.mxu0 %v1195
        %1291 = vmatpush2.bf16.msra.mxu0 %v1194
        %1292 = vmatprep.subr.bf16.mxu0 %v1191
        %1293 = vmatpush2.bf16.msra.mxu0 %v1190
        %1294 = vmatprep.subr.bf16.mxu0 %v1187
        %1295 = vmatpush2.bf16.msra.mxu0 %v1186
        %1296 = vmatprep.subr.bf16.mxu0 %v1183
        %1297 = vmatpush2.bf16.msra.mxu0 %v1182
        %1298 = vmatprep.subr.bf16.mxu0 %v1179
        %1299 = vmatpush2.bf16.msra.mxu0 %v1178
        %1300 = vmatprep.subr.bf16.mxu0 %v1175
        %1301 = vmatpush2.bf16.msra.mxu0 %v1174
        %1302 = vmatprep.mubr.bf16.mxu0 %v919
        %1303 = vmatmul.mubr.bf16.gmra.mxu0 %v918
        %v1304 = vpop.f32.mrf.mxu0
        %v1305 = vadd.f32 %v853, %v1304
        %v1306 = vpop.f32.mrf.mxu0
        %v1307 = vadd.f32 %v857, %v1306
        %v1308 = vpop.f32.mrf.mxu0
        %v1309 = vadd.f32 %v853, %v1308
        %v1310 = vpop.f32.mrf.mxu0
        %v1311 = vadd.f32 %v857, %v1310
        %1312 = vmatprep.mubr.bf16.mxu0 %v921
        %1313 = vmatmul.mubr.bf16.gmra.mxu0 %v920
        %v1314 = vpop.f32.mrf.mxu0
        %v1315 = vadd.f32 %v853, %v1314
        %v1316 = vpop.f32.mrf.mxu0
        %v1317 = vadd.f32 %v857, %v1316
        %v1318 = vpop.f32.mrf.mxu0
        %v1319 = vadd.f32 %v853, %v1318
        %v1320 = vpop.f32.mrf.mxu0
        %v1321 = vadd.f32 %v857, %v1320
        %1322 = vmatprep.mubr.bf16.mxu0 %v923
        %1323 = vmatmul.mubr.bf16.gmra.mxu0 %v922
        %v1324 = vpop.f32.mrf.mxu0
        %v1325 = vadd.f32 %v853, %v1324
        %v1326 = vpop.f32.mrf.mxu0
        %v1327 = vadd.f32 %v857, %v1326
        %v1328 = vpop.f32.mrf.mxu0
        %v1329 = vadd.f32 %v853, %v1328
        %v1330 = vpop.f32.mrf.mxu0
        %v1331 = vadd.f32 %v857, %v1330
        %1332 = vmatprep.mubr.bf16.mxu0 %v925
        %1333 = vmatmul.mubr.bf16.gmra.mxu0 %v924
        %v1334 = vpop.f32.mrf.mxu0
        %v1335 = vadd.f32 %v853, %v1334
        %v1336 = vpop.f32.mrf.mxu0
        %v1337 = vadd.f32 %v857, %v1336
        %v1338 = vpop.f32.mrf.mxu0
        %v1339 = vadd.f32 %v853, %v1338
        %v1340 = vpop.f32.mrf.mxu0
        %v1341 = vadd.f32 %v857, %v1340
        %1342 = vmatprep.mubr.bf16.mxu0 %v927
        %1343 = vmatmul.mubr.bf16.gmra.mxu0 %v926
        %v1344 = vpop.f32.mrf.mxu0
        %v1345 = vadd.f32 %v853, %v1344
        %v1346 = vpop.f32.mrf.mxu0
        %v1347 = vadd.f32 %v857, %v1346
        %v1348 = vpop.f32.mrf.mxu0
        %v1349 = vadd.f32 %v853, %v1348
        %v1350 = vpop.f32.mrf.mxu0
        %v1351 = vadd.f32 %v857, %v1350
        %1352 = vmatprep.mubr.bf16.mxu0 %v929
        %1353 = vmatmul.mubr.bf16.gmra.mxu0 %v928
        %v1354 = vpop.f32.mrf.mxu0
        %v1355 = vadd.f32 %v853, %v1354
        %v1356 = vpop.f32.mrf.mxu0
        %v1357 = vadd.f32 %v857, %v1356
        %v1358 = vpop.f32.mrf.mxu0
        %v1359 = vadd.f32 %v853, %v1358
        %v1360 = vpop.f32.mrf.mxu0
        %v1361 = vadd.f32 %v857, %v1360
        %1362 = vmatprep.mubr.bf16.mxu0 %v931
        %1363 = vmatmul.mubr.bf16.gmra.mxu0 %v930
        %v1364 = vpop.f32.mrf.mxu0
        %v1365 = vadd.f32 %v853, %v1364
        %v1366 = vpop.f32.mrf.mxu0
        %v1367 = vadd.f32 %v857, %v1366
        %v1368 = vpop.f32.mrf.mxu0
        %v1369 = vadd.f32 %v853, %v1368
        %v1370 = vpop.f32.mrf.mxu0
        %v1371 = vadd.f32 %v857, %v1370
        %1372 = vmatprep.mubr.bf16.mxu0 %v933
        %1373 = vmatmul.mubr.bf16.gmra.mxu0 %v932
        %v1374 = vpop.f32.mrf.mxu0
        %v1375 = vadd.f32 %v853, %v1374
        %v1376 = vpop.f32.mrf.mxu0
        %v1377 = vadd.f32 %v857, %v1376
        %v1378 = vpop.f32.mrf.mxu0
        %v1379 = vadd.f32 %v853, %v1378
        %v1380 = vpop.f32.mrf.mxu0
        %v1381 = vadd.f32 %v857, %v1380
        %1382 = vdwg.mxu0
        %1383 = vmatprep.subr.bf16.mxu0 %v1173
        %1384 = vmatpush1.bf16.msra.mxu0 %v1172
        %1385 = vmatprep.subr.bf16.mxu0 %v1169
        %1386 = vmatpush1.bf16.msra.mxu0 %v1168
        %1387 = vmatprep.subr.bf16.mxu0 %v1165
        %1388 = vmatpush1.bf16.msra.mxu0 %v1164
        %1389 = vmatprep.subr.bf16.mxu0 %v1161
        %1390 = vmatpush1.bf16.msra.mxu0 %v1160
        %1391 = vmatprep.subr.bf16.mxu0 %v1157
        %1392 = vmatpush1.bf16.msra.mxu0 %v1156
        %1393 = vmatprep.subr.bf16.mxu0 %v1153
        %1394 = vmatpush1.bf16.msra.mxu0 %v1152
        %1395 = vmatprep.subr.bf16.mxu0 %v1149
        %1396 = vmatpush1.bf16.msra.mxu0 %v1148
        %1397 = vmatprep.subr.bf16.mxu0 %v1145
        %1398 = vmatpush1.bf16.msra.mxu0 %v1144
        %1399 = vmatprep.subr.bf16.mxu0 %v1205
        %1400 = vmatpush2.bf16.msra.mxu0 %v1204
        %1401 = vmatprep.subr.bf16.mxu0 %v1201
        %1402 = vmatpush2.bf16.msra.mxu0 %v1200
        %1403 = vmatprep.subr.bf16.mxu0 %v1197
        %1404 = vmatpush2.bf16.msra.mxu0 %v1196
        %1405 = vmatprep.subr.bf16.mxu0 %v1193
        %1406 = vmatpush2.bf16.msra.mxu0 %v1192
        %1407 = vmatprep.subr.bf16.mxu0 %v1189
        %1408 = vmatpush2.bf16.msra.mxu0 %v1188
        %1409 = vmatprep.subr.bf16.mxu0 %v1185
        %1410 = vmatpush2.bf16.msra.mxu0 %v1184
        %1411 = vmatprep.subr.bf16.mxu0 %v1181
        %1412 = vmatpush2.bf16.msra.mxu0 %v1180
        %1413 = vmatprep.subr.bf16.mxu0 %v1177
        %1414 = vmatpush2.bf16.msra.mxu0 %v1176
        %1415 = vmatprep.mubr.bf16.mxu0 %v919
        %1416 = vmatmul.mubr.bf16.gmra.mxu0 %v918
        %v1417 = vpop.f32.mrf.mxu0
        %v1418 = vadd.f32 %v861, %v1417
        %v1419 = vpop.f32.mrf.mxu0
        %v1420 = vadd.f32 %v865, %v1419
        %v1421 = vpop.f32.mrf.mxu0
        %v1422 = vadd.f32 %v861, %v1421
        %v1423 = vpop.f32.mrf.mxu0
        %v1424 = vadd.f32 %v865, %v1423
        %1425 = vmatprep.mubr.bf16.mxu0 %v921
        %1426 = vmatmul.mubr.bf16.gmra.mxu0 %v920
        %v1427 = vpop.f32.mrf.mxu0
        %v1428 = vadd.f32 %v861, %v1427
        %v1429 = vpop.f32.mrf.mxu0
        %v1430 = vadd.f32 %v865, %v1429
        %v1431 = vpop.f32.mrf.mxu0
        %v1432 = vadd.f32 %v861, %v1431
        %v1433 = vpop.f32.mrf.mxu0
        %v1434 = vadd.f32 %v865, %v1433
        %1435 = vmatprep.mubr.bf16.mxu0 %v923
        %1436 = vmatmul.mubr.bf16.gmra.mxu0 %v922
        %v1437 = vpop.f32.mrf.mxu0
        %v1438 = vadd.f32 %v861, %v1437
        %v1439 = vpop.f32.mrf.mxu0
        %v1440 = vadd.f32 %v865, %v1439
        %v1441 = vpop.f32.mrf.mxu0
        %v1442 = vadd.f32 %v861, %v1441
        %v1443 = vpop.f32.mrf.mxu0
        %v1444 = vadd.f32 %v865, %v1443
        %1445 = vmatprep.mubr.bf16.mxu0 %v925
        %1446 = vmatmul.mubr.bf16.gmra.mxu0 %v924
        %v1447 = vpop.f32.mrf.mxu0
        %v1448 = vadd.f32 %v861, %v1447
        %v1449 = vpop.f32.mrf.mxu0
        %v1450 = vadd.f32 %v865, %v1449
        %v1451 = vpop.f32.mrf.mxu0
        %v1452 = vadd.f32 %v861, %v1451
        %v1453 = vpop.f32.mrf.mxu0
        %v1454 = vadd.f32 %v865, %v1453
        %1455 = vmatprep.mubr.bf16.mxu0 %v927
        %1456 = vmatmul.mubr.bf16.gmra.mxu0 %v926
        %v1457 = vpop.f32.mrf.mxu0
        %v1458 = vadd.f32 %v861, %v1457
        %v1459 = vpop.f32.mrf.mxu0
        %v1460 = vadd.f32 %v865, %v1459
        %v1461 = vpop.f32.mrf.mxu0
        %v1462 = vadd.f32 %v861, %v1461
        %v1463 = vpop.f32.mrf.mxu0
        %v1464 = vadd.f32 %v865, %v1463
        %1465 = vmatprep.mubr.bf16.mxu0 %v929
        %1466 = vmatmul.mubr.bf16.gmra.mxu0 %v928
        %v1467 = vpop.f32.mrf.mxu0
        %v1468 = vadd.f32 %v861, %v1467
        %v1469 = vpop.f32.mrf.mxu0
        %v1470 = vadd.f32 %v865, %v1469
        %v1471 = vpop.f32.mrf.mxu0
        %v1472 = vadd.f32 %v861, %v1471
        %v1473 = vpop.f32.mrf.mxu0
        %v1474 = vadd.f32 %v865, %v1473
        %1475 = vmatprep.mubr.bf16.mxu0 %v931
        %1476 = vmatmul.mubr.bf16.gmra.mxu0 %v930
        %v1477 = vpop.f32.mrf.mxu0
        %v1478 = vadd.f32 %v861, %v1477
        %v1479 = vpop.f32.mrf.mxu0
        %v1480 = vadd.f32 %v865, %v1479
        %v1481 = vpop.f32.mrf.mxu0
        %v1482 = vadd.f32 %v861, %v1481
        %v1483 = vpop.f32.mrf.mxu0
        %v1484 = vadd.f32 %v865, %v1483
        %1485 = vmatprep.mubr.bf16.mxu0 %v933
        %1486 = vmatmul.mubr.bf16.gmra.mxu0 %v932
        %v1487 = vpop.f32.mrf.mxu0
        %v1488 = vadd.f32 %v861, %v1487
        %v1489 = vpop.f32.mrf.mxu0
        %v1490 = vadd.f32 %v865, %v1489
        %v1491 = vpop.f32.mrf.mxu0
        %v1492 = vadd.f32 %v861, %v1491
        %v1493 = vpop.f32.mrf.mxu0
        %v1494 = vadd.f32 %v865, %v1493
        %1495 = vdwg.mxu0
        %v1496 = vmax.f32 %v1305, 0.0
        %v1497 = vmax.f32 %v1307, 0.0
        %v1498 = vmax.f32 %v1418, 0.0
        %v1499 = vmax.f32 %v1420, 0.0
        %v1500 = vmax.f32 %v1309, 0.0
        %v1501 = vmax.f32 %v1311, 0.0
        %v1502 = vmax.f32 %v1422, 0.0
        %v1503 = vmax.f32 %v1424, 0.0
        %v1504 = vmax.f32 %v1315, 0.0
        %v1505 = vmax.f32 %v1317, 0.0
        %v1506 = vmax.f32 %v1428, 0.0
        %v1507 = vmax.f32 %v1430, 0.0
        %v1508 = vmax.f32 %v1319, 0.0
        %v1509 = vmax.f32 %v1321, 0.0
        %v1510 = vmax.f32 %v1432, 0.0
        %v1511 = vmax.f32 %v1434, 0.0
        %v1512 = vmax.f32 %v1325, 0.0
        %v1513 = vmax.f32 %v1327, 0.0
        %v1514 = vmax.f32 %v1438, 0.0
        %v1515 = vmax.f32 %v1440, 0.0
        %v1516 = vmax.f32 %v1329, 0.0
        %v1517 = vmax.f32 %v1331, 0.0
        %v1518 = vmax.f32 %v1442, 0.0
        %v1519 = vmax.f32 %v1444, 0.0
        %v1520 = vmax.f32 %v1335, 0.0
        %v1521 = vmax.f32 %v1337, 0.0
        %v1522 = vmax.f32 %v1448, 0.0
        %v1523 = vmax.f32 %v1450, 0.0
        %v1524 = vmax.f32 %v1339, 0.0
        %v1525 = vmax.f32 %v1341, 0.0
        %v1526 = vmax.f32 %v1452, 0.0
        %v1527 = vmax.f32 %v1454, 0.0
        %v1528 = vmax.f32 %v1345, 0.0
        %v1529 = vmax.f32 %v1347, 0.0
        %v1530 = vmax.f32 %v1458, 0.0
        %v1531 = vmax.f32 %v1460, 0.0
        %v1532 = vmax.f32 %v1349, 0.0
        %v1533 = vmax.f32 %v1351, 0.0
        %v1534 = vmax.f32 %v1462, 0.0
        %v1535 = vmax.f32 %v1464, 0.0
        %v1536 = vmax.f32 %v1355, 0.0
        %v1537 = vmax.f32 %v1357, 0.0
        %v1538 = vmax.f32 %v1468, 0.0
        %v1539 = vmax.f32 %v1470, 0.0
        %v1540 = vmax.f32 %v1359, 0.0
        %v1541 = vmax.f32 %v1361, 0.0
        %v1542 = vmax.f32 %v1472, 0.0
        %v1543 = vmax.f32 %v1474, 0.0
        %v1544 = vmax.f32 %v1365, 0.0
        %v1545 = vmax.f32 %v1367, 0.0
        %v1546 = vmax.f32 %v1478, 0.0
        %v1547 = vmax.f32 %v1480, 0.0
        %v1548 = vmax.f32 %v1369, 0.0
        %v1549 = vmax.f32 %v1371, 0.0
        %v1550 = vmax.f32 %v1482, 0.0
        %v1551 = vmax.f32 %v1484, 0.0
        %v1552 = vmax.f32 %v1375, 0.0
        %v1553 = vmax.f32 %v1377, 0.0
        %v1554 = vmax.f32 %v1488, 0.0
        %v1555 = vmax.f32 %v1490, 0.0
        %v1556 = vmax.f32 %v1379, 0.0
        %v1557 = vmax.f32 %v1381, 0.0
        %v1558 = vmax.f32 %v1492, 0.0
        %v1559 = vmax.f32 %v1494, 0.0
        %v1560 = vpack.c.bf16 %v1500, %v1496
        %v1561 = vpack.c.bf16 %v1501, %v1497
        %v1562 = vpack.c.bf16 %v1502, %v1498
        %v1563 = vpack.c.bf16 %v1503, %v1499
        %v1564 = vpack.c.bf16 %v1508, %v1504
        %v1565 = vpack.c.bf16 %v1509, %v1505
        %v1566 = vpack.c.bf16 %v1510, %v1506
        %v1567 = vpack.c.bf16 %v1511, %v1507
        %v1568 = vpack.c.bf16 %v1516, %v1512
        %v1569 = vpack.c.bf16 %v1517, %v1513
        %v1570 = vpack.c.bf16 %v1518, %v1514
        %v1571 = vpack.c.bf16 %v1519, %v1515
        %v1572 = vpack.c.bf16 %v1524, %v1520
        %v1573 = vpack.c.bf16 %v1525, %v1521
        %v1574 = vpack.c.bf16 %v1526, %v1522
        %v1575 = vpack.c.bf16 %v1527, %v1523
        %v1576 = vpack.c.bf16 %v1532, %v1528
        %v1577 = vpack.c.bf16 %v1533, %v1529
        %v1578 = vpack.c.bf16 %v1534, %v1530
        %v1579 = vpack.c.bf16 %v1535, %v1531
        %v1580 = vpack.c.bf16 %v1540, %v1536
        %v1581 = vpack.c.bf16 %v1541, %v1537
        %v1582 = vpack.c.bf16 %v1542, %v1538
        %v1583 = vpack.c.bf16 %v1543, %v1539
        %v1584 = vpack.c.bf16 %v1548, %v1544
        %v1585 = vpack.c.bf16 %v1549, %v1545
        %v1586 = vpack.c.bf16 %v1550, %v1546
        %v1587 = vpack.c.bf16 %v1551, %v1547
        %v1588 = vpack.c.bf16 %v1556, %v1552
        %v1589 = vpack.c.bf16 %v1557, %v1553
        %v1590 = vpack.c.bf16 %v1558, %v1554
        %v1591 = vpack.c.bf16 %v1559, %v1555
        %v1592 = vld [vmem:[#allocation8] sm:$0xf]
        %v1593 = vld [vmem:[#allocation8 + $0x4] sm:$0xf]
        %v1594 = vld [vmem:[#allocation8 + $0x8] sm:$0xf]
        %v1595 = vld [vmem:[#allocation8 + $0xc] sm:$0xf]
        %v1596 = vld [vmem:[#allocation8 + $0x10] sm:$0xf]
        %v1597 = vld [vmem:[#allocation8 + $0x14] sm:$0xf]
        %v1598 = vld [vmem:[#allocation8 + $0x18] sm:$0xf]
        %v1599 = vld [vmem:[#allocation8 + $0x1c] sm:$0xf]
        %v1600 = vld [vmem:[#allocation8 + $0x20] sm:$0xf]
        %v1601 = vld [vmem:[#allocation8 + $0x24] sm:$0xf]
        %v1602 = vld [vmem:[#allocation8 + $0x28] sm:$0xf]
        %v1603 = vld [vmem:[#allocation8 + $0x2c] sm:$0xf]
        %v1604 = vld [vmem:[#allocation8 + $0x30] sm:$0xf]
        %v1605 = vld [vmem:[#allocation8 + $0x34] sm:$0xf]
        %v1606 = vld [vmem:[#allocation8 + $0x38] sm:$0xf]
        %v1607 = vld [vmem:[#allocation8 + $0x3c] sm:$0xf]
        %v1608 = vld [vmem:[#allocation8 + $0x40] sm:$0xf]
        %v1609 = vld [vmem:[#allocation8 + $0x44] sm:$0xf]
        %v1610 = vld [vmem:[#allocation8 + $0x48] sm:$0xf]
        %v1611 = vld [vmem:[#allocation8 + $0x4c] sm:$0xf]
        %v1612 = vld [vmem:[#allocation8 + $0x50] sm:$0xf]
        %v1613 = vld [vmem:[#allocation8 + $0x54] sm:$0xf]
        %v1614 = vld [vmem:[#allocation8 + $0x58] sm:$0xf]
        %v1615 = vld [vmem:[#allocation8 + $0x5c] sm:$0xf]
        %v1616 = vld [vmem:[#allocation8 + $0x60] sm:$0xf]
        %v1617 = vld [vmem:[#allocation8 + $0x64] sm:$0xf]
        %v1618 = vld [vmem:[#allocation8 + $0x68] sm:$0xf]
        %v1619 = vld [vmem:[#allocation8 + $0x6c] sm:$0xf]
        %v1620 = vld [vmem:[#allocation8 + $0x70] sm:$0xf]
        %v1621 = vld [vmem:[#allocation8 + $0x74] sm:$0xf]
        %v1622 = vld [vmem:[#allocation8 + $0x78] sm:$0xf]
        %v1623 = vld [vmem:[#allocation8 + $0x7c] sm:$0xf]
        %v1624 = vld [vmem:[#allocation8 + $0x80] sm:$0xf]
        %v1625 = vld [vmem:[#allocation8 + $0x84] sm:$0xf]
        %v1626 = vld [vmem:[#allocation8 + $0x88] sm:$0xf]
        %v1627 = vld [vmem:[#allocation8 + $0x8c] sm:$0xf]
        %v1628 = vld [vmem:[#allocation8 + $0x90] sm:$0xf]
        %v1629 = vld [vmem:[#allocation8 + $0x94] sm:$0xf]
        %v1630 = vld [vmem:[#allocation8 + $0x98] sm:$0xf]
        %v1631 = vld [vmem:[#allocation8 + $0x9c] sm:$0xf]
        %v1632 = vld [vmem:[#allocation8 + $0xa0] sm:$0xf]
        %v1633 = vld [vmem:[#allocation8 + $0xa4] sm:$0xf]
        %v1634 = vld [vmem:[#allocation8 + $0xa8] sm:$0xf]
        %v1635 = vld [vmem:[#allocation8 + $0xac] sm:$0xf]
        %v1636 = vld [vmem:[#allocation8 + $0xb0] sm:$0xf]
        %v1637 = vld [vmem:[#allocation8 + $0xb4] sm:$0xf]
        %v1638 = vld [vmem:[#allocation8 + $0xb8] sm:$0xf]
        %v1639 = vld [vmem:[#allocation8 + $0xbc] sm:$0xf]
        %v1640 = vld [vmem:[#allocation8 + $0xc0] sm:$0xf]
        %v1641 = vld [vmem:[#allocation8 + $0xc4] sm:$0xf]
        %v1642 = vld [vmem:[#allocation8 + $0xc8] sm:$0xf]
        %v1643 = vld [vmem:[#allocation8 + $0xcc] sm:$0xf]
        %v1644 = vld [vmem:[#allocation8 + $0xd0] sm:$0xf]
        %v1645 = vld [vmem:[#allocation8 + $0xd4] sm:$0xf]
        %v1646 = vld [vmem:[#allocation8 + $0xd8] sm:$0xf]
        %v1647 = vld [vmem:[#allocation8 + $0xdc] sm:$0xf]
        %v1648 = vld [vmem:[#allocation8 + $0xe0] sm:$0xf]
        %v1649 = vld [vmem:[#allocation8 + $0xe4] sm:$0xf]
        %v1650 = vld [vmem:[#allocation8 + $0xe8] sm:$0xf]
        %v1651 = vld [vmem:[#allocation8 + $0xec] sm:$0xf]
        %v1652 = vld [vmem:[#allocation8 + $0xf0] sm:$0xf]
        %v1653 = vld [vmem:[#allocation8 + $0xf4] sm:$0xf]
        %v1654 = vld [vmem:[#allocation8 + $0xf8] sm:$0xf]
        %v1655 = vld [vmem:[#allocation8 + $0xfc] sm:$0xf]
        %v1656 = vld [vmem:[%s4] sm:$0x1]
        %v1658 = vlaneseq
        %v1659 = vshrl.u32 %v1658, 7
        %v1660 = vsub.s32 0, %v1659
        %v1661 = vrot.slane %v1656, %v1660
        %v1727 = vunpack.c.l.b16 %v1592
        %v1728 = vunpack.c.l.b16 %v1593
        %v1729 = vunpack.c.l.b16 %v1594
        %v1730 = vunpack.c.l.b16 %v1595
        %v1731 = vunpack.c.l.b16 %v1596
        %v1732 = vunpack.c.l.b16 %v1597
        %v1733 = vunpack.c.l.b16 %v1598
        %v1734 = vunpack.c.l.b16 %v1599
        %v1735 = vunpack.c.l.b16 %v1600
        %v1736 = vunpack.c.l.b16 %v1601
        %v1737 = vunpack.c.l.b16 %v1602
        %v1738 = vunpack.c.l.b16 %v1603
        %v1739 = vunpack.c.l.b16 %v1604
        %v1740 = vunpack.c.l.b16 %v1605
        %v1741 = vunpack.c.l.b16 %v1606
        %v1742 = vunpack.c.l.b16 %v1607
        %v1743 = vunpack.c.l.b16 %v1608
        %v1744 = vunpack.c.l.b16 %v1609
        %v1745 = vunpack.c.l.b16 %v1610
        %v1746 = vunpack.c.l.b16 %v1611
        %v1747 = vunpack.c.l.b16 %v1612
        %v1748 = vunpack.c.l.b16 %v1613
        %v1749 = vunpack.c.l.b16 %v1614
        %v1750 = vunpack.c.l.b16 %v1615
        %v1751 = vunpack.c.l.b16 %v1616
        %v1752 = vunpack.c.l.b16 %v1617
        %v1753 = vunpack.c.l.b16 %v1618
        %v1754 = vunpack.c.l.b16 %v1619
        %v1755 = vunpack.c.l.b16 %v1620
        %v1756 = vunpack.c.l.b16 %v1621
        %v1757 = vunpack.c.l.b16 %v1622
        %v1758 = vunpack.c.l.b16 %v1623
        %v1759 = vunpack.c.l.b16 %v1624
        %v1760 = vunpack.c.l.b16 %v1625
        %v1761 = vunpack.c.l.b16 %v1626
        %v1762 = vunpack.c.l.b16 %v1627
        %v1763 = vunpack.c.l.b16 %v1628
        %v1764 = vunpack.c.l.b16 %v1629
        %v1765 = vunpack.c.l.b16 %v1630
        %v1766 = vunpack.c.l.b16 %v1631
        %v1767 = vunpack.c.l.b16 %v1632
        %v1768 = vunpack.c.l.b16 %v1633
        %v1769 = vunpack.c.l.b16 %v1634
        %v1770 = vunpack.c.l.b16 %v1635
        %v1771 = vunpack.c.l.b16 %v1636
        %v1772 = vunpack.c.l.b16 %v1637
        %v1773 = vunpack.c.l.b16 %v1638
        %v1774 = vunpack.c.l.b16 %v1639
        %v1775 = vunpack.c.l.b16 %v1640
        %v1776 = vunpack.c.l.b16 %v1641
        %v1777 = vunpack.c.l.b16 %v1642
        %v1778 = vunpack.c.l.b16 %v1643
        %v1779 = vunpack.c.l.b16 %v1644
        %v1780 = vunpack.c.l.b16 %v1645
        %v1781 = vunpack.c.l.b16 %v1646
        %v1782 = vunpack.c.l.b16 %v1647
        %v1783 = vunpack.c.l.b16 %v1648
        %v1784 = vunpack.c.l.b16 %v1649
        %v1785 = vunpack.c.l.b16 %v1650
        %v1786 = vunpack.c.l.b16 %v1651
        %v1787 = vunpack.c.l.b16 %v1652
        %v1788 = vunpack.c.l.b16 %v1653
        %v1789 = vunpack.c.l.b16 %v1654
        %v1790 = vunpack.c.l.b16 %v1655
        %v1791 = vpack.c.b16 %v1728, %v1727
        %v1792 = vpack.c.b16 %v1730, %v1729
        %v1793 = vpack.c.b16 %v1732, %v1731
        %v1794 = vpack.c.b16 %v1734, %v1733
        %v1795 = vpack.c.b16 %v1736, %v1735
        %v1796 = vpack.c.b16 %v1738, %v1737
        %v1797 = vpack.c.b16 %v1740, %v1739
        %v1798 = vpack.c.b16 %v1742, %v1741
        %v1799 = vpack.c.b16 %v1744, %v1743
        %v1800 = vpack.c.b16 %v1746, %v1745
        %v1801 = vpack.c.b16 %v1748, %v1747
        %v1802 = vpack.c.b16 %v1750, %v1749
        %v1803 = vpack.c.b16 %v1752, %v1751
        %v1804 = vpack.c.b16 %v1754, %v1753
        %v1805 = vpack.c.b16 %v1756, %v1755
        %v1806 = vpack.c.b16 %v1758, %v1757
        %v1807 = vpack.c.b16 %v1760, %v1759
        %v1808 = vpack.c.b16 %v1762, %v1761
        %v1809 = vpack.c.b16 %v1764, %v1763
        %v1810 = vpack.c.b16 %v1766, %v1765
        %v1811 = vpack.c.b16 %v1768, %v1767
        %v1812 = vpack.c.b16 %v1770, %v1769
        %v1813 = vpack.c.b16 %v1772, %v1771
        %v1814 = vpack.c.b16 %v1774, %v1773
        %v1815 = vpack.c.b16 %v1776, %v1775
        %v1816 = vpack.c.b16 %v1778, %v1777
        %v1817 = vpack.c.b16 %v1780, %v1779
        %v1818 = vpack.c.b16 %v1782, %v1781
        %v1819 = vpack.c.b16 %v1784, %v1783
        %v1820 = vpack.c.b16 %v1786, %v1785
        %v1821 = vpack.c.b16 %v1788, %v1787
        %v1822 = vpack.c.b16 %v1790, %v1789
        %1855 = vmatprep.subr.bf16.mxu0 0
        %1856 = vmatpush1.bf16.msra.mxu0 %v1798
        %1857 = vmatprep.subr.bf16.mxu0 0
        %1858 = vmatpush1.bf16.msra.mxu0 %v1797
        %1859 = vmatprep.subr.bf16.mxu0 0
        %1860 = vmatpush1.bf16.msra.mxu0 %v1796
        %1861 = vmatprep.subr.bf16.mxu0 0
        %1862 = vmatpush1.bf16.msra.mxu0 %v1795
        %1863 = vmatprep.subr.bf16.mxu0 0
        %1864 = vmatpush1.bf16.msra.mxu0 %v1794
        %1865 = vmatprep.subr.bf16.mxu0 0
        %1866 = vmatpush1.bf16.msra.mxu0 %v1793
        %1867 = vmatprep.subr.bf16.mxu0 0
        %1868 = vmatpush1.bf16.msra.mxu0 %v1792
        %1869 = vmatprep.subr.bf16.mxu0 0
        %1870 = vmatpush1.bf16.msra.mxu0 %v1791
        %1871 = vmatprep.subr.bf16.mxu0 0
        %1872 = vmatpush2.bf16.msra.mxu0 %v1806
        %1873 = vmatprep.subr.bf16.mxu0 0
        %1874 = vmatpush2.bf16.msra.mxu0 %v1805
        %1875 = vmatprep.subr.bf16.mxu0 0
        %1876 = vmatpush2.bf16.msra.mxu0 %v1804
        %1877 = vmatprep.subr.bf16.mxu0 0
        %1878 = vmatpush2.bf16.msra.mxu0 %v1803
        %1879 = vmatprep.subr.bf16.mxu0 0
        %1880 = vmatpush2.bf16.msra.mxu0 %v1802
        %1881 = vmatprep.subr.bf16.mxu0 0
        %1882 = vmatpush2.bf16.msra.mxu0 %v1801
        %1883 = vmatprep.subr.bf16.mxu0 0
        %1884 = vmatpush2.bf16.msra.mxu0 %v1800
        %1885 = vmatprep.subr.bf16.mxu0 0
        %1886 = vmatpush2.bf16.msra.mxu0 %v1799
        %1887 = vmatprep.mubr.bf16.mxu0 %v1561
        %1888 = vmatmul.mubr.bf16.gmra.mxu0 %v1560
        %v1889 = vpop.f32.mrf.mxu0
        %v1890 = vadd.f32 %v1661, %v1889
        %v1891 = vpop.f32.mrf.mxu0
        %v1892 = vpop.f32.mrf.mxu0
        %v1893 = vadd.f32 %v1661, %v1892
        %v1894 = vpop.f32.mrf.mxu0
        %1895 = vmatprep.mubr.bf16.mxu0 %v1565
        %1896 = vmatmul.mubr.bf16.gmra.mxu0 %v1564
        %v1897 = vpop.f32.mrf.mxu0
        %v1898 = vadd.f32 %v1661, %v1897
        %v1899 = vpop.f32.mrf.mxu0
        %v1900 = vpop.f32.mrf.mxu0
        %v1901 = vadd.f32 %v1661, %v1900
        %v1902 = vpop.f32.mrf.mxu0
        %1903 = vmatprep.mubr.bf16.mxu0 %v1569
        %1904 = vmatmul.mubr.bf16.gmra.mxu0 %v1568
        %v1905 = vpop.f32.mrf.mxu0
        %v1906 = vadd.f32 %v1661, %v1905
        %v1907 = vpop.f32.mrf.mxu0
        %v1908 = vpop.f32.mrf.mxu0
        %v1909 = vadd.f32 %v1661, %v1908
        %v1910 = vpop.f32.mrf.mxu0
        %1911 = vmatprep.mubr.bf16.mxu0 %v1573
        %1912 = vmatmul.mubr.bf16.gmra.mxu0 %v1572
        %v1913 = vpop.f32.mrf.mxu0
        %v1914 = vadd.f32 %v1661, %v1913
        %v1915 = vpop.f32.mrf.mxu0
        %v1916 = vpop.f32.mrf.mxu0
        %v1917 = vadd.f32 %v1661, %v1916
        %v1918 = vpop.f32.mrf.mxu0
        %1919 = vmatprep.mubr.bf16.mxu0 %v1577
        %1920 = vmatmul.mubr.bf16.gmra.mxu0 %v1576
        %v1921 = vpop.f32.mrf.mxu0
        %v1922 = vadd.f32 %v1661, %v1921
        %v1923 = vpop.f32.mrf.mxu0
        %v1924 = vpop.f32.mrf.mxu0
        %v1925 = vadd.f32 %v1661, %v1924
        %v1926 = vpop.f32.mrf.mxu0
        %1927 = vmatprep.mubr.bf16.mxu0 %v1581
        %1928 = vmatmul.mubr.bf16.gmra.mxu0 %v1580
        %v1929 = vpop.f32.mrf.mxu0
        %v1930 = vadd.f32 %v1661, %v1929
        %v1931 = vpop.f32.mrf.mxu0
        %v1932 = vpop.f32.mrf.mxu0
        %v1933 = vadd.f32 %v1661, %v1932
        %v1934 = vpop.f32.mrf.mxu0
        %1935 = vmatprep.mubr.bf16.mxu0 %v1585
        %1936 = vmatmul.mubr.bf16.gmra.mxu0 %v1584
        %v1937 = vpop.f32.mrf.mxu0
        %v1938 = vadd.f32 %v1661, %v1937
        %v1939 = vpop.f32.mrf.mxu0
        %v1940 = vpop.f32.mrf.mxu0
        %v1941 = vadd.f32 %v1661, %v1940
        %v1942 = vpop.f32.mrf.mxu0
        %1943 = vmatprep.mubr.bf16.mxu0 %v1589
        %1944 = vmatmul.mubr.bf16.gmra.mxu0 %v1588
        %v1945 = vpop.f32.mrf.mxu0
        %v1946 = vadd.f32 %v1661, %v1945
        %v1947 = vpop.f32.mrf.mxu0
        %v1948 = vpop.f32.mrf.mxu0
        %v1949 = vadd.f32 %v1661, %v1948
        %v1950 = vpop.f32.mrf.mxu0
        %1951 = vdwg.mxu0
        %1952 = vmatprep.subr.bf16.mxu0 0
        %1953 = vmatpush1.bf16.msra.mxu0 %v1814
        %1954 = vmatprep.subr.bf16.mxu0 0
        %1955 = vmatpush1.bf16.msra.mxu0 %v1813
        %1956 = vmatprep.subr.bf16.mxu0 0
        %1957 = vmatpush1.bf16.msra.mxu0 %v1812
        %1958 = vmatprep.subr.bf16.mxu0 0
        %1959 = vmatpush1.bf16.msra.mxu0 %v1811
        %1960 = vmatprep.subr.bf16.mxu0 0
        %1961 = vmatpush1.bf16.msra.mxu0 %v1810
        %1962 = vmatprep.subr.bf16.mxu0 0
        %1963 = vmatpush1.bf16.msra.mxu0 %v1809
        %1964 = vmatprep.subr.bf16.mxu0 0
        %1965 = vmatpush1.bf16.msra.mxu0 %v1808
        %1966 = vmatprep.subr.bf16.mxu0 0
        %1967 = vmatpush1.bf16.msra.mxu0 %v1807
        %1968 = vmatprep.subr.bf16.mxu0 0
        %1969 = vmatpush2.bf16.msra.mxu0 %v1822
        %1970 = vmatprep.subr.bf16.mxu0 0
        %1971 = vmatpush2.bf16.msra.mxu0 %v1821
        %1972 = vmatprep.subr.bf16.mxu0 0
        %1973 = vmatpush2.bf16.msra.mxu0 %v1820
        %1974 = vmatprep.subr.bf16.mxu0 0
        %1975 = vmatpush2.bf16.msra.mxu0 %v1819
        %1976 = vmatprep.subr.bf16.mxu0 0
        %1977 = vmatpush2.bf16.msra.mxu0 %v1818
        %1978 = vmatprep.subr.bf16.mxu0 0
        %1979 = vmatpush2.bf16.msra.mxu0 %v1817
        %1980 = vmatprep.subr.bf16.mxu0 0
        %1981 = vmatpush2.bf16.msra.mxu0 %v1816
        %1982 = vmatprep.subr.bf16.mxu0 0
        %1983 = vmatpush2.bf16.msra.mxu0 %v1815
        %1984 = vmatprep.mubr.bf16.mxu0 %v1563
        %1985 = vmatmul.mubr.bf16.gmra.mxu0 %v1562
        %v1986 = vpop.f32.mrf.mxu0
        %v1987 = vadd.f32 %v1890, %v1986
        %v1988 = vpop.f32.mrf.mxu0
        %v1989 = vpop.f32.mrf.mxu0
        %v1990 = vadd.f32 %v1893, %v1989
        %v1991 = vpop.f32.mrf.mxu0
        %1992 = vmatprep.mubr.bf16.mxu0 %v1567
        %1993 = vmatmul.mubr.bf16.gmra.mxu0 %v1566
        %v1994 = vpop.f32.mrf.mxu0
        %v1995 = vadd.f32 %v1898, %v1994
        %v1996 = vpop.f32.mrf.mxu0
        %v1997 = vpop.f32.mrf.mxu0
        %v1998 = vadd.f32 %v1901, %v1997
        %v1999 = vpop.f32.mrf.mxu0
        %2000 = vmatprep.mubr.bf16.mxu0 %v1571
        %2001 = vmatmul.mubr.bf16.gmra.mxu0 %v1570
        %v2002 = vpop.f32.mrf.mxu0
        %v2003 = vadd.f32 %v1906, %v2002
        %v2004 = vpop.f32.mrf.mxu0
        %v2005 = vpop.f32.mrf.mxu0
        %v2006 = vadd.f32 %v1909, %v2005
        %v2007 = vpop.f32.mrf.mxu0
        %2008 = vmatprep.mubr.bf16.mxu0 %v1575
        %2009 = vmatmul.mubr.bf16.gmra.mxu0 %v1574
        %v2010 = vpop.f32.mrf.mxu0
        %v2011 = vadd.f32 %v1914, %v2010
        %v2012 = vpop.f32.mrf.mxu0
        %v2013 = vpop.f32.mrf.mxu0
        %v2014 = vadd.f32 %v1917, %v2013
        %v2015 = vpop.f32.mrf.mxu0
        %2016 = vmatprep.mubr.bf16.mxu0 %v1579
        %2017 = vmatmul.mubr.bf16.gmra.mxu0 %v1578
        %v2018 = vpop.f32.mrf.mxu0
        %v2019 = vadd.f32 %v1922, %v2018
        %v2020 = vpop.f32.mrf.mxu0
        %v2021 = vpop.f32.mrf.mxu0
        %v2022 = vadd.f32 %v1925, %v2021
        %v2023 = vpop.f32.mrf.mxu0
        %2024 = vmatprep.mubr.bf16.mxu0 %v1583
        %2025 = vmatmul.mubr.bf16.gmra.mxu0 %v1582
        %v2026 = vpop.f32.mrf.mxu0
        %v2027 = vadd.f32 %v1930, %v2026
        %v2028 = vpop.f32.mrf.mxu0
        %v2029 = vpop.f32.mrf.mxu0
        %v2030 = vadd.f32 %v1933, %v2029
        %v2031 = vpop.f32.mrf.mxu0
        %2032 = vmatprep.mubr.bf16.mxu0 %v1587
        %2033 = vmatmul.mubr.bf16.gmra.mxu0 %v1586
        %v2034 = vpop.f32.mrf.mxu0
        %v2035 = vadd.f32 %v1938, %v2034
        %v2036 = vpop.f32.mrf.mxu0
        %v2037 = vpop.f32.mrf.mxu0
        %v2038 = vadd.f32 %v1941, %v2037
        %v2039 = vpop.f32.mrf.mxu0
        %2040 = vmatprep.mubr.bf16.mxu0 %v1591
        %2041 = vmatmul.mubr.bf16.gmra.mxu0 %v1590
        %v2042 = vpop.f32.mrf.mxu0
        %v2043 = vadd.f32 %v1946, %v2042
        %v2044 = vpop.f32.mrf.mxu0
        %v2045 = vpop.f32.mrf.mxu0
        %v2046 = vadd.f32 %v1949, %v2045
        %v2047 = vpop.f32.mrf.mxu0
        %2048 = vdwg.mxu0
        %v2049 = vmax.f32 %v1987, 0.0
        %v2050 = vmax.f32 %v1990, 0.0
        %v2051 = vmax.f32 %v1995, 0.0
        %v2052 = vmax.f32 %v1998, 0.0
        %v2053 = vmax.f32 %v2003, 0.0
        %v2054 = vmax.f32 %v2006, 0.0
        %v2055 = vmax.f32 %v2011, 0.0
        %v2056 = vmax.f32 %v2014, 0.0
        %v2057 = vmax.f32 %v2019, 0.0
        %v2058 = vmax.f32 %v2022, 0.0
        %v2059 = vmax.f32 %v2027, 0.0
        %v2060 = vmax.f32 %v2030, 0.0
        %v2061 = vmax.f32 %v2035, 0.0
        %v2062 = vmax.f32 %v2038, 0.0
        %v2063 = vmax.f32 %v2043, 0.0
        %v2064 = vmax.f32 %v2046, 0.0
        %v2065 = vpack.c.bf16 %v2050, %v2049
        %v2066 = vpack.c.bf16 %v2052, %v2051
        %v2067 = vpack.c.bf16 %v2054, %v2053
        %v2068 = vpack.c.bf16 %v2056, %v2055
        %v2069 = vpack.c.bf16 %v2058, %v2057
        %v2070 = vpack.c.bf16 %v2060, %v2059
        %v2071 = vpack.c.bf16 %v2062, %v2061
        %v2072 = vpack.c.bf16 %v2064, %v2063
        %v2073 = vld [vmem:[#allocation10] sm:$0xf]
        %v2074 = vld [vmem:[#allocation10 + $0x4] sm:$0xf]
        %v2075 = vld [vmem:[#allocation10 + $0x8] sm:$0xf]
        %v2076 = vld [vmem:[#allocation10 + $0xc] sm:$0xf]
        %v2077 = vld [vmem:[#allocation10 + $0x10] sm:$0xf]
        %v2078 = vld [vmem:[#allocation10 + $0x14] sm:$0xf]
        %v2079 = vld [vmem:[#allocation10 + $0x18] sm:$0xf]
        %v2080 = vld [vmem:[#allocation10 + $0x1c] sm:$0xf]
        %v2081 = vld [vmem:[#allocation10 + $0x20] sm:$0xf]
        %v2082 = vld [vmem:[#allocation10 + $0x24] sm:$0xf]
        %v2083 = vld [vmem:[#allocation10 + $0x28] sm:$0xf]
        %v2084 = vld [vmem:[#allocation10 + $0x2c] sm:$0xf]
        %v2085 = vld [vmem:[#allocation10 + $0x30] sm:$0xf]
        %v2086 = vld [vmem:[#allocation10 + $0x34] sm:$0xf]
        %v2087 = vld [vmem:[#allocation10 + $0x38] sm:$0xf]
        %v2088 = vld [vmem:[#allocation10 + $0x3c] sm:$0xf]
        %v2089 = vld [vmem:[%s6] sm:$0x1]
        %v2091 = vlaneseq
        %v2092 = vshrl.u32 %v2091, 7
        %v2093 = vsub.s32 0, %v2092
        %v2094 = vrot.slane %v2089, %v2093
        %v2112 = vunpack.c.l.b16 %v2073
        %v2113 = vunpack.c.l.b16 %v2074
        %v2114 = vunpack.c.l.b16 %v2075
        %v2115 = vunpack.c.l.b16 %v2076
        %v2116 = vunpack.c.l.b16 %v2077
        %v2117 = vunpack.c.l.b16 %v2078
        %v2118 = vunpack.c.l.b16 %v2079
        %v2119 = vunpack.c.l.b16 %v2080
        %v2120 = vunpack.c.l.b16 %v2081
        %v2121 = vunpack.c.l.b16 %v2082
        %v2122 = vunpack.c.l.b16 %v2083
        %v2123 = vunpack.c.l.b16 %v2084
        %v2124 = vunpack.c.l.b16 %v2085
        %v2125 = vunpack.c.l.b16 %v2086
        %v2126 = vunpack.c.l.b16 %v2087
        %v2127 = vunpack.c.l.b16 %v2088
        %v2128 = vpack.c.b16 %v2113, %v2112
        %v2129 = vpack.c.b16 %v2115, %v2114
        %v2130 = vpack.c.b16 %v2117, %v2116
        %v2131 = vpack.c.b16 %v2119, %v2118
        %v2132 = vpack.c.b16 %v2121, %v2120
        %v2133 = vpack.c.b16 %v2123, %v2122
        %v2134 = vpack.c.b16 %v2125, %v2124
        %v2135 = vpack.c.b16 %v2127, %v2126
        %2144 = vmatprep.subr.bf16.mxu0 0
        %2145 = vmatpush1.bf16.msra.mxu0 %v2135
        %2146 = vmatprep.subr.bf16.mxu0 0
        %2147 = vmatpush1.bf16.msra.mxu0 %v2134
        %2148 = vmatprep.subr.bf16.mxu0 0
        %2149 = vmatpush1.bf16.msra.mxu0 %v2133
        %2150 = vmatprep.subr.bf16.mxu0 0
        %2151 = vmatpush1.bf16.msra.mxu0 %v2132
        %2152 = vmatprep.subr.bf16.mxu0 0
        %2153 = vmatpush1.bf16.msra.mxu0 %v2131
        %2154 = vmatprep.subr.bf16.mxu0 0
        %2155 = vmatpush1.bf16.msra.mxu0 %v2130
        %2156 = vmatprep.subr.bf16.mxu0 0
        %2157 = vmatpush1.bf16.msra.mxu0 %v2129
        %2158 = vmatprep.subr.bf16.mxu0 0
        %2159 = vmatpush1.bf16.msra.mxu0 %v2128
        %2160 = vmatprep.subr.bf16.mxu0 0
        %2161 = vmatpush2.bf16.msra.mxu0 0
        %2162 = vmatprep.subr.bf16.mxu0 0
        %2163 = vmatpush2.bf16.msra.mxu0 0
        %2164 = vmatprep.subr.bf16.mxu0 0
        %2165 = vmatpush2.bf16.msra.mxu0 0
        %2166 = vmatprep.subr.bf16.mxu0 0
        %2167 = vmatpush2.bf16.msra.mxu0 0
        %2168 = vmatprep.subr.bf16.mxu0 0
        %2169 = vmatpush2.bf16.msra.mxu0 0
        %2170 = vmatprep.subr.bf16.mxu0 0
        %2171 = vmatpush2.bf16.msra.mxu0 0
        %2172 = vmatprep.subr.bf16.mxu0 0
        %2173 = vmatpush2.bf16.msra.mxu0 0
        %2174 = vmatprep.subr.bf16.mxu0 0
        %2175 = vmatpush2.bf16.msra.mxu0 0
        %2176 = vmatprep.mubr.bf16.mxu0 0
        %2177 = vmatmul.mubr.bf16.gmra.mxu0 %v2065
        %v2178 = vpop.f32.mrf.mxu0
        %v2179 = vadd.f32 %v2094, %v2178
        %v2180 = vpop.f32.mrf.mxu0
        %v2181 = vpop.f32.mrf.mxu0
        %v2182 = vadd.f32 %v2094, %v2181
        %v2183 = vpop.f32.mrf.mxu0
        %2184 = vmatprep.mubr.bf16.mxu0 0
        %2185 = vmatmul.mubr.bf16.gmra.mxu0 %v2066
        %v2186 = vpop.f32.mrf.mxu0
        %v2187 = vadd.f32 %v2094, %v2186
        %v2188 = vpop.f32.mrf.mxu0
        %v2189 = vpop.f32.mrf.mxu0
        %v2190 = vadd.f32 %v2094, %v2189
        %v2191 = vpop.f32.mrf.mxu0
        %2192 = vmatprep.mubr.bf16.mxu0 0
        %2193 = vmatmul.mubr.bf16.gmra.mxu0 %v2067
        %v2194 = vpop.f32.mrf.mxu0
        %v2195 = vadd.f32 %v2094, %v2194
        %v2196 = vpop.f32.mrf.mxu0
        %v2197 = vpop.f32.mrf.mxu0
        %v2198 = vadd.f32 %v2094, %v2197
        %v2199 = vpop.f32.mrf.mxu0
        %2200 = vmatprep.mubr.bf16.mxu0 0
        %2201 = vmatmul.mubr.bf16.gmra.mxu0 %v2068
        %v2202 = vpop.f32.mrf.mxu0
        %v2203 = vadd.f32 %v2094, %v2202
        %v2204 = vpop.f32.mrf.mxu0
        %v2205 = vpop.f32.mrf.mxu0
        %v2206 = vadd.f32 %v2094, %v2205
        %v2207 = vpop.f32.mrf.mxu0
        %2208 = vmatprep.mubr.bf16.mxu0 0
        %2209 = vmatmul.mubr.bf16.gmra.mxu0 %v2069
        %v2210 = vpop.f32.mrf.mxu0
        %v2211 = vadd.f32 %v2094, %v2210
        %v2212 = vpop.f32.mrf.mxu0
        %v2213 = vpop.f32.mrf.mxu0
        %v2214 = vadd.f32 %v2094, %v2213
        %v2215 = vpop.f32.mrf.mxu0
        %2216 = vmatprep.mubr.bf16.mxu0 0
        %2217 = vmatmul.mubr.bf16.gmra.mxu0 %v2070
        %v2218 = vpop.f32.mrf.mxu0
        %v2219 = vadd.f32 %v2094, %v2218
        %v2220 = vpop.f32.mrf.mxu0
        %v2221 = vpop.f32.mrf.mxu0
        %v2222 = vadd.f32 %v2094, %v2221
        %v2223 = vpop.f32.mrf.mxu0
        %2224 = vmatprep.mubr.bf16.mxu0 0
        %2225 = vmatmul.mubr.bf16.gmra.mxu0 %v2071
        %v2226 = vpop.f32.mrf.mxu0
        %v2227 = vadd.f32 %v2094, %v2226
        %v2228 = vpop.f32.mrf.mxu0
        %v2229 = vpop.f32.mrf.mxu0
        %v2230 = vadd.f32 %v2094, %v2229
        %v2231 = vpop.f32.mrf.mxu0
        %2232 = vmatprep.mubr.bf16.mxu0 0
        %2233 = vmatmul.mubr.bf16.gmra.mxu0 %v2072
        %v2234 = vpop.f32.mrf.mxu0
        %v2235 = vadd.f32 %v2094, %v2234
        %v2236 = vpop.f32.mrf.mxu0
        %v2237 = vpop.f32.mrf.mxu0
        %v2238 = vadd.f32 %v2094, %v2237
        %v2239 = vpop.f32.mrf.mxu0
        %2240 = vdwg.mxu0
        %v2241 = vpack.c.bf16 %v2182, %v2179
        %v2242 = vpack.c.bf16 %v2190, %v2187
        %v2243 = vpack.c.bf16 %v2198, %v2195
        %v2244 = vpack.c.bf16 %v2206, %v2203
        %v2245 = vpack.c.bf16 %v2214, %v2211
        %v2246 = vpack.c.bf16 %v2222, %v2219
        %v2247 = vpack.c.bf16 %v2230, %v2227
        %v2248 = vpack.c.bf16 %v2238, %v2235
        %v2249 = vld [vmem:[#allocation11] sm:$0xf]
        %v2250 = vld [vmem:[#allocation11 + $0x4] sm:$0xf]
        %v2251 = vld [vmem:[#allocation11 + $0x8] sm:$0xf]
        %v2252 = vld [vmem:[#allocation11 + $0xc] sm:$0xf]
        %v2253 = vld [vmem:[#allocation11 + $0x10] sm:$0xf]
        %v2254 = vld [vmem:[#allocation11 + $0x14] sm:$0xf]
        %v2255 = vld [vmem:[#allocation11 + $0x18] sm:$0xf]
        %v2256 = vld [vmem:[#allocation11 + $0x1c] sm:$0xf]
        %v2257 = vld [vmem:[#allocation11 + $0x20] sm:$0xf]
        %v2258 = vld [vmem:[#allocation11 + $0x24] sm:$0xf]
        %v2259 = vld [vmem:[#allocation11 + $0x28] sm:$0xf]
        %v2260 = vld [vmem:[#allocation11 + $0x2c] sm:$0xf]
        %v2261 = vld [vmem:[#allocation11 + $0x30] sm:$0xf]
        %v2262 = vld [vmem:[#allocation11 + $0x34] sm:$0xf]
        %v2263 = vld [vmem:[#allocation11 + $0x38] sm:$0xf]
        %v2264 = vld [vmem:[#allocation11 + $0x3c] sm:$0xf]
        %v2265 = vld [vmem:[%s8] sm:$0x1]
        %v2267 = vlaneseq
        %v2268 = vshrl.u32 %v2267, 7
        %v2269 = vsub.s32 0, %v2268
        %v2270 = vrot.slane %v2265, %v2269
        %v2288 = vunpack.c.l.b16 %v2249
        %v2289 = vunpack.c.l.b16 %v2250
        %v2290 = vunpack.c.l.b16 %v2251
        %v2291 = vunpack.c.l.b16 %v2252
        %v2292 = vunpack.c.l.b16 %v2253
        %v2293 = vunpack.c.l.b16 %v2254
        %v2294 = vunpack.c.l.b16 %v2255
        %v2295 = vunpack.c.l.b16 %v2256
        %v2296 = vunpack.c.l.b16 %v2257
        %v2297 = vunpack.c.l.b16 %v2258
        %v2298 = vunpack.c.l.b16 %v2259
        %v2299 = vunpack.c.l.b16 %v2260
        %v2300 = vunpack.c.l.b16 %v2261
        %v2301 = vunpack.c.l.b16 %v2262
        %v2302 = vunpack.c.l.b16 %v2263
        %v2303 = vunpack.c.l.b16 %v2264
        %v2304 = vpack.c.b16 %v2289, %v2288
        %v2305 = vpack.c.b16 %v2291, %v2290
        %v2306 = vpack.c.b16 %v2293, %v2292
        %v2307 = vpack.c.b16 %v2295, %v2294
        %v2308 = vpack.c.b16 %v2297, %v2296
        %v2309 = vpack.c.b16 %v2299, %v2298
        %v2310 = vpack.c.b16 %v2301, %v2300
        %v2311 = vpack.c.b16 %v2303, %v2302
        %2320 = vmatprep.subr.bf16.mxu0 0
        %2321 = vmatpush1.bf16.msra.mxu0 %v2311
        %2322 = vmatprep.subr.bf16.mxu0 0
        %2323 = vmatpush1.bf16.msra.mxu0 %v2310
        %2324 = vmatprep.subr.bf16.mxu0 0
        %2325 = vmatpush1.bf16.msra.mxu0 %v2309
        %2326 = vmatprep.subr.bf16.mxu0 0
        %2327 = vmatpush1.bf16.msra.mxu0 %v2308
        %2328 = vmatprep.subr.bf16.mxu0 0
        %2329 = vmatpush1.bf16.msra.mxu0 %v2307
        %2330 = vmatprep.subr.bf16.mxu0 0
        %2331 = vmatpush1.bf16.msra.mxu0 %v2306
        %2332 = vmatprep.subr.bf16.mxu0 0
        %2333 = vmatpush1.bf16.msra.mxu0 %v2305
        %2334 = vmatprep.subr.bf16.mxu0 0
        %2335 = vmatpush1.bf16.msra.mxu0 %v2304
        %2336 = vmatprep.subr.bf16.mxu0 0
        %2337 = vmatpush2.bf16.msra.mxu0 0
        %2338 = vmatprep.subr.bf16.mxu0 0
        %2339 = vmatpush2.bf16.msra.mxu0 0
        %2340 = vmatprep.subr.bf16.mxu0 0
        %2341 = vmatpush2.bf16.msra.mxu0 0
        %2342 = vmatprep.subr.bf16.mxu0 0
        %2343 = vmatpush2.bf16.msra.mxu0 0
        %2344 = vmatprep.subr.bf16.mxu0 0
        %2345 = vmatpush2.bf16.msra.mxu0 0
        %2346 = vmatprep.subr.bf16.mxu0 0
        %2347 = vmatpush2.bf16.msra.mxu0 0
        %2348 = vmatprep.subr.bf16.mxu0 0
        %2349 = vmatpush2.bf16.msra.mxu0 0
        %2350 = vmatprep.subr.bf16.mxu0 0
        %2351 = vmatpush2.bf16.msra.mxu0 0
        %2352 = vmatprep.mubr.bf16.mxu0 0
        %2353 = vmatmul.mubr.bf16.gmra.mxu0 %v2241
        %v2354 = vpop.f32.mrf.mxu0
        %v2355 = vadd.f32 %v2270, %v2354
        %v2356 = vpop.f32.mrf.mxu0
        %v2357 = vpop.f32.mrf.mxu0
        %v2358 = vadd.f32 %v2270, %v2357
        %v2359 = vpop.f32.mrf.mxu0
        %2360 = vmatprep.mubr.bf16.mxu0 0
        %2361 = vmatmul.mubr.bf16.gmra.mxu0 %v2242
        %v2362 = vpop.f32.mrf.mxu0
        %v2363 = vadd.f32 %v2270, %v2362
        %v2364 = vpop.f32.mrf.mxu0
        %v2365 = vpop.f32.mrf.mxu0
        %v2366 = vadd.f32 %v2270, %v2365
        %v2367 = vpop.f32.mrf.mxu0
        %2368 = vmatprep.mubr.bf16.mxu0 0
        %2369 = vmatmul.mubr.bf16.gmra.mxu0 %v2243
        %v2370 = vpop.f32.mrf.mxu0
        %v2371 = vadd.f32 %v2270, %v2370
        %v2372 = vpop.f32.mrf.mxu0
        %v2373 = vpop.f32.mrf.mxu0
        %v2374 = vadd.f32 %v2270, %v2373
        %v2375 = vpop.f32.mrf.mxu0
        %2376 = vmatprep.mubr.bf16.mxu0 0
        %2377 = vmatmul.mubr.bf16.gmra.mxu0 %v2244
        %v2378 = vpop.f32.mrf.mxu0
        %v2379 = vadd.f32 %v2270, %v2378
        %v2380 = vpop.f32.mrf.mxu0
        %v2381 = vpop.f32.mrf.mxu0
        %v2382 = vadd.f32 %v2270, %v2381
        %v2383 = vpop.f32.mrf.mxu0
        %2384 = vmatprep.mubr.bf16.mxu0 0
        %2385 = vmatmul.mubr.bf16.gmra.mxu0 %v2245
        %v2386 = vpop.f32.mrf.mxu0
        %v2387 = vadd.f32 %v2270, %v2386
        %v2388 = vpop.f32.mrf.mxu0
        %v2389 = vpop.f32.mrf.mxu0
        %v2390 = vadd.f32 %v2270, %v2389
        %v2391 = vpop.f32.mrf.mxu0
        %2392 = vmatprep.mubr.bf16.mxu0 0
        %2393 = vmatmul.mubr.bf16.gmra.mxu0 %v2246
        %v2394 = vpop.f32.mrf.mxu0
        %v2395 = vadd.f32 %v2270, %v2394
        %v2396 = vpop.f32.mrf.mxu0
        %v2397 = vpop.f32.mrf.mxu0
        %v2398 = vadd.f32 %v2270, %v2397
        %v2399 = vpop.f32.mrf.mxu0
        %2400 = vmatprep.mubr.bf16.mxu0 0
        %2401 = vmatmul.mubr.bf16.gmra.mxu0 %v2247
        %v2402 = vpop.f32.mrf.mxu0
        %v2403 = vadd.f32 %v2270, %v2402
        %v2404 = vpop.f32.mrf.mxu0
        %v2405 = vpop.f32.mrf.mxu0
        %v2406 = vadd.f32 %v2270, %v2405
        %v2407 = vpop.f32.mrf.mxu0
        %2408 = vmatprep.mubr.bf16.mxu0 0
        %2409 = vmatmul.mubr.bf16.gmra.mxu0 %v2248
        %v2410 = vpop.f32.mrf.mxu0
        %v2411 = vadd.f32 %v2270, %v2410
        %v2412 = vpop.f32.mrf.mxu0
        %v2413 = vpop.f32.mrf.mxu0
        %v2414 = vadd.f32 %v2270, %v2413
        %v2415 = vpop.f32.mrf.mxu0
        %2416 = vdwg.mxu0
        %vm2417 = vcmp.gt.f32.partialorder %v2355, 0.0
        %vm2418 = vcmp.gt.f32.partialorder %v2358, 0.0
        %vm2419 = vcmp.gt.f32.partialorder %v2363, 0.0
        %vm2420 = vcmp.gt.f32.partialorder %v2366, 0.0
        %vm2421 = vcmp.gt.f32.partialorder %v2371, 0.0
        %vm2422 = vcmp.gt.f32.partialorder %v2374, 0.0
        %vm2423 = vcmp.gt.f32.partialorder %v2379, 0.0
        %vm2424 = vcmp.gt.f32.partialorder %v2382, 0.0
        %vm2425 = vcmp.gt.f32.partialorder %v2387, 0.0
        %vm2426 = vcmp.gt.f32.partialorder %v2390, 0.0
        %vm2427 = vcmp.gt.f32.partialorder %v2395, 0.0
        %vm2428 = vcmp.gt.f32.partialorder %v2398, 0.0
        %vm2429 = vcmp.gt.f32.partialorder %v2403, 0.0
        %vm2430 = vcmp.gt.f32.partialorder %v2406, 0.0
        %vm2431 = vcmp.gt.f32.partialorder %v2411, 0.0
        %vm2432 = vcmp.gt.f32.partialorder %v2414, 0.0
        %v2433 = vmin.f32 %v2355, 0.0
        %v2434 = vmin.f32 %v2358, 0.0
        %v2435 = vmin.f32 %v2363, 0.0
        %v2436 = vmin.f32 %v2366, 0.0
        %v2437 = vmin.f32 %v2371, 0.0
        %v2438 = vmin.f32 %v2374, 0.0
        %v2439 = vmin.f32 %v2379, 0.0
        %v2440 = vmin.f32 %v2382, 0.0
        %v2441 = vmin.f32 %v2387, 0.0
        %v2442 = vmin.f32 %v2390, 0.0
        %v2443 = vmin.f32 %v2395, 0.0
        %v2444 = vmin.f32 %v2398, 0.0
        %v2445 = vmin.f32 %v2403, 0.0
        %v2446 = vmin.f32 %v2406, 0.0
        %v2447 = vmin.f32 %v2411, 0.0
        %v2448 = vmin.f32 %v2414, 0.0
        %v2449 = vmul.f32 %v2433, 1.442695
        %v2450 = vpow.pop %v2449
        %v2451 = vmul.f32 %v2434, 1.442695
        %v2452 = vpow.pop %v2451
        %v2453 = vmul.f32 %v2435, 1.442695
        %v2454 = vpow.pop %v2453
        %v2455 = vmul.f32 %v2436, 1.442695
        %v2456 = vpow.pop %v2455
        %v2457 = vmul.f32 %v2437, 1.442695
        %v2458 = vpow.pop %v2457
        %v2459 = vmul.f32 %v2438, 1.442695
        %v2460 = vpow.pop %v2459
        %v2461 = vmul.f32 %v2439, 1.442695
        %v2462 = vpow.pop %v2461
        %v2463 = vmul.f32 %v2440, 1.442695
        %v2464 = vpow.pop %v2463
        %v2465 = vmul.f32 %v2441, 1.442695
        %v2466 = vpow.pop %v2465
        %v2467 = vmul.f32 %v2442, 1.442695
        %v2468 = vpow.pop %v2467
        %v2469 = vmul.f32 %v2443, 1.442695
        %v2470 = vpow.pop %v2469
        %v2471 = vmul.f32 %v2444, 1.442695
        %v2472 = vpow.pop %v2471
        %v2473 = vmul.f32 %v2445, 1.442695
        %v2474 = vpow.pop %v2473
        %v2475 = vmul.f32 %v2446, 1.442695
        %v2476 = vpow.pop %v2475
        %v2477 = vmul.f32 %v2447, 1.442695
        %v2478 = vpow.pop %v2477
        %v2479 = vmul.f32 %v2448, 1.442695
        %v2480 = vpow.pop %v2479
        %v2481 = vsub.f32 %v2450, 1.0
        %v2482 = vsub.f32 %v2452, 1.0
        %v2483 = vsub.f32 %v2454, 1.0
        %v2484 = vsub.f32 %v2456, 1.0
        %v2485 = vsub.f32 %v2458, 1.0
        %v2486 = vsub.f32 %v2460, 1.0
        %v2487 = vsub.f32 %v2462, 1.0
        %v2488 = vsub.f32 %v2464, 1.0
        %v2489 = vsub.f32 %v2466, 1.0
        %v2490 = vsub.f32 %v2468, 1.0
        %v2491 = vsub.f32 %v2470, 1.0
        %v2492 = vsub.f32 %v2472, 1.0
        %v2493 = vsub.f32 %v2474, 1.0
        %v2494 = vsub.f32 %v2476, 1.0
        %v2495 = vsub.f32 %v2478, 1.0
        %v2496 = vsub.f32 %v2480, 1.0
        %v2497 = vsel %vm2417, %v2355, %v2481
        %v2498 = vsel %vm2418, %v2358, %v2482
        %v2499 = vsel %vm2419, %v2363, %v2483
        %v2500 = vsel %vm2420, %v2366, %v2484
        %v2501 = vsel %vm2421, %v2371, %v2485
        %v2502 = vsel %vm2422, %v2374, %v2486
        %v2503 = vsel %vm2423, %v2379, %v2487
        %v2504 = vsel %vm2424, %v2382, %v2488
        %v2505 = vsel %vm2425, %v2387, %v2489
        %v2506 = vsel %vm2426, %v2390, %v2490
        %v2507 = vsel %vm2427, %v2395, %v2491
        %v2508 = vsel %vm2428, %v2398, %v2492
        %v2509 = vsel %vm2429, %v2403, %v2493
        %v2510 = vsel %vm2430, %v2406, %v2494
        %v2511 = vsel %vm2431, %v2411, %v2495
        %v2512 = vsel %vm2432, %v2414, %v2496
        %v2513 = vpack.c.bf16 %v2498, %v2497
        %v2514 = vpack.c.bf16 %v2500, %v2499
        %v2515 = vpack.c.bf16 %v2502, %v2501
        %v2516 = vpack.c.bf16 %v2504, %v2503
        %v2517 = vpack.c.bf16 %v2506, %v2505
        %v2518 = vpack.c.bf16 %v2508, %v2507
        %v2519 = vpack.c.bf16 %v2510, %v2509
        %v2520 = vpack.c.bf16 %v2512, %v2511
        %v2521 = vld [vmem:[#allocation13] sm:$0xf]
        %v2522 = vld [vmem:[#allocation13 + $0x4] sm:$0xf]
        %v2523 = vld [vmem:[#allocation13 + $0x8] sm:$0xf]
        %v2524 = vld [vmem:[#allocation13 + $0xc] sm:$0xf]
        %v2525 = vld [vmem:[#allocation13 + $0x10] sm:$0xf]
        %v2526 = vld [vmem:[#allocation13 + $0x14] sm:$0xf]
        %v2527 = vld [vmem:[#allocation13 + $0x18] sm:$0xf]
        %v2528 = vld [vmem:[#allocation13 + $0x1c] sm:$0xf]
        %v2529 = vld [vmem:[#allocation13 + $0x20] sm:$0xf]
        %v2530 = vld [vmem:[#allocation13 + $0x24] sm:$0xf]
        %v2531 = vld [vmem:[#allocation13 + $0x28] sm:$0xf]
        %v2532 = vld [vmem:[#allocation13 + $0x2c] sm:$0xf]
        %v2533 = vld [vmem:[#allocation13 + $0x30] sm:$0xf]
        %v2534 = vld [vmem:[#allocation13 + $0x34] sm:$0xf]
        %v2535 = vld [vmem:[#allocation13 + $0x38] sm:$0xf]
        %v2536 = vld [vmem:[#allocation13 + $0x3c] sm:$0xf]
        %v2537 = vld [vmem:[%s10] sm:$0x1]
        %v2539 = vlaneseq
        %v2540 = vshrl.u32 %v2539, 7
        %v2541 = vsub.s32 0, %v2540
        %v2542 = vrot.slane %v2537, %v2541
        %v2560 = vunpack.c.l.b16 %v2521
        %v2561 = vunpack.c.l.b16 %v2522
        %v2562 = vunpack.c.l.b16 %v2523
        %v2563 = vunpack.c.l.b16 %v2524
        %v2564 = vunpack.c.l.b16 %v2525
        %v2565 = vunpack.c.l.b16 %v2526
        %v2566 = vunpack.c.l.b16 %v2527
        %v2567 = vunpack.c.l.b16 %v2528
        %v2568 = vunpack.c.l.b16 %v2529
        %v2569 = vunpack.c.l.b16 %v2530
        %v2570 = vunpack.c.l.b16 %v2531
        %v2571 = vunpack.c.l.b16 %v2532
        %v2572 = vunpack.c.l.b16 %v2533
        %v2573 = vunpack.c.l.b16 %v2534
        %v2574 = vunpack.c.l.b16 %v2535
        %v2575 = vunpack.c.l.b16 %v2536
        %v2576 = vpack.c.b16 %v2561, %v2560
        %v2577 = vpack.c.b16 %v2563, %v2562
        %v2578 = vpack.c.b16 %v2565, %v2564
        %v2579 = vpack.c.b16 %v2567, %v2566
        %v2580 = vpack.c.b16 %v2569, %v2568
        %v2581 = vpack.c.b16 %v2571, %v2570
        %v2582 = vpack.c.b16 %v2573, %v2572
        %v2583 = vpack.c.b16 %v2575, %v2574
        %2592 = vmatprep.subr.bf16.mxu0 0
        %2593 = vmatpush1.bf16.msra.mxu0 %v2583
        %2594 = vmatprep.subr.bf16.mxu0 0
        %2595 = vmatpush1.bf16.msra.mxu0 %v2582
        %2596 = vmatprep.subr.bf16.mxu0 0
        %2597 = vmatpush1.bf16.msra.mxu0 %v2581
        %2598 = vmatprep.subr.bf16.mxu0 0
        %2599 = vmatpush1.bf16.msra.mxu0 %v2580
        %2600 = vmatprep.subr.bf16.mxu0 0
        %2601 = vmatpush1.bf16.msra.mxu0 %v2579
        %2602 = vmatprep.subr.bf16.mxu0 0
        %2603 = vmatpush1.bf16.msra.mxu0 %v2578
        %2604 = vmatprep.subr.bf16.mxu0 0
        %2605 = vmatpush1.bf16.msra.mxu0 %v2577
        %2606 = vmatprep.subr.bf16.mxu0 0
        %2607 = vmatpush1.bf16.msra.mxu0 %v2576
        %2608 = vmatprep.subr.bf16.mxu0 0
        %2609 = vmatpush2.bf16.msra.mxu0 0
        %2610 = vmatprep.subr.bf16.mxu0 0
        %2611 = vmatpush2.bf16.msra.mxu0 0
        %2612 = vmatprep.subr.bf16.mxu0 0
        %2613 = vmatpush2.bf16.msra.mxu0 0
        %2614 = vmatprep.subr.bf16.mxu0 0
        %2615 = vmatpush2.bf16.msra.mxu0 0
        %2616 = vmatprep.subr.bf16.mxu0 0
        %2617 = vmatpush2.bf16.msra.mxu0 0
        %2618 = vmatprep.subr.bf16.mxu0 0
        %2619 = vmatpush2.bf16.msra.mxu0 0
        %2620 = vmatprep.subr.bf16.mxu0 0
        %2621 = vmatpush2.bf16.msra.mxu0 0
        %2622 = vmatprep.subr.bf16.mxu0 0
        %2623 = vmatpush2.bf16.msra.mxu0 0
        %2624 = vmatprep.mubr.bf16.mxu0 0
        %2625 = vmatmul.mubr.bf16.gmra.mxu0 %v2513
        %v2626 = vpop.f32.mrf.mxu0
        %v2627 = vadd.f32 %v2542, %v2626
        %v2628 = vpop.f32.mrf.mxu0
        %v2629 = vpop.f32.mrf.mxu0
        %v2630 = vadd.f32 %v2542, %v2629
        %v2631 = vpop.f32.mrf.mxu0
        %2632 = vmatprep.mubr.bf16.mxu0 0
        %2633 = vmatmul.mubr.bf16.gmra.mxu0 %v2514
        %v2634 = vpop.f32.mrf.mxu0
        %v2635 = vadd.f32 %v2542, %v2634
        %v2636 = vpop.f32.mrf.mxu0
        %v2637 = vpop.f32.mrf.mxu0
        %v2638 = vadd.f32 %v2542, %v2637
        %v2639 = vpop.f32.mrf.mxu0
        %2640 = vmatprep.mubr.bf16.mxu0 0
        %2641 = vmatmul.mubr.bf16.gmra.mxu0 %v2515
        %v2642 = vpop.f32.mrf.mxu0
        %v2643 = vadd.f32 %v2542, %v2642
        %v2644 = vpop.f32.mrf.mxu0
        %v2645 = vpop.f32.mrf.mxu0
        %v2646 = vadd.f32 %v2542, %v2645
        %v2647 = vpop.f32.mrf.mxu0
        %2648 = vmatprep.mubr.bf16.mxu0 0
        %2649 = vmatmul.mubr.bf16.gmra.mxu0 %v2516
        %v2650 = vpop.f32.mrf.mxu0
        %v2651 = vadd.f32 %v2542, %v2650
        %v2652 = vpop.f32.mrf.mxu0
        %v2653 = vpop.f32.mrf.mxu0
        %v2654 = vadd.f32 %v2542, %v2653
        %v2655 = vpop.f32.mrf.mxu0
        %2656 = vmatprep.mubr.bf16.mxu0 0
        %2657 = vmatmul.mubr.bf16.gmra.mxu0 %v2517
        %v2658 = vpop.f32.mrf.mxu0
        %v2659 = vadd.f32 %v2542, %v2658
        %v2660 = vpop.f32.mrf.mxu0
        %v2661 = vpop.f32.mrf.mxu0
        %v2662 = vadd.f32 %v2542, %v2661
        %v2663 = vpop.f32.mrf.mxu0
        %2664 = vmatprep.mubr.bf16.mxu0 0
        %2665 = vmatmul.mubr.bf16.gmra.mxu0 %v2518
        %v2666 = vpop.f32.mrf.mxu0
        %v2667 = vadd.f32 %v2542, %v2666
        %v2668 = vpop.f32.mrf.mxu0
        %v2669 = vpop.f32.mrf.mxu0
        %v2670 = vadd.f32 %v2542, %v2669
        %v2671 = vpop.f32.mrf.mxu0
        %2672 = vmatprep.mubr.bf16.mxu0 0
        %2673 = vmatmul.mubr.bf16.gmra.mxu0 %v2519
        %v2674 = vpop.f32.mrf.mxu0
        %v2675 = vadd.f32 %v2542, %v2674
        %v2676 = vpop.f32.mrf.mxu0
        %v2677 = vpop.f32.mrf.mxu0
        %v2678 = vadd.f32 %v2542, %v2677
        %v2679 = vpop.f32.mrf.mxu0
        %2680 = vmatprep.mubr.bf16.mxu0 0
        %2681 = vmatmul.mubr.bf16.gmra.mxu0 %v2520
        %v2682 = vpop.f32.mrf.mxu0
        %v2683 = vadd.f32 %v2542, %v2682
        %v2684 = vpop.f32.mrf.mxu0
        %v2685 = vpop.f32.mrf.mxu0
        %v2686 = vadd.f32 %v2542, %v2685
        %v2687 = vpop.f32.mrf.mxu0
        %2688 = vdwg.mxu0
        %vm2689 = vcmp.gt.f32.partialorder %v2627, 0.0
        %vm2690 = vcmp.gt.f32.partialorder %v2630, 0.0
        %vm2691 = vcmp.gt.f32.partialorder %v2635, 0.0
        %vm2692 = vcmp.gt.f32.partialorder %v2638, 0.0
        %vm2693 = vcmp.gt.f32.partialorder %v2643, 0.0
        %vm2694 = vcmp.gt.f32.partialorder %v2646, 0.0
        %vm2695 = vcmp.gt.f32.partialorder %v2651, 0.0
        %vm2696 = vcmp.gt.f32.partialorder %v2654, 0.0
        %vm2697 = vcmp.gt.f32.partialorder %v2659, 0.0
        %vm2698 = vcmp.gt.f32.partialorder %v2662, 0.0
        %vm2699 = vcmp.gt.f32.partialorder %v2667, 0.0
        %vm2700 = vcmp.gt.f32.partialorder %v2670, 0.0
        %vm2701 = vcmp.gt.f32.partialorder %v2675, 0.0
        %vm2702 = vcmp.gt.f32.partialorder %v2678, 0.0
        %vm2703 = vcmp.gt.f32.partialorder %v2683, 0.0
        %vm2704 = vcmp.gt.f32.partialorder %v2686, 0.0
        %v2705 = vmin.f32 %v2627, 0.0
        %v2706 = vmin.f32 %v2630, 0.0
        %v2707 = vmin.f32 %v2635, 0.0
        %v2708 = vmin.f32 %v2638, 0.0
        %v2709 = vmin.f32 %v2643, 0.0
        %v2710 = vmin.f32 %v2646, 0.0
        %v2711 = vmin.f32 %v2651, 0.0
        %v2712 = vmin.f32 %v2654, 0.0
        %v2713 = vmin.f32 %v2659, 0.0
        %v2714 = vmin.f32 %v2662, 0.0
        %v2715 = vmin.f32 %v2667, 0.0
        %v2716 = vmin.f32 %v2670, 0.0
        %v2717 = vmin.f32 %v2675, 0.0
        %v2718 = vmin.f32 %v2678, 0.0
        %v2719 = vmin.f32 %v2683, 0.0
        %v2720 = vmin.f32 %v2686, 0.0
        %v2721 = vmul.f32 %v2705, 1.442695
        %v2722 = vpow.pop %v2721
        %v2723 = vmul.f32 %v2706, 1.442695
        %v2724 = vpow.pop %v2723
        %v2725 = vmul.f32 %v2707, 1.442695
        %v2726 = vpow.pop %v2725
        %v2727 = vmul.f32 %v2708, 1.442695
        %v2728 = vpow.pop %v2727
        %v2729 = vmul.f32 %v2709, 1.442695
        %v2730 = vpow.pop %v2729
        %v2731 = vmul.f32 %v2710, 1.442695
        %v2732 = vpow.pop %v2731
        %v2733 = vmul.f32 %v2711, 1.442695
        %v2734 = vpow.pop %v2733
        %v2735 = vmul.f32 %v2712, 1.442695
        %v2736 = vpow.pop %v2735
        %v2737 = vmul.f32 %v2713, 1.442695
        %v2738 = vpow.pop %v2737
        %v2739 = vmul.f32 %v2714, 1.442695
        %v2740 = vpow.pop %v2739
        %v2741 = vmul.f32 %v2715, 1.442695
        %v2742 = vpow.pop %v2741
        %v2743 = vmul.f32 %v2716, 1.442695
        %v2744 = vpow.pop %v2743
        %v2745 = vmul.f32 %v2717, 1.442695
        %v2746 = vpow.pop %v2745
        %v2747 = vmul.f32 %v2718, 1.442695
        %v2748 = vpow.pop %v2747
        %v2749 = vmul.f32 %v2719, 1.442695
        %v2750 = vpow.pop %v2749
        %v2751 = vmul.f32 %v2720, 1.442695
        %v2752 = vpow.pop %v2751
        %v2753 = vsub.f32 %v2722, 1.0
        %v2754 = vsub.f32 %v2724, 1.0
        %v2755 = vsub.f32 %v2726, 1.0
        %v2756 = vsub.f32 %v2728, 1.0
        %v2757 = vsub.f32 %v2730, 1.0
        %v2758 = vsub.f32 %v2732, 1.0
        %v2759 = vsub.f32 %v2734, 1.0
        %v2760 = vsub.f32 %v2736, 1.0
        %v2761 = vsub.f32 %v2738, 1.0
        %v2762 = vsub.f32 %v2740, 1.0
        %v2763 = vsub.f32 %v2742, 1.0
        %v2764 = vsub.f32 %v2744, 1.0
        %v2765 = vsub.f32 %v2746, 1.0
        %v2766 = vsub.f32 %v2748, 1.0
        %v2767 = vsub.f32 %v2750, 1.0
        %v2768 = vsub.f32 %v2752, 1.0
        %v2769 = vsel %vm2689, %v2627, %v2753
        %v2770 = vsel %vm2690, %v2630, %v2754
        %v2771 = vsel %vm2691, %v2635, %v2755
        %v2772 = vsel %vm2692, %v2638, %v2756
        %v2773 = vsel %vm2693, %v2643, %v2757
        %v2774 = vsel %vm2694, %v2646, %v2758
        %v2775 = vsel %vm2695, %v2651, %v2759
        %v2776 = vsel %vm2696, %v2654, %v2760
        %v2777 = vsel %vm2697, %v2659, %v2761
        %v2778 = vsel %vm2698, %v2662, %v2762
        %v2779 = vsel %vm2699, %v2667, %v2763
        %v2780 = vsel %vm2700, %v2670, %v2764
        %v2781 = vsel %vm2701, %v2675, %v2765
        %v2782 = vsel %vm2702, %v2678, %v2766
        %v2783 = vsel %vm2703, %v2683, %v2767
        %v2784 = vsel %vm2704, %v2686, %v2768
        %v2785 = vpack.c.bf16 %v2770, %v2769
        %v2786 = vpack.c.bf16 %v2772, %v2771
        %v2787 = vpack.c.bf16 %v2774, %v2773
        %v2788 = vpack.c.bf16 %v2776, %v2775
        %v2789 = vpack.c.bf16 %v2778, %v2777
        %v2790 = vpack.c.bf16 %v2780, %v2779
        %v2791 = vpack.c.bf16 %v2782, %v2781
        %v2792 = vpack.c.bf16 %v2784, %v2783
        %v2793 = vld [vmem:[#allocation14] sm:$0xf]
        %v2794 = vld [vmem:[#allocation14 + $0x4] sm:$0xf]
        %v2795 = vld [vmem:[#allocation14 + $0x8] sm:$0xf]
        %v2796 = vld [vmem:[#allocation14 + $0xc] sm:$0xf]
        %v2797 = vld [vmem:[#allocation14 + $0x10] sm:$0xf]
        %v2798 = vld [vmem:[#allocation14 + $0x14] sm:$0xf]
        %v2799 = vld [vmem:[#allocation14 + $0x18] sm:$0xf]
        %v2800 = vld [vmem:[#allocation14 + $0x1c] sm:$0xf]
        %v2801 = vld [vmem:[#allocation14 + $0x20] sm:$0xf]
        %v2802 = vld [vmem:[#allocation14 + $0x24] sm:$0xf]
        %v2803 = vld [vmem:[#allocation14 + $0x28] sm:$0xf]
        %v2804 = vld [vmem:[#allocation14 + $0x2c] sm:$0xf]
        %v2805 = vld [vmem:[#allocation14 + $0x30] sm:$0xf]
        %v2806 = vld [vmem:[#allocation14 + $0x34] sm:$0xf]
        %v2807 = vld [vmem:[#allocation14 + $0x38] sm:$0xf]
        %v2808 = vld [vmem:[#allocation14 + $0x3c] sm:$0xf]
        %v2809 = vld [vmem:[%s12] sm:$0x1]
        %v2811 = vlaneseq
        %v2812 = vshrl.u32 %v2811, 7
        %v2813 = vsub.s32 0, %v2812
        %v2814 = vrot.slane %v2809, %v2813
        %v2832 = vunpack.c.l.b16 %v2793
        %v2833 = vunpack.c.l.b16 %v2794
        %v2834 = vunpack.c.l.b16 %v2795
        %v2835 = vunpack.c.l.b16 %v2796
        %v2836 = vunpack.c.l.b16 %v2797
        %v2837 = vunpack.c.l.b16 %v2798
        %v2838 = vunpack.c.l.b16 %v2799
        %v2839 = vunpack.c.l.b16 %v2800
        %v2840 = vunpack.c.l.b16 %v2801
        %v2841 = vunpack.c.l.b16 %v2802
        %v2842 = vunpack.c.l.b16 %v2803
        %v2843 = vunpack.c.l.b16 %v2804
        %v2844 = vunpack.c.l.b16 %v2805
        %v2845 = vunpack.c.l.b16 %v2806
        %v2846 = vunpack.c.l.b16 %v2807
        %v2847 = vunpack.c.l.b16 %v2808
        %v2848 = vpack.c.b16 %v2833, %v2832
        %v2849 = vpack.c.b16 %v2835, %v2834
        %v2850 = vpack.c.b16 %v2837, %v2836
        %v2851 = vpack.c.b16 %v2839, %v2838
        %v2852 = vpack.c.b16 %v2841, %v2840
        %v2853 = vpack.c.b16 %v2843, %v2842
        %v2854 = vpack.c.b16 %v2845, %v2844
        %v2855 = vpack.c.b16 %v2847, %v2846
        %2864 = vmatprep.subr.bf16.mxu0 0
        %2865 = vmatpush1.bf16.msra.mxu0 %v2855
        %2866 = vmatprep.subr.bf16.mxu0 0
        %2867 = vmatpush1.bf16.msra.mxu0 %v2854
        %2868 = vmatprep.subr.bf16.mxu0 0
        %2869 = vmatpush1.bf16.msra.mxu0 %v2853
        %2870 = vmatprep.subr.bf16.mxu0 0
        %2871 = vmatpush1.bf16.msra.mxu0 %v2852
        %2872 = vmatprep.subr.bf16.mxu0 0
        %2873 = vmatpush1.bf16.msra.mxu0 %v2851
        %2874 = vmatprep.subr.bf16.mxu0 0
        %2875 = vmatpush1.bf16.msra.mxu0 %v2850
        %2876 = vmatprep.subr.bf16.mxu0 0
        %2877 = vmatpush1.bf16.msra.mxu0 %v2849
        %2878 = vmatprep.subr.bf16.mxu0 0
        %2879 = vmatpush1.bf16.msra.mxu0 %v2848
        %2880 = vmatprep.subr.bf16.mxu0 0
        %2881 = vmatpush2.bf16.msra.mxu0 0
        %2882 = vmatprep.subr.bf16.mxu0 0
        %2883 = vmatpush2.bf16.msra.mxu0 0
        %2884 = vmatprep.subr.bf16.mxu0 0
        %2885 = vmatpush2.bf16.msra.mxu0 0
        %2886 = vmatprep.subr.bf16.mxu0 0
        %2887 = vmatpush2.bf16.msra.mxu0 0
        %2888 = vmatprep.subr.bf16.mxu0 0
        %2889 = vmatpush2.bf16.msra.mxu0 0
        %2890 = vmatprep.subr.bf16.mxu0 0
        %2891 = vmatpush2.bf16.msra.mxu0 0
        %2892 = vmatprep.subr.bf16.mxu0 0
        %2893 = vmatpush2.bf16.msra.mxu0 0
        %2894 = vmatprep.subr.bf16.mxu0 0
        %2895 = vmatpush2.bf16.msra.mxu0 0
        %2896 = vmatprep.mubr.bf16.mxu0 0
        %2897 = vmatmul.mubr.bf16.gmra.mxu0 %v2785
        %v2898 = vpop.f32.mrf.mxu0
        %v2899 = vadd.f32 %v2814, %v2898
        %v2900 = vpop.f32.mrf.mxu0
        %v2901 = vpop.f32.mrf.mxu0
        %v2902 = vadd.f32 %v2814, %v2901
        %v2903 = vpop.f32.mrf.mxu0
        %2904 = vmatprep.mubr.bf16.mxu0 0
        %2905 = vmatmul.mubr.bf16.gmra.mxu0 %v2786
        %v2906 = vpop.f32.mrf.mxu0
        %v2907 = vadd.f32 %v2814, %v2906
        %v2908 = vpop.f32.mrf.mxu0
        %v2909 = vpop.f32.mrf.mxu0
        %v2910 = vadd.f32 %v2814, %v2909
        %v2911 = vpop.f32.mrf.mxu0
        %2912 = vmatprep.mubr.bf16.mxu0 0
        %2913 = vmatmul.mubr.bf16.gmra.mxu0 %v2787
        %v2914 = vpop.f32.mrf.mxu0
        %v2915 = vadd.f32 %v2814, %v2914
        %v2916 = vpop.f32.mrf.mxu0
        %v2917 = vpop.f32.mrf.mxu0
        %v2918 = vadd.f32 %v2814, %v2917
        %v2919 = vpop.f32.mrf.mxu0
        %2920 = vmatprep.mubr.bf16.mxu0 0
        %2921 = vmatmul.mubr.bf16.gmra.mxu0 %v2788
        %v2922 = vpop.f32.mrf.mxu0
        %v2923 = vadd.f32 %v2814, %v2922
        %v2924 = vpop.f32.mrf.mxu0
        %v2925 = vpop.f32.mrf.mxu0
        %v2926 = vadd.f32 %v2814, %v2925
        %v2927 = vpop.f32.mrf.mxu0
        %2928 = vmatprep.mubr.bf16.mxu0 0
        %2929 = vmatmul.mubr.bf16.gmra.mxu0 %v2789
        %v2930 = vpop.f32.mrf.mxu0
        %v2931 = vadd.f32 %v2814, %v2930
        %v2932 = vpop.f32.mrf.mxu0
        %v2933 = vpop.f32.mrf.mxu0
        %v2934 = vadd.f32 %v2814, %v2933
        %v2935 = vpop.f32.mrf.mxu0
        %2936 = vmatprep.mubr.bf16.mxu0 0
        %2937 = vmatmul.mubr.bf16.gmra.mxu0 %v2790
        %v2938 = vpop.f32.mrf.mxu0
        %v2939 = vadd.f32 %v2814, %v2938
        %v2940 = vpop.f32.mrf.mxu0
        %v2941 = vpop.f32.mrf.mxu0
        %v2942 = vadd.f32 %v2814, %v2941
        %v2943 = vpop.f32.mrf.mxu0
        %2944 = vmatprep.mubr.bf16.mxu0 0
        %2945 = vmatmul.mubr.bf16.gmra.mxu0 %v2791
        %v2946 = vpop.f32.mrf.mxu0
        %v2947 = vadd.f32 %v2814, %v2946
        %v2948 = vpop.f32.mrf.mxu0
        %v2949 = vpop.f32.mrf.mxu0
        %v2950 = vadd.f32 %v2814, %v2949
        %v2951 = vpop.f32.mrf.mxu0
        %2952 = vmatprep.mubr.bf16.mxu0 0
        %2953 = vmatmul.mubr.bf16.gmra.mxu0 %v2792
        %v2954 = vpop.f32.mrf.mxu0
        %v2955 = vadd.f32 %v2814, %v2954
        %v2956 = vpop.f32.mrf.mxu0
        %v2957 = vpop.f32.mrf.mxu0
        %v2958 = vadd.f32 %v2814, %v2957
        %v2959 = vpop.f32.mrf.mxu0
        %2960 = vdwg.mxu0
        %v2961 = vpack.c.bf16 %v2902, %v2899
        %v2962 = vpack.c.bf16 %v2910, %v2907
        %v2963 = vpack.c.bf16 %v2918, %v2915
        %v2964 = vpack.c.bf16 %v2926, %v2923
        %v2965 = vpack.c.bf16 %v2934, %v2931
        %v2966 = vpack.c.bf16 %v2942, %v2939
        %v2967 = vpack.c.bf16 %v2950, %v2947
        %v2968 = vpack.c.bf16 %v2958, %v2955
        %v2969 = vld [vmem:[#allocation16] sm:$0xf]
        %v2970 = vld [vmem:[#allocation16 + $0x4] sm:$0xf]
        %v2971 = vld [vmem:[#allocation16 + $0x8] sm:$0xf]
        %v2972 = vld [vmem:[#allocation16 + $0xc] sm:$0xf]
        %v2973 = vld [vmem:[#allocation16 + $0x10] sm:$0xf]
        %v2974 = vld [vmem:[#allocation16 + $0x14] sm:$0xf]
        %v2975 = vld [vmem:[#allocation16 + $0x18] sm:$0xf]
        %v2976 = vld [vmem:[#allocation16 + $0x1c] sm:$0xf]
        %v2977 = vld [vmem:[#allocation16 + $0x20] sm:$0xf]
        %v2978 = vld [vmem:[#allocation16 + $0x24] sm:$0xf]
        %v2979 = vld [vmem:[#allocation16 + $0x28] sm:$0xf]
        %v2980 = vld [vmem:[#allocation16 + $0x2c] sm:$0xf]
        %v2981 = vld [vmem:[#allocation16 + $0x30] sm:$0xf]
        %v2982 = vld [vmem:[#allocation16 + $0x34] sm:$0xf]
        %v2983 = vld [vmem:[#allocation16 + $0x38] sm:$0xf]
        %v2984 = vld [vmem:[#allocation16 + $0x3c] sm:$0xf]
        %v2985 = vld [vmem:[%s14] sm:$0x1]
        %v2987 = vlaneseq
        %v2988 = vshrl.u32 %v2987, 7
        %v2989 = vsub.s32 0, %v2988
        %v2990 = vrot.slane %v2985, %v2989
        %v3008 = vunpack.c.l.b16 %v2969
        %v3009 = vunpack.c.l.b16 %v2970
        %v3010 = vunpack.c.l.b16 %v2971
        %v3011 = vunpack.c.l.b16 %v2972
        %v3012 = vunpack.c.l.b16 %v2973
        %v3013 = vunpack.c.l.b16 %v2974
        %v3014 = vunpack.c.l.b16 %v2975
        %v3015 = vunpack.c.l.b16 %v2976
        %v3016 = vunpack.c.l.b16 %v2977
        %v3017 = vunpack.c.l.b16 %v2978
        %v3018 = vunpack.c.l.b16 %v2979
        %v3019 = vunpack.c.l.b16 %v2980
        %v3020 = vunpack.c.l.b16 %v2981
        %v3021 = vunpack.c.l.b16 %v2982
        %v3022 = vunpack.c.l.b16 %v2983
        %v3023 = vunpack.c.l.b16 %v2984
        %v3024 = vpack.c.b16 %v3009, %v3008
        %v3025 = vpack.c.b16 %v3011, %v3010
        %v3026 = vpack.c.b16 %v3013, %v3012
        %v3027 = vpack.c.b16 %v3015, %v3014
        %v3028 = vpack.c.b16 %v3017, %v3016
        %v3029 = vpack.c.b16 %v3019, %v3018
        %v3030 = vpack.c.b16 %v3021, %v3020
        %v3031 = vpack.c.b16 %v3023, %v3022
        %3040 = vmatprep.subr.bf16.mxu0 0
        %3041 = vmatpush1.bf16.msra.mxu0 %v3031
        %3042 = vmatprep.subr.bf16.mxu0 0
        %3043 = vmatpush1.bf16.msra.mxu0 %v3030
        %3044 = vmatprep.subr.bf16.mxu0 0
        %3045 = vmatpush1.bf16.msra.mxu0 %v3029
        %3046 = vmatprep.subr.bf16.mxu0 0
        %3047 = vmatpush1.bf16.msra.mxu0 %v3028
        %3048 = vmatprep.subr.bf16.mxu0 0
        %3049 = vmatpush1.bf16.msra.mxu0 %v3027
        %3050 = vmatprep.subr.bf16.mxu0 0
        %3051 = vmatpush1.bf16.msra.mxu0 %v3026
        %3052 = vmatprep.subr.bf16.mxu0 0
        %3053 = vmatpush1.bf16.msra.mxu0 %v3025
        %3054 = vmatprep.subr.bf16.mxu0 0
        %3055 = vmatpush1.bf16.msra.mxu0 %v3024
        %3056 = vmatprep.subr.bf16.mxu0 0
        %3057 = vmatpush2.bf16.msra.mxu0 0
        %3058 = vmatprep.subr.bf16.mxu0 0
        %3059 = vmatpush2.bf16.msra.mxu0 0
        %3060 = vmatprep.subr.bf16.mxu0 0
        %3061 = vmatpush2.bf16.msra.mxu0 0
        %3062 = vmatprep.subr.bf16.mxu0 0
        %3063 = vmatpush2.bf16.msra.mxu0 0
        %3064 = vmatprep.subr.bf16.mxu0 0
        %3065 = vmatpush2.bf16.msra.mxu0 0
        %3066 = vmatprep.subr.bf16.mxu0 0
        %3067 = vmatpush2.bf16.msra.mxu0 0
        %3068 = vmatprep.subr.bf16.mxu0 0
        %3069 = vmatpush2.bf16.msra.mxu0 0
        %3070 = vmatprep.subr.bf16.mxu0 0
        %3071 = vmatpush2.bf16.msra.mxu0 0
        %3072 = vmatprep.mubr.bf16.mxu0 0
        %3073 = vmatmul.mubr.bf16.gmra.mxu0 %v2961
        %v3074 = vpop.f32.mrf.mxu0
        %v3075 = vadd.f32 %v2990, %v3074
        %v3076 = vpop.f32.mrf.mxu0
        %v3077 = vpop.f32.mrf.mxu0
        %v3078 = vadd.f32 %v2990, %v3077
        %v3079 = vpop.f32.mrf.mxu0
        %3080 = vmatprep.mubr.bf16.mxu0 0
        %3081 = vmatmul.mubr.bf16.gmra.mxu0 %v2962
        %v3082 = vpop.f32.mrf.mxu0
        %v3083 = vadd.f32 %v2990, %v3082
        %v3084 = vpop.f32.mrf.mxu0
        %v3085 = vpop.f32.mrf.mxu0
        %v3086 = vadd.f32 %v2990, %v3085
        %v3087 = vpop.f32.mrf.mxu0
        %3088 = vmatprep.mubr.bf16.mxu0 0
        %3089 = vmatmul.mubr.bf16.gmra.mxu0 %v2963
        %v3090 = vpop.f32.mrf.mxu0
        %v3091 = vadd.f32 %v2990, %v3090
        %v3092 = vpop.f32.mrf.mxu0
        %v3093 = vpop.f32.mrf.mxu0
        %v3094 = vadd.f32 %v2990, %v3093
        %v3095 = vpop.f32.mrf.mxu0
        %3096 = vmatprep.mubr.bf16.mxu0 0
        %3097 = vmatmul.mubr.bf16.gmra.mxu0 %v2964
        %v3098 = vpop.f32.mrf.mxu0
        %v3099 = vadd.f32 %v2990, %v3098
        %v3100 = vpop.f32.mrf.mxu0
        %v3101 = vpop.f32.mrf.mxu0
        %v3102 = vadd.f32 %v2990, %v3101
        %v3103 = vpop.f32.mrf.mxu0
        %3104 = vmatprep.mubr.bf16.mxu0 0
        %3105 = vmatmul.mubr.bf16.gmra.mxu0 %v2965
        %v3106 = vpop.f32.mrf.mxu0
        %v3107 = vadd.f32 %v2990, %v3106
        %v3108 = vpop.f32.mrf.mxu0
        %v3109 = vpop.f32.mrf.mxu0
        %v3110 = vadd.f32 %v2990, %v3109
        %v3111 = vpop.f32.mrf.mxu0
        %3112 = vmatprep.mubr.bf16.mxu0 0
        %3113 = vmatmul.mubr.bf16.gmra.mxu0 %v2966
        %v3114 = vpop.f32.mrf.mxu0
        %v3115 = vadd.f32 %v2990, %v3114
        %v3116 = vpop.f32.mrf.mxu0
        %v3117 = vpop.f32.mrf.mxu0
        %v3118 = vadd.f32 %v2990, %v3117
        %v3119 = vpop.f32.mrf.mxu0
        %3120 = vmatprep.mubr.bf16.mxu0 0
        %3121 = vmatmul.mubr.bf16.gmra.mxu0 %v2967
        %v3122 = vpop.f32.mrf.mxu0
        %v3123 = vadd.f32 %v2990, %v3122
        %v3124 = vpop.f32.mrf.mxu0
        %v3125 = vpop.f32.mrf.mxu0
        %v3126 = vadd.f32 %v2990, %v3125
        %v3127 = vpop.f32.mrf.mxu0
        %3128 = vmatprep.mubr.bf16.mxu0 0
        %3129 = vmatmul.mubr.bf16.gmra.mxu0 %v2968
        %v3130 = vpop.f32.mrf.mxu0
        %v3131 = vadd.f32 %v2990, %v3130
        %v3132 = vpop.f32.mrf.mxu0
        %v3133 = vpop.f32.mrf.mxu0
        %v3134 = vadd.f32 %v2990, %v3133
        %v3135 = vpop.f32.mrf.mxu0
        %3136 = vdwg.mxu0
        %vm3137 = vcmp.gt.f32.partialorder %v3075, 0.0
        %vm3138 = vcmp.gt.f32.partialorder %v3078, 0.0
        %vm3139 = vcmp.gt.f32.partialorder %v3083, 0.0
        %vm3140 = vcmp.gt.f32.partialorder %v3086, 0.0
        %vm3141 = vcmp.gt.f32.partialorder %v3091, 0.0
        %vm3142 = vcmp.gt.f32.partialorder %v3094, 0.0
        %vm3143 = vcmp.gt.f32.partialorder %v3099, 0.0
        %vm3144 = vcmp.gt.f32.partialorder %v3102, 0.0
        %vm3145 = vcmp.gt.f32.partialorder %v3107, 0.0
        %vm3146 = vcmp.gt.f32.partialorder %v3110, 0.0
        %vm3147 = vcmp.gt.f32.partialorder %v3115, 0.0
        %vm3148 = vcmp.gt.f32.partialorder %v3118, 0.0
        %vm3149 = vcmp.gt.f32.partialorder %v3123, 0.0
        %vm3150 = vcmp.gt.f32.partialorder %v3126, 0.0
        %vm3151 = vcmp.gt.f32.partialorder %v3131, 0.0
        %vm3152 = vcmp.gt.f32.partialorder %v3134, 0.0
        %v3153 = vmin.f32 %v3075, 0.0
        %v3154 = vmin.f32 %v3078, 0.0
        %v3155 = vmin.f32 %v3083, 0.0
        %v3156 = vmin.f32 %v3086, 0.0
        %v3157 = vmin.f32 %v3091, 0.0
        %v3158 = vmin.f32 %v3094, 0.0
        %v3159 = vmin.f32 %v3099, 0.0
        %v3160 = vmin.f32 %v3102, 0.0
        %v3161 = vmin.f32 %v3107, 0.0
        %v3162 = vmin.f32 %v3110, 0.0
        %v3163 = vmin.f32 %v3115, 0.0
        %v3164 = vmin.f32 %v3118, 0.0
        %v3165 = vmin.f32 %v3123, 0.0
        %v3166 = vmin.f32 %v3126, 0.0
        %v3167 = vmin.f32 %v3131, 0.0
        %v3168 = vmin.f32 %v3134, 0.0
        %v3169 = vmul.f32 %v3153, 1.442695
        %v3170 = vpow.pop %v3169
        %v3171 = vmul.f32 %v3154, 1.442695
        %v3172 = vpow.pop %v3171
        %v3173 = vmul.f32 %v3155, 1.442695
        %v3174 = vpow.pop %v3173
        %v3175 = vmul.f32 %v3156, 1.442695
        %v3176 = vpow.pop %v3175
        %v3177 = vmul.f32 %v3157, 1.442695
        %v3178 = vpow.pop %v3177
        %v3179 = vmul.f32 %v3158, 1.442695
        %v3180 = vpow.pop %v3179
        %v3181 = vmul.f32 %v3159, 1.442695
        %v3182 = vpow.pop %v3181
        %v3183 = vmul.f32 %v3160, 1.442695
        %v3184 = vpow.pop %v3183
        %v3185 = vmul.f32 %v3161, 1.442695
        %v3186 = vpow.pop %v3185
        %v3187 = vmul.f32 %v3162, 1.442695
        %v3188 = vpow.pop %v3187
        %v3189 = vmul.f32 %v3163, 1.442695
        %v3190 = vpow.pop %v3189
        %v3191 = vmul.f32 %v3164, 1.442695
        %v3192 = vpow.pop %v3191
        %v3193 = vmul.f32 %v3165, 1.442695
        %v3194 = vpow.pop %v3193
        %v3195 = vmul.f32 %v3166, 1.442695
        %v3196 = vpow.pop %v3195
        %v3197 = vmul.f32 %v3167, 1.442695
        %v3198 = vpow.pop %v3197
        %v3199 = vmul.f32 %v3168, 1.442695
        %v3200 = vpow.pop %v3199
        %v3201 = vsub.f32 %v3170, 1.0
        %v3202 = vsub.f32 %v3172, 1.0
        %v3203 = vsub.f32 %v3174, 1.0
        %v3204 = vsub.f32 %v3176, 1.0
        %v3205 = vsub.f32 %v3178, 1.0
        %v3206 = vsub.f32 %v3180, 1.0
        %v3207 = vsub.f32 %v3182, 1.0
        %v3208 = vsub.f32 %v3184, 1.0
        %v3209 = vsub.f32 %v3186, 1.0
        %v3210 = vsub.f32 %v3188, 1.0
        %v3211 = vsub.f32 %v3190, 1.0
        %v3212 = vsub.f32 %v3192, 1.0
        %v3213 = vsub.f32 %v3194, 1.0
        %v3214 = vsub.f32 %v3196, 1.0
        %v3215 = vsub.f32 %v3198, 1.0
        %v3216 = vsub.f32 %v3200, 1.0
        %v3217 = vsel %vm3137, %v3075, %v3201
        %v3218 = vsel %vm3138, %v3078, %v3202
        %v3219 = vsel %vm3139, %v3083, %v3203
        %v3220 = vsel %vm3140, %v3086, %v3204
        %v3221 = vsel %vm3141, %v3091, %v3205
        %v3222 = vsel %vm3142, %v3094, %v3206
        %v3223 = vsel %vm3143, %v3099, %v3207
        %v3224 = vsel %vm3144, %v3102, %v3208
        %v3225 = vsel %vm3145, %v3107, %v3209
        %v3226 = vsel %vm3146, %v3110, %v3210
        %v3227 = vsel %vm3147, %v3115, %v3211
        %v3228 = vsel %vm3148, %v3118, %v3212
        %v3229 = vsel %vm3149, %v3123, %v3213
        %v3230 = vsel %vm3150, %v3126, %v3214
        %v3231 = vsel %vm3151, %v3131, %v3215
        %v3232 = vsel %vm3152, %v3134, %v3216
        %v3233 = vpack.c.bf16 %v3218, %v3217
        %v3234 = vpack.c.bf16 %v3220, %v3219
        %v3235 = vpack.c.bf16 %v3222, %v3221
        %v3236 = vpack.c.bf16 %v3224, %v3223
        %v3237 = vpack.c.bf16 %v3226, %v3225
        %v3238 = vpack.c.bf16 %v3228, %v3227
        %v3239 = vpack.c.bf16 %v3230, %v3229
        %v3240 = vpack.c.bf16 %v3232, %v3231
        %v3241 = vld [vmem:[#allocation17] sm:$0xff]
        %v3242 = vld [vmem:[#allocation17 + $0x8] sm:$0xff]
        %v3243 = vld [vmem:[#allocation17 + $0x10] sm:$0xff]
        %v3244 = vld [vmem:[#allocation17 + $0x18] sm:$0xff]
        %v3245 = vld [vmem:[#allocation17 + $0x20] sm:$0xff]
        %v3246 = vld [vmem:[#allocation17 + $0x28] sm:$0xff]
        %v3247 = vld [vmem:[#allocation17 + $0x30] sm:$0xff]
        %v3248 = vld [vmem:[#allocation17 + $0x38] sm:$0xff]
        %v3249 = vld [vmem:[#allocation17 + $0x40] sm:$0xff]
        %v3250 = vld [vmem:[#allocation17 + $0x48] sm:$0xff]
        %v3251 = vld [vmem:[#allocation17 + $0x50] sm:$0xff]
        %v3252 = vld [vmem:[#allocation17 + $0x58] sm:$0xff]
        %v3253 = vld [vmem:[#allocation17 + $0x60] sm:$0xff]
        %v3254 = vld [vmem:[#allocation17 + $0x68] sm:$0xff]
        %v3255 = vld [vmem:[#allocation17 + $0x70] sm:$0xff]
        %v3256 = vld [vmem:[#allocation17 + $0x78] sm:$0xff]
        %v3257 = vld [vmem:[#allocation17 + $0x80] sm:$0xff]
        %v3258 = vld [vmem:[#allocation17 + $0x88] sm:$0xff]
        %v3259 = vld [vmem:[#allocation17 + $0x90] sm:$0xff]
        %v3260 = vld [vmem:[#allocation17 + $0x98] sm:$0xff]
        %v3261 = vld [vmem:[#allocation17 + $0xa0] sm:$0xff]
        %v3262 = vld [vmem:[#allocation17 + $0xa8] sm:$0xff]
        %v3263 = vld [vmem:[#allocation17 + $0xb0] sm:$0xff]
        %v3264 = vld [vmem:[#allocation17 + $0xb8] sm:$0xff]
        %v3265 = vld [vmem:[#allocation17 + $0xc0] sm:$0xff]
        %v3266 = vld [vmem:[#allocation17 + $0xc8] sm:$0xff]
        %v3267 = vld [vmem:[#allocation17 + $0xd0] sm:$0xff]
        %v3268 = vld [vmem:[#allocation17 + $0xd8] sm:$0xff]
        %v3269 = vld [vmem:[#allocation17 + $0xe0] sm:$0xff]
        %v3270 = vld [vmem:[#allocation17 + $0xe8] sm:$0xff]
        %v3271 = vld [vmem:[#allocation17 + $0xf0] sm:$0xff]
        %v3272 = vld [vmem:[#allocation17 + $0xf8] sm:$0xff]
        %v3273 = vld [vmem:[%s16] sm:$0xf]
        %v3275 = vlaneseq
        %v3276 = vshrl.u32 %v3275, 7
        %v3277 = vsub.s32 0, %v3276
        %v3278 = vrot.slane %v3273, %v3277
        %v3279 = vlaneseq
        %v3280 = vshrl.u32 %v3279, 7
        %v3281 = vsub.s32 1, %v3280
        %v3282 = vrot.slane %v3273, %v3281
        %v3283 = vlaneseq
        %v3284 = vshrl.u32 %v3283, 7
        %v3285 = vsub.s32 2, %v3284
        %v3286 = vrot.slane %v3273, %v3285
        %v3287 = vlaneseq
        %v3288 = vshrl.u32 %v3287, 7
        %v3289 = vsub.s32 3, %v3288
        %v3290 = vrot.slane %v3273, %v3289
        %v3327 = vunpack.c.l.b16 %v3241
        %v3328 = vunpack.c.h.b16 %v3241
        %v3329 = vunpack.c.l.b16 %v3242
        %v3330 = vunpack.c.h.b16 %v3242
        %v3331 = vunpack.c.l.b16 %v3243
        %v3332 = vunpack.c.h.b16 %v3243
        %v3333 = vunpack.c.l.b16 %v3244
        %v3334 = vunpack.c.h.b16 %v3244
        %v3335 = vunpack.c.l.b16 %v3245
        %v3336 = vunpack.c.h.b16 %v3245
        %v3337 = vunpack.c.l.b16 %v3246
        %v3338 = vunpack.c.h.b16 %v3246
        %v3339 = vunpack.c.l.b16 %v3247
        %v3340 = vunpack.c.h.b16 %v3247
        %v3341 = vunpack.c.l.b16 %v3248
        %v3342 = vunpack.c.h.b16 %v3248
        %v3343 = vunpack.c.l.b16 %v3249
        %v3344 = vunpack.c.h.b16 %v3249
        %v3345 = vunpack.c.l.b16 %v3250
        %v3346 = vunpack.c.h.b16 %v3250
        %v3347 = vunpack.c.l.b16 %v3251
        %v3348 = vunpack.c.h.b16 %v3251
        %v3349 = vunpack.c.l.b16 %v3252
        %v3350 = vunpack.c.h.b16 %v3252
        %v3351 = vunpack.c.l.b16 %v3253
        %v3352 = vunpack.c.h.b16 %v3253
        %v3353 = vunpack.c.l.b16 %v3254
        %v3354 = vunpack.c.h.b16 %v3254
        %v3355 = vunpack.c.l.b16 %v3255
        %v3356 = vunpack.c.h.b16 %v3255
        %v3357 = vunpack.c.l.b16 %v3256
        %v3358 = vunpack.c.h.b16 %v3256
        %v3359 = vunpack.c.l.b16 %v3257
        %v3360 = vunpack.c.h.b16 %v3257
        %v3361 = vunpack.c.l.b16 %v3258
        %v3362 = vunpack.c.h.b16 %v3258
        %v3363 = vunpack.c.l.b16 %v3259
        %v3364 = vunpack.c.h.b16 %v3259
        %v3365 = vunpack.c.l.b16 %v3260
        %v3366 = vunpack.c.h.b16 %v3260
        %v3367 = vunpack.c.l.b16 %v3261
        %v3368 = vunpack.c.h.b16 %v3261
        %v3369 = vunpack.c.l.b16 %v3262
        %v3370 = vunpack.c.h.b16 %v3262
        %v3371 = vunpack.c.l.b16 %v3263
        %v3372 = vunpack.c.h.b16 %v3263
        %v3373 = vunpack.c.l.b16 %v3264
        %v3374 = vunpack.c.h.b16 %v3264
        %v3375 = vunpack.c.l.b16 %v3265
        %v3376 = vunpack.c.h.b16 %v3265
        %v3377 = vunpack.c.l.b16 %v3266
        %v3378 = vunpack.c.h.b16 %v3266
        %v3379 = vunpack.c.l.b16 %v3267
        %v3380 = vunpack.c.h.b16 %v3267
        %v3381 = vunpack.c.l.b16 %v3268
        %v3382 = vunpack.c.h.b16 %v3268
        %v3383 = vunpack.c.l.b16 %v3269
        %v3384 = vunpack.c.h.b16 %v3269
        %v3385 = vunpack.c.l.b16 %v3270
        %v3386 = vunpack.c.h.b16 %v3270
        %v3387 = vunpack.c.l.b16 %v3271
        %v3388 = vunpack.c.h.b16 %v3271
        %v3389 = vunpack.c.l.b16 %v3272
        %v3390 = vunpack.c.h.b16 %v3272
        %v3391 = vpack.c.b16 %v3331, %v3327
        %v3392 = vpack.c.b16 %v3332, %v3328
        %v3393 = vpack.c.b16 %v3333, %v3329
        %v3394 = vpack.c.b16 %v3334, %v3330
        %v3395 = vpack.c.b16 %v3339, %v3335
        %v3396 = vpack.c.b16 %v3340, %v3336
        %v3397 = vpack.c.b16 %v3341, %v3337
        %v3398 = vpack.c.b16 %v3342, %v3338
        %v3399 = vpack.c.b16 %v3347, %v3343
        %v3400 = vpack.c.b16 %v3348, %v3344
        %v3401 = vpack.c.b16 %v3349, %v3345
        %v3402 = vpack.c.b16 %v3350, %v3346
        %v3403 = vpack.c.b16 %v3355, %v3351
        %v3404 = vpack.c.b16 %v3356, %v3352
        %v3405 = vpack.c.b16 %v3357, %v3353
        %v3406 = vpack.c.b16 %v3358, %v3354
        %v3407 = vpack.c.b16 %v3363, %v3359
        %v3408 = vpack.c.b16 %v3364, %v3360
        %v3409 = vpack.c.b16 %v3365, %v3361
        %v3410 = vpack.c.b16 %v3366, %v3362
        %v3411 = vpack.c.b16 %v3371, %v3367
        %v3412 = vpack.c.b16 %v3372, %v3368
        %v3413 = vpack.c.b16 %v3373, %v3369
        %v3414 = vpack.c.b16 %v3374, %v3370
        %v3415 = vpack.c.b16 %v3379, %v3375
        %v3416 = vpack.c.b16 %v3380, %v3376
        %v3417 = vpack.c.b16 %v3381, %v3377
        %v3418 = vpack.c.b16 %v3382, %v3378
        %v3419 = vpack.c.b16 %v3387, %v3383
        %v3420 = vpack.c.b16 %v3388, %v3384
        %v3421 = vpack.c.b16 %v3389, %v3385
        %v3422 = vpack.c.b16 %v3390, %v3386
        %3455 = vmatprep.subr.bf16.mxu0 %v3420
        %3456 = vmatpush1.bf16.msra.mxu0 %v3419
        %3457 = vmatprep.subr.bf16.mxu0 %v3416
        %3458 = vmatpush1.bf16.msra.mxu0 %v3415
        %3459 = vmatprep.subr.bf16.mxu0 %v3412
        %3460 = vmatpush1.bf16.msra.mxu0 %v3411
        %3461 = vmatprep.subr.bf16.mxu0 %v3408
        %3462 = vmatpush1.bf16.msra.mxu0 %v3407
        %3463 = vmatprep.subr.bf16.mxu0 %v3404
        %3464 = vmatpush1.bf16.msra.mxu0 %v3403
        %3465 = vmatprep.subr.bf16.mxu0 %v3400
        %3466 = vmatpush1.bf16.msra.mxu0 %v3399
        %3467 = vmatprep.subr.bf16.mxu0 %v3396
        %3468 = vmatpush1.bf16.msra.mxu0 %v3395
        %3469 = vmatprep.subr.bf16.mxu0 %v3392
        %3470 = vmatpush1.bf16.msra.mxu0 %v3391
        %3471 = vmatprep.subr.bf16.mxu0 0
        %3472 = vmatpush2.bf16.msra.mxu0 0
        %3473 = vmatprep.subr.bf16.mxu0 0
        %3474 = vmatpush2.bf16.msra.mxu0 0
        %3475 = vmatprep.subr.bf16.mxu0 0
        %3476 = vmatpush2.bf16.msra.mxu0 0
        %3477 = vmatprep.subr.bf16.mxu0 0
        %3478 = vmatpush2.bf16.msra.mxu0 0
        %3479 = vmatprep.subr.bf16.mxu0 0
        %3480 = vmatpush2.bf16.msra.mxu0 0
        %3481 = vmatprep.subr.bf16.mxu0 0
        %3482 = vmatpush2.bf16.msra.mxu0 0
        %3483 = vmatprep.subr.bf16.mxu0 0
        %3484 = vmatpush2.bf16.msra.mxu0 0
        %3485 = vmatprep.subr.bf16.mxu0 0
        %3486 = vmatpush2.bf16.msra.mxu0 0
        %3487 = vmatprep.mubr.bf16.mxu0 0
        %3488 = vmatmul.mubr.bf16.gmra.mxu0 %v3233
        %v3489 = vpop.f32.mrf.mxu0
        %v3490 = vadd.f32 %v3278, %v3489
        %v3491 = vpop.f32.mrf.mxu0
        %v3492 = vadd.f32 %v3282, %v3491
        %v3493 = vpop.f32.mrf.mxu0
        %v3494 = vadd.f32 %v3278, %v3493
        %v3495 = vpop.f32.mrf.mxu0
        %v3496 = vadd.f32 %v3282, %v3495
        %3497 = vmatprep.mubr.bf16.mxu0 0
        %3498 = vmatmul.mubr.bf16.gmra.mxu0 %v3234
        %v3499 = vpop.f32.mrf.mxu0
        %v3500 = vadd.f32 %v3278, %v3499
        %v3501 = vpop.f32.mrf.mxu0
        %v3502 = vadd.f32 %v3282, %v3501
        %v3503 = vpop.f32.mrf.mxu0
        %v3504 = vadd.f32 %v3278, %v3503
        %v3505 = vpop.f32.mrf.mxu0
        %v3506 = vadd.f32 %v3282, %v3505
        %3507 = vmatprep.mubr.bf16.mxu0 0
        %3508 = vmatmul.mubr.bf16.gmra.mxu0 %v3235
        %v3509 = vpop.f32.mrf.mxu0
        %v3510 = vadd.f32 %v3278, %v3509
        %v3511 = vpop.f32.mrf.mxu0
        %v3512 = vadd.f32 %v3282, %v3511
        %v3513 = vpop.f32.mrf.mxu0
        %v3514 = vadd.f32 %v3278, %v3513
        %v3515 = vpop.f32.mrf.mxu0
        %v3516 = vadd.f32 %v3282, %v3515
        %3517 = vmatprep.mubr.bf16.mxu0 0
        %3518 = vmatmul.mubr.bf16.gmra.mxu0 %v3236
        %v3519 = vpop.f32.mrf.mxu0
        %v3520 = vadd.f32 %v3278, %v3519
        %v3521 = vpop.f32.mrf.mxu0
        %v3522 = vadd.f32 %v3282, %v3521
        %v3523 = vpop.f32.mrf.mxu0
        %v3524 = vadd.f32 %v3278, %v3523
        %v3525 = vpop.f32.mrf.mxu0
        %v3526 = vadd.f32 %v3282, %v3525
        %3527 = vmatprep.mubr.bf16.mxu0 0
        %3528 = vmatmul.mubr.bf16.gmra.mxu0 %v3237
        %v3529 = vpop.f32.mrf.mxu0
        %v3530 = vadd.f32 %v3278, %v3529
        %v3531 = vpop.f32.mrf.mxu0
        %v3532 = vadd.f32 %v3282, %v3531
        %v3533 = vpop.f32.mrf.mxu0
        %v3534 = vadd.f32 %v3278, %v3533
        %v3535 = vpop.f32.mrf.mxu0
        %v3536 = vadd.f32 %v3282, %v3535
        %3537 = vmatprep.mubr.bf16.mxu0 0
        %3538 = vmatmul.mubr.bf16.gmra.mxu0 %v3238
        %v3539 = vpop.f32.mrf.mxu0
        %v3540 = vadd.f32 %v3278, %v3539
        %v3541 = vpop.f32.mrf.mxu0
        %v3542 = vadd.f32 %v3282, %v3541
        %v3543 = vpop.f32.mrf.mxu0
        %v3544 = vadd.f32 %v3278, %v3543
        %v3545 = vpop.f32.mrf.mxu0
        %v3546 = vadd.f32 %v3282, %v3545
        %3547 = vmatprep.mubr.bf16.mxu0 0
        %3548 = vmatmul.mubr.bf16.gmra.mxu0 %v3239
        %v3549 = vpop.f32.mrf.mxu0
        %v3550 = vadd.f32 %v3278, %v3549
        %v3551 = vpop.f32.mrf.mxu0
        %v3552 = vadd.f32 %v3282, %v3551
        %v3553 = vpop.f32.mrf.mxu0
        %v3554 = vadd.f32 %v3278, %v3553
        %v3555 = vpop.f32.mrf.mxu0
        %v3556 = vadd.f32 %v3282, %v3555
        %3557 = vmatprep.mubr.bf16.mxu0 0
        %3558 = vmatmul.mubr.bf16.gmra.mxu0 %v3240
        %v3559 = vpop.f32.mrf.mxu0
        %v3560 = vadd.f32 %v3278, %v3559
        %v3561 = vpop.f32.mrf.mxu0
        %v3562 = vadd.f32 %v3282, %v3561
        %v3563 = vpop.f32.mrf.mxu0
        %v3564 = vadd.f32 %v3278, %v3563
        %v3565 = vpop.f32.mrf.mxu0
        %v3566 = vadd.f32 %v3282, %v3565
        %3567 = vdwg.mxu0
        %3568 = vmatprep.subr.bf16.mxu0 %v3422
        %3569 = vmatpush1.bf16.msra.mxu0 %v3421
        %3570 = vmatprep.subr.bf16.mxu0 %v3418
        %3571 = vmatpush1.bf16.msra.mxu0 %v3417
        %3572 = vmatprep.subr.bf16.mxu0 %v3414
        %3573 = vmatpush1.bf16.msra.mxu0 %v3413
        %3574 = vmatprep.subr.bf16.mxu0 %v3410
        %3575 = vmatpush1.bf16.msra.mxu0 %v3409
        %3576 = vmatprep.subr.bf16.mxu0 %v3406
        %3577 = vmatpush1.bf16.msra.mxu0 %v3405
        %3578 = vmatprep.subr.bf16.mxu0 %v3402
        %3579 = vmatpush1.bf16.msra.mxu0 %v3401
        %3580 = vmatprep.subr.bf16.mxu0 %v3398
        %3581 = vmatpush1.bf16.msra.mxu0 %v3397
        %3582 = vmatprep.subr.bf16.mxu0 %v3394
        %3583 = vmatpush1.bf16.msra.mxu0 %v3393
        %3584 = vmatprep.subr.bf16.mxu0 0
        %3585 = vmatpush2.bf16.msra.mxu0 0
        %3586 = vmatprep.subr.bf16.mxu0 0
        %3587 = vmatpush2.bf16.msra.mxu0 0
        %3588 = vmatprep.subr.bf16.mxu0 0
        %3589 = vmatpush2.bf16.msra.mxu0 0
        %3590 = vmatprep.subr.bf16.mxu0 0
        %3591 = vmatpush2.bf16.msra.mxu0 0
        %3592 = vmatprep.subr.bf16.mxu0 0
        %3593 = vmatpush2.bf16.msra.mxu0 0
        %3594 = vmatprep.subr.bf16.mxu0 0
        %3595 = vmatpush2.bf16.msra.mxu0 0
        %3596 = vmatprep.subr.bf16.mxu0 0
        %3597 = vmatpush2.bf16.msra.mxu0 0
        %3598 = vmatprep.subr.bf16.mxu0 0
        %3599 = vmatpush2.bf16.msra.mxu0 0
        %3600 = vmatprep.mubr.bf16.mxu0 0
        %3601 = vmatmul.mubr.bf16.gmra.mxu0 %v3233
        %v3602 = vpop.f32.mrf.mxu0
        %v3603 = vadd.f32 %v3286, %v3602
        %v3604 = vpop.f32.mrf.mxu0
        %v3605 = vadd.f32 %v3290, %v3604
        %v3606 = vpop.f32.mrf.mxu0
        %v3607 = vadd.f32 %v3286, %v3606
        %v3608 = vpop.f32.mrf.mxu0
        %v3609 = vadd.f32 %v3290, %v3608
        %3610 = vmatprep.mubr.bf16.mxu0 0
        %3611 = vmatmul.mubr.bf16.gmra.mxu0 %v3234
        %v3612 = vpop.f32.mrf.mxu0
        %v3613 = vadd.f32 %v3286, %v3612
        %v3614 = vpop.f32.mrf.mxu0
        %v3615 = vadd.f32 %v3290, %v3614
        %v3616 = vpop.f32.mrf.mxu0
        %v3617 = vadd.f32 %v3286, %v3616
        %v3618 = vpop.f32.mrf.mxu0
        %v3619 = vadd.f32 %v3290, %v3618
        %3620 = vmatprep.mubr.bf16.mxu0 0
        %3621 = vmatmul.mubr.bf16.gmra.mxu0 %v3235
        %v3622 = vpop.f32.mrf.mxu0
        %v3623 = vadd.f32 %v3286, %v3622
        %v3624 = vpop.f32.mrf.mxu0
        %v3625 = vadd.f32 %v3290, %v3624
        %v3626 = vpop.f32.mrf.mxu0
        %v3627 = vadd.f32 %v3286, %v3626
        %v3628 = vpop.f32.mrf.mxu0
        %v3629 = vadd.f32 %v3290, %v3628
        %3630 = vmatprep.mubr.bf16.mxu0 0
        %3631 = vmatmul.mubr.bf16.gmra.mxu0 %v3236
        %v3632 = vpop.f32.mrf.mxu0
        %v3633 = vadd.f32 %v3286, %v3632
        %v3634 = vpop.f32.mrf.mxu0
        %v3635 = vadd.f32 %v3290, %v3634
        %v3636 = vpop.f32.mrf.mxu0
        %v3637 = vadd.f32 %v3286, %v3636
        %v3638 = vpop.f32.mrf.mxu0
        %v3639 = vadd.f32 %v3290, %v3638
        %3640 = vmatprep.mubr.bf16.mxu0 0
        %3641 = vmatmul.mubr.bf16.gmra.mxu0 %v3237
        %v3642 = vpop.f32.mrf.mxu0
        %v3643 = vadd.f32 %v3286, %v3642
        %v3644 = vpop.f32.mrf.mxu0
        %v3645 = vadd.f32 %v3290, %v3644
        %v3646 = vpop.f32.mrf.mxu0
        %v3647 = vadd.f32 %v3286, %v3646
        %v3648 = vpop.f32.mrf.mxu0
        %v3649 = vadd.f32 %v3290, %v3648
        %3650 = vmatprep.mubr.bf16.mxu0 0
        %3651 = vmatmul.mubr.bf16.gmra.mxu0 %v3238
        %v3652 = vpop.f32.mrf.mxu0
        %v3653 = vadd.f32 %v3286, %v3652
        %v3654 = vpop.f32.mrf.mxu0
        %v3655 = vadd.f32 %v3290, %v3654
        %v3656 = vpop.f32.mrf.mxu0
        %v3657 = vadd.f32 %v3286, %v3656
        %v3658 = vpop.f32.mrf.mxu0
        %v3659 = vadd.f32 %v3290, %v3658
        %3660 = vmatprep.mubr.bf16.mxu0 0
        %3661 = vmatmul.mubr.bf16.gmra.mxu0 %v3239
        %v3662 = vpop.f32.mrf.mxu0
        %v3663 = vadd.f32 %v3286, %v3662
        %v3664 = vpop.f32.mrf.mxu0
        %v3665 = vadd.f32 %v3290, %v3664
        %v3666 = vpop.f32.mrf.mxu0
        %v3667 = vadd.f32 %v3286, %v3666
        %v3668 = vpop.f32.mrf.mxu0
        %v3669 = vadd.f32 %v3290, %v3668
        %3670 = vmatprep.mubr.bf16.mxu0 0
        %3671 = vmatmul.mubr.bf16.gmra.mxu0 %v3240
        %v3672 = vpop.f32.mrf.mxu0
        %v3673 = vadd.f32 %v3286, %v3672
        %v3674 = vpop.f32.mrf.mxu0
        %v3675 = vadd.f32 %v3290, %v3674
        %v3676 = vpop.f32.mrf.mxu0
        %v3677 = vadd.f32 %v3286, %v3676
        %v3678 = vpop.f32.mrf.mxu0
        %v3679 = vadd.f32 %v3290, %v3678
        %3680 = vdwg.mxu0
        %vm3681 = vcmp.gt.f32.partialorder %v3490, 0.0
        %vm3682 = vcmp.gt.f32.partialorder %v3492, 0.0
        %vm3683 = vcmp.gt.f32.partialorder %v3603, 0.0
        %vm3684 = vcmp.gt.f32.partialorder %v3605, 0.0
        %vm3685 = vcmp.gt.f32.partialorder %v3494, 0.0
        %vm3686 = vcmp.gt.f32.partialorder %v3496, 0.0
        %vm3687 = vcmp.gt.f32.partialorder %v3607, 0.0
        %vm3688 = vcmp.gt.f32.partialorder %v3609, 0.0
        %vm3689 = vcmp.gt.f32.partialorder %v3500, 0.0
        %vm3690 = vcmp.gt.f32.partialorder %v3502, 0.0
        %vm3691 = vcmp.gt.f32.partialorder %v3613, 0.0
        %vm3692 = vcmp.gt.f32.partialorder %v3615, 0.0
        %vm3693 = vcmp.gt.f32.partialorder %v3504, 0.0
        %vm3694 = vcmp.gt.f32.partialorder %v3506, 0.0
        %vm3695 = vcmp.gt.f32.partialorder %v3617, 0.0
        %vm3696 = vcmp.gt.f32.partialorder %v3619, 0.0
        %vm3697 = vcmp.gt.f32.partialorder %v3510, 0.0
        %vm3698 = vcmp.gt.f32.partialorder %v3512, 0.0
        %vm3699 = vcmp.gt.f32.partialorder %v3623, 0.0
        %vm3700 = vcmp.gt.f32.partialorder %v3625, 0.0
        %vm3701 = vcmp.gt.f32.partialorder %v3514, 0.0
        %vm3702 = vcmp.gt.f32.partialorder %v3516, 0.0
        %vm3703 = vcmp.gt.f32.partialorder %v3627, 0.0
        %vm3704 = vcmp.gt.f32.partialorder %v3629, 0.0
        %vm3705 = vcmp.gt.f32.partialorder %v3520, 0.0
        %vm3706 = vcmp.gt.f32.partialorder %v3522, 0.0
        %vm3707 = vcmp.gt.f32.partialorder %v3633, 0.0
        %vm3708 = vcmp.gt.f32.partialorder %v3635, 0.0
        %vm3709 = vcmp.gt.f32.partialorder %v3524, 0.0
        %vm3710 = vcmp.gt.f32.partialorder %v3526, 0.0
        %vm3711 = vcmp.gt.f32.partialorder %v3637, 0.0
        %vm3712 = vcmp.gt.f32.partialorder %v3639, 0.0
        %vm3713 = vcmp.gt.f32.partialorder %v3530, 0.0
        %vm3714 = vcmp.gt.f32.partialorder %v3532, 0.0
        %vm3715 = vcmp.gt.f32.partialorder %v3643, 0.0
        %vm3716 = vcmp.gt.f32.partialorder %v3645, 0.0
        %vm3717 = vcmp.gt.f32.partialorder %v3534, 0.0
        %vm3718 = vcmp.gt.f32.partialorder %v3536, 0.0
        %vm3719 = vcmp.gt.f32.partialorder %v3647, 0.0
        %vm3720 = vcmp.gt.f32.partialorder %v3649, 0.0
        %vm3721 = vcmp.gt.f32.partialorder %v3540, 0.0
        %vm3722 = vcmp.gt.f32.partialorder %v3542, 0.0
        %vm3723 = vcmp.gt.f32.partialorder %v3653, 0.0
        %vm3724 = vcmp.gt.f32.partialorder %v3655, 0.0
        %vm3725 = vcmp.gt.f32.partialorder %v3544, 0.0
        %vm3726 = vcmp.gt.f32.partialorder %v3546, 0.0
        %vm3727 = vcmp.gt.f32.partialorder %v3657, 0.0
        %vm3728 = vcmp.gt.f32.partialorder %v3659, 0.0
        %vm3729 = vcmp.gt.f32.partialorder %v3550, 0.0
        %vm3730 = vcmp.gt.f32.partialorder %v3552, 0.0
        %vm3731 = vcmp.gt.f32.partialorder %v3663, 0.0
        %vm3732 = vcmp.gt.f32.partialorder %v3665, 0.0
        %vm3733 = vcmp.gt.f32.partialorder %v3554, 0.0
        %vm3734 = vcmp.gt.f32.partialorder %v3556, 0.0
        %vm3735 = vcmp.gt.f32.partialorder %v3667, 0.0
        %vm3736 = vcmp.gt.f32.partialorder %v3669, 0.0
        %vm3737 = vcmp.gt.f32.partialorder %v3560, 0.0
        %vm3738 = vcmp.gt.f32.partialorder %v3562, 0.0
        %vm3739 = vcmp.gt.f32.partialorder %v3673, 0.0
        %vm3740 = vcmp.gt.f32.partialorder %v3675, 0.0
        %vm3741 = vcmp.gt.f32.partialorder %v3564, 0.0
        %vm3742 = vcmp.gt.f32.partialorder %v3566, 0.0
        %vm3743 = vcmp.gt.f32.partialorder %v3677, 0.0
        %vm3744 = vcmp.gt.f32.partialorder %v3679, 0.0
        %v3745 = vmin.f32 %v3490, 0.0
        %v3746 = vmin.f32 %v3492, 0.0
        %v3747 = vmin.f32 %v3603, 0.0
        %v3748 = vmin.f32 %v3605, 0.0
        %v3749 = vmin.f32 %v3494, 0.0
        %v3750 = vmin.f32 %v3496, 0.0
        %v3751 = vmin.f32 %v3607, 0.0
        %v3752 = vmin.f32 %v3609, 0.0
        %v3753 = vmin.f32 %v3500, 0.0
        %v3754 = vmin.f32 %v3502, 0.0
        %v3755 = vmin.f32 %v3613, 0.0
        %v3756 = vmin.f32 %v3615, 0.0
        %v3757 = vmin.f32 %v3504, 0.0
        %v3758 = vmin.f32 %v3506, 0.0
        %v3759 = vmin.f32 %v3617, 0.0
        %v3760 = vmin.f32 %v3619, 0.0
        %v3761 = vmin.f32 %v3510, 0.0
        %v3762 = vmin.f32 %v3512, 0.0
        %v3763 = vmin.f32 %v3623, 0.0
        %v3764 = vmin.f32 %v3625, 0.0
        %v3765 = vmin.f32 %v3514, 0.0
        %v3766 = vmin.f32 %v3516, 0.0
        %v3767 = vmin.f32 %v3627, 0.0
        %v3768 = vmin.f32 %v3629, 0.0
        %v3769 = vmin.f32 %v3520, 0.0
        %v3770 = vmin.f32 %v3522, 0.0
        %v3771 = vmin.f32 %v3633, 0.0
        %v3772 = vmin.f32 %v3635, 0.0
        %v3773 = vmin.f32 %v3524, 0.0
        %v3774 = vmin.f32 %v3526, 0.0
        %v3775 = vmin.f32 %v3637, 0.0
        %v3776 = vmin.f32 %v3639, 0.0
        %v3777 = vmin.f32 %v3530, 0.0
        %v3778 = vmin.f32 %v3532, 0.0
        %v3779 = vmin.f32 %v3643, 0.0
        %v3780 = vmin.f32 %v3645, 0.0
        %v3781 = vmin.f32 %v3534, 0.0
        %v3782 = vmin.f32 %v3536, 0.0
        %v3783 = vmin.f32 %v3647, 0.0
        %v3784 = vmin.f32 %v3649, 0.0
        %v3785 = vmin.f32 %v3540, 0.0
        %v3786 = vmin.f32 %v3542, 0.0
        %v3787 = vmin.f32 %v3653, 0.0
        %v3788 = vmin.f32 %v3655, 0.0
        %v3789 = vmin.f32 %v3544, 0.0
        %v3790 = vmin.f32 %v3546, 0.0
        %v3791 = vmin.f32 %v3657, 0.0
        %v3792 = vmin.f32 %v3659, 0.0
        %v3793 = vmin.f32 %v3550, 0.0
        %v3794 = vmin.f32 %v3552, 0.0
        %v3795 = vmin.f32 %v3663, 0.0
        %v3796 = vmin.f32 %v3665, 0.0
        %v3797 = vmin.f32 %v3554, 0.0
        %v3798 = vmin.f32 %v3556, 0.0
        %v3799 = vmin.f32 %v3667, 0.0
        %v3800 = vmin.f32 %v3669, 0.0
        %v3801 = vmin.f32 %v3560, 0.0
        %v3802 = vmin.f32 %v3562, 0.0
        %v3803 = vmin.f32 %v3673, 0.0
        %v3804 = vmin.f32 %v3675, 0.0
        %v3805 = vmin.f32 %v3564, 0.0
        %v3806 = vmin.f32 %v3566, 0.0
        %v3807 = vmin.f32 %v3677, 0.0
        %v3808 = vmin.f32 %v3679, 0.0
        %v3809 = vmul.f32 %v3745, 1.442695
        %v3810 = vpow.pop %v3809
        %v3811 = vmul.f32 %v3746, 1.442695
        %v3812 = vpow.pop %v3811
        %v3813 = vmul.f32 %v3747, 1.442695
        %v3814 = vpow.pop %v3813
        %v3815 = vmul.f32 %v3748, 1.442695
        %v3816 = vpow.pop %v3815
        %v3817 = vmul.f32 %v3749, 1.442695
        %v3818 = vpow.pop %v3817
        %v3819 = vmul.f32 %v3750, 1.442695
        %v3820 = vpow.pop %v3819
        %v3821 = vmul.f32 %v3751, 1.442695
        %v3822 = vpow.pop %v3821
        %v3823 = vmul.f32 %v3752, 1.442695
        %v3824 = vpow.pop %v3823
        %v3825 = vmul.f32 %v3753, 1.442695
        %v3826 = vpow.pop %v3825
        %v3827 = vmul.f32 %v3754, 1.442695
        %v3828 = vpow.pop %v3827
        %v3829 = vmul.f32 %v3755, 1.442695
        %v3830 = vpow.pop %v3829
        %v3831 = vmul.f32 %v3756, 1.442695
        %v3832 = vpow.pop %v3831
        %v3833 = vmul.f32 %v3757, 1.442695
        %v3834 = vpow.pop %v3833
        %v3835 = vmul.f32 %v3758, 1.442695
        %v3836 = vpow.pop %v3835
        %v3837 = vmul.f32 %v3759, 1.442695
        %v3838 = vpow.pop %v3837
        %v3839 = vmul.f32 %v3760, 1.442695
        %v3840 = vpow.pop %v3839
        %v3841 = vmul.f32 %v3761, 1.442695
        %v3842 = vpow.pop %v3841
        %v3843 = vmul.f32 %v3762, 1.442695
        %v3844 = vpow.pop %v3843
        %v3845 = vmul.f32 %v3763, 1.442695
        %v3846 = vpow.pop %v3845
        %v3847 = vmul.f32 %v3764, 1.442695
        %v3848 = vpow.pop %v3847
        %v3849 = vmul.f32 %v3765, 1.442695
        %v3850 = vpow.pop %v3849
        %v3851 = vmul.f32 %v3766, 1.442695
        %v3852 = vpow.pop %v3851
        %v3853 = vmul.f32 %v3767, 1.442695
        %v3854 = vpow.pop %v3853
        %v3855 = vmul.f32 %v3768, 1.442695
        %v3856 = vpow.pop %v3855
        %v3857 = vmul.f32 %v3769, 1.442695
        %v3858 = vpow.pop %v3857
        %v3859 = vmul.f32 %v3770, 1.442695
        %v3860 = vpow.pop %v3859
        %v3861 = vmul.f32 %v3771, 1.442695
        %v3862 = vpow.pop %v3861
        %v3863 = vmul.f32 %v3772, 1.442695
        %v3864 = vpow.pop %v3863
        %v3865 = vmul.f32 %v3773, 1.442695
        %v3866 = vpow.pop %v3865
        %v3867 = vmul.f32 %v3774, 1.442695
        %v3868 = vpow.pop %v3867
        %v3869 = vmul.f32 %v3775, 1.442695
        %v3870 = vpow.pop %v3869
        %v3871 = vmul.f32 %v3776, 1.442695
        %v3872 = vpow.pop %v3871
        %v3873 = vmul.f32 %v3777, 1.442695
        %v3874 = vpow.pop %v3873
        %v3875 = vmul.f32 %v3778, 1.442695
        %v3876 = vpow.pop %v3875
        %v3877 = vmul.f32 %v3779, 1.442695
        %v3878 = vpow.pop %v3877
        %v3879 = vmul.f32 %v3780, 1.442695
        %v3880 = vpow.pop %v3879
        %v3881 = vmul.f32 %v3781, 1.442695
        %v3882 = vpow.pop %v3881
        %v3883 = vmul.f32 %v3782, 1.442695
        %v3884 = vpow.pop %v3883
        %v3885 = vmul.f32 %v3783, 1.442695
        %v3886 = vpow.pop %v3885
        %v3887 = vmul.f32 %v3784, 1.442695
        %v3888 = vpow.pop %v3887
        %v3889 = vmul.f32 %v3785, 1.442695
        %v3890 = vpow.pop %v3889
        %v3891 = vmul.f32 %v3786, 1.442695
        %v3892 = vpow.pop %v3891
        %v3893 = vmul.f32 %v3787, 1.442695
        %v3894 = vpow.pop %v3893
        %v3895 = vmul.f32 %v3788, 1.442695
        %v3896 = vpow.pop %v3895
        %v3897 = vmul.f32 %v3789, 1.442695
        %v3898 = vpow.pop %v3897
        %v3899 = vmul.f32 %v3790, 1.442695
        %v3900 = vpow.pop %v3899
        %v3901 = vmul.f32 %v3791, 1.442695
        %v3902 = vpow.pop %v3901
        %v3903 = vmul.f32 %v3792, 1.442695
        %v3904 = vpow.pop %v3903
        %v3905 = vmul.f32 %v3793, 1.442695
        %v3906 = vpow.pop %v3905
        %v3907 = vmul.f32 %v3794, 1.442695
        %v3908 = vpow.pop %v3907
        %v3909 = vmul.f32 %v3795, 1.442695
        %v3910 = vpow.pop %v3909
        %v3911 = vmul.f32 %v3796, 1.442695
        %v3912 = vpow.pop %v3911
        %v3913 = vmul.f32 %v3797, 1.442695
        %v3914 = vpow.pop %v3913
        %v3915 = vmul.f32 %v3798, 1.442695
        %v3916 = vpow.pop %v3915
        %v3917 = vmul.f32 %v3799, 1.442695
        %v3918 = vpow.pop %v3917
        %v3919 = vmul.f32 %v3800, 1.442695
        %v3920 = vpow.pop %v3919
        %v3921 = vmul.f32 %v3801, 1.442695
        %v3922 = vpow.pop %v3921
        %v3923 = vmul.f32 %v3802, 1.442695
        %v3924 = vpow.pop %v3923
        %v3925 = vmul.f32 %v3803, 1.442695
        %v3926 = vpow.pop %v3925
        %v3927 = vmul.f32 %v3804, 1.442695
        %v3928 = vpow.pop %v3927
        %v3929 = vmul.f32 %v3805, 1.442695
        %v3930 = vpow.pop %v3929
        %v3931 = vmul.f32 %v3806, 1.442695
        %v3932 = vpow.pop %v3931
        %v3933 = vmul.f32 %v3807, 1.442695
        %v3934 = vpow.pop %v3933
        %v3935 = vmul.f32 %v3808, 1.442695
        %v3936 = vpow.pop %v3935
        %v3937 = vsub.f32 %v3810, 1.0
        %v3938 = vsub.f32 %v3812, 1.0
        %v3939 = vsub.f32 %v3814, 1.0
        %v3940 = vsub.f32 %v3816, 1.0
        %v3941 = vsub.f32 %v3818, 1.0
        %v3942 = vsub.f32 %v3820, 1.0
        %v3943 = vsub.f32 %v3822, 1.0
        %v3944 = vsub.f32 %v3824, 1.0
        %v3945 = vsub.f32 %v3826, 1.0
        %v3946 = vsub.f32 %v3828, 1.0
        %v3947 = vsub.f32 %v3830, 1.0
        %v3948 = vsub.f32 %v3832, 1.0
        %v3949 = vsub.f32 %v3834, 1.0
        %v3950 = vsub.f32 %v3836, 1.0
        %v3951 = vsub.f32 %v3838, 1.0
        %v3952 = vsub.f32 %v3840, 1.0
        %v3953 = vsub.f32 %v3842, 1.0
        %v3954 = vsub.f32 %v3844, 1.0
        %v3955 = vsub.f32 %v3846, 1.0
        %v3956 = vsub.f32 %v3848, 1.0
        %v3957 = vsub.f32 %v3850, 1.0
        %v3958 = vsub.f32 %v3852, 1.0
        %v3959 = vsub.f32 %v3854, 1.0
        %v3960 = vsub.f32 %v3856, 1.0
        %v3961 = vsub.f32 %v3858, 1.0
        %v3962 = vsub.f32 %v3860, 1.0
        %v3963 = vsub.f32 %v3862, 1.0
        %v3964 = vsub.f32 %v3864, 1.0
        %v3965 = vsub.f32 %v3866, 1.0
        %v3966 = vsub.f32 %v3868, 1.0
        %v3967 = vsub.f32 %v3870, 1.0
        %v3968 = vsub.f32 %v3872, 1.0
        %v3969 = vsub.f32 %v3874, 1.0
        %v3970 = vsub.f32 %v3876, 1.0
        %v3971 = vsub.f32 %v3878, 1.0
        %v3972 = vsub.f32 %v3880, 1.0
        %v3973 = vsub.f32 %v3882, 1.0
        %v3974 = vsub.f32 %v3884, 1.0
        %v3975 = vsub.f32 %v3886, 1.0
        %v3976 = vsub.f32 %v3888, 1.0
        %v3977 = vsub.f32 %v3890, 1.0
        %v3978 = vsub.f32 %v3892, 1.0
        %v3979 = vsub.f32 %v3894, 1.0
        %v3980 = vsub.f32 %v3896, 1.0
        %v3981 = vsub.f32 %v3898, 1.0
        %v3982 = vsub.f32 %v3900, 1.0
        %v3983 = vsub.f32 %v3902, 1.0
        %v3984 = vsub.f32 %v3904, 1.0
        %v3985 = vsub.f32 %v3906, 1.0
        %v3986 = vsub.f32 %v3908, 1.0
        %v3987 = vsub.f32 %v3910, 1.0
        %v3988 = vsub.f32 %v3912, 1.0
        %v3989 = vsub.f32 %v3914, 1.0
        %v3990 = vsub.f32 %v3916, 1.0
        %v3991 = vsub.f32 %v3918, 1.0
        %v3992 = vsub.f32 %v3920, 1.0
        %v3993 = vsub.f32 %v3922, 1.0
        %v3994 = vsub.f32 %v3924, 1.0
        %v3995 = vsub.f32 %v3926, 1.0
        %v3996 = vsub.f32 %v3928, 1.0
        %v3997 = vsub.f32 %v3930, 1.0
        %v3998 = vsub.f32 %v3932, 1.0
        %v3999 = vsub.f32 %v3934, 1.0
        %v4000 = vsub.f32 %v3936, 1.0
        %v4001 = vsel %vm3681, %v3490, %v3937
        %v4002 = vsel %vm3682, %v3492, %v3938
        %v4003 = vsel %vm3683, %v3603, %v3939
        %v4004 = vsel %vm3684, %v3605, %v3940
        %v4005 = vsel %vm3685, %v3494, %v3941
        %v4006 = vsel %vm3686, %v3496, %v3942
        %v4007 = vsel %vm3687, %v3607, %v3943
        %v4008 = vsel %vm3688, %v3609, %v3944
        %v4009 = vsel %vm3689, %v3500, %v3945
        %v4010 = vsel %vm3690, %v3502, %v3946
        %v4011 = vsel %vm3691, %v3613, %v3947
        %v4012 = vsel %vm3692, %v3615, %v3948
        %v4013 = vsel %vm3693, %v3504, %v3949
        %v4014 = vsel %vm3694, %v3506, %v3950
        %v4015 = vsel %vm3695, %v3617, %v3951
        %v4016 = vsel %vm3696, %v3619, %v3952
        %v4017 = vsel %vm3697, %v3510, %v3953
        %v4018 = vsel %vm3698, %v3512, %v3954
        %v4019 = vsel %vm3699, %v3623, %v3955
        %v4020 = vsel %vm3700, %v3625, %v3956
        %v4021 = vsel %vm3701, %v3514, %v3957
        %v4022 = vsel %vm3702, %v3516, %v3958
        %v4023 = vsel %vm3703, %v3627, %v3959
        %v4024 = vsel %vm3704, %v3629, %v3960
        %v4025 = vsel %vm3705, %v3520, %v3961
        %v4026 = vsel %vm3706, %v3522, %v3962
        %v4027 = vsel %vm3707, %v3633, %v3963
        %v4028 = vsel %vm3708, %v3635, %v3964
        %v4029 = vsel %vm3709, %v3524, %v3965
        %v4030 = vsel %vm3710, %v3526, %v3966
        %v4031 = vsel %vm3711, %v3637, %v3967
        %v4032 = vsel %vm3712, %v3639, %v3968
        %v4033 = vsel %vm3713, %v3530, %v3969
        %v4034 = vsel %vm3714, %v3532, %v3970
        %v4035 = vsel %vm3715, %v3643, %v3971
        %v4036 = vsel %vm3716, %v3645, %v3972
        %v4037 = vsel %vm3717, %v3534, %v3973
        %v4038 = vsel %vm3718, %v3536, %v3974
        %v4039 = vsel %vm3719, %v3647, %v3975
        %v4040 = vsel %vm3720, %v3649, %v3976
        %v4041 = vsel %vm3721, %v3540, %v3977
        %v4042 = vsel %vm3722, %v3542, %v3978
        %v4043 = vsel %vm3723, %v3653, %v3979
        %v4044 = vsel %vm3724, %v3655, %v3980
        %v4045 = vsel %vm3725, %v3544, %v3981
        %v4046 = vsel %vm3726, %v3546, %v3982
        %v4047 = vsel %vm3727, %v3657, %v3983
        %v4048 = vsel %vm3728, %v3659, %v3984
        %v4049 = vsel %vm3729, %v3550, %v3985
        %v4050 = vsel %vm3730, %v3552, %v3986
        %v4051 = vsel %vm3731, %v3663, %v3987
        %v4052 = vsel %vm3732, %v3665, %v3988
        %v4053 = vsel %vm3733, %v3554, %v3989
        %v4054 = vsel %vm3734, %v3556, %v3990
        %v4055 = vsel %vm3735, %v3667, %v3991
        %v4056 = vsel %vm3736, %v3669, %v3992
        %v4057 = vsel %vm3737, %v3560, %v3993
        %v4058 = vsel %vm3738, %v3562, %v3994
        %v4059 = vsel %vm3739, %v3673, %v3995
        %v4060 = vsel %vm3740, %v3675, %v3996
        %v4061 = vsel %vm3741, %v3564, %v3997
        %v4062 = vsel %vm3742, %v3566, %v3998
        %v4063 = vsel %vm3743, %v3677, %v3999
        %v4064 = vsel %vm3744, %v3679, %v4000
        %v4065 = vpack.c.bf16 %v4005, %v4001
        %v4066 = vpack.c.bf16 %v4006, %v4002
        %v4067 = vpack.c.bf16 %v4007, %v4003
        %v4068 = vpack.c.bf16 %v4008, %v4004
        %v4069 = vpack.c.bf16 %v4013, %v4009
        %v4070 = vpack.c.bf16 %v4014, %v4010
        %v4071 = vpack.c.bf16 %v4015, %v4011
        %v4072 = vpack.c.bf16 %v4016, %v4012
        %v4073 = vpack.c.bf16 %v4021, %v4017
        %v4074 = vpack.c.bf16 %v4022, %v4018
        %v4075 = vpack.c.bf16 %v4023, %v4019
        %v4076 = vpack.c.bf16 %v4024, %v4020
        %v4077 = vpack.c.bf16 %v4029, %v4025
        %v4078 = vpack.c.bf16 %v4030, %v4026
        %v4079 = vpack.c.bf16 %v4031, %v4027
        %v4080 = vpack.c.bf16 %v4032, %v4028
        %v4081 = vpack.c.bf16 %v4037, %v4033
        %v4082 = vpack.c.bf16 %v4038, %v4034
        %v4083 = vpack.c.bf16 %v4039, %v4035
        %v4084 = vpack.c.bf16 %v4040, %v4036
        %v4085 = vpack.c.bf16 %v4045, %v4041
        %v4086 = vpack.c.bf16 %v4046, %v4042
        %v4087 = vpack.c.bf16 %v4047, %v4043
        %v4088 = vpack.c.bf16 %v4048, %v4044
        %v4089 = vpack.c.bf16 %v4053, %v4049
        %v4090 = vpack.c.bf16 %v4054, %v4050
        %v4091 = vpack.c.bf16 %v4055, %v4051
        %v4092 = vpack.c.bf16 %v4056, %v4052
        %v4093 = vpack.c.bf16 %v4061, %v4057
        %v4094 = vpack.c.bf16 %v4062, %v4058
        %v4095 = vpack.c.bf16 %v4063, %v4059
        %v4096 = vpack.c.bf16 %v4064, %v4060
        %v4097 = vld [vmem:[#allocation19] sm:$0xff]
        %v4098 = vld [vmem:[#allocation19 + $0x8] sm:$0xff]
        %v4099 = vld [vmem:[#allocation19 + $0x10] sm:$0xff]
        %v4100 = vld [vmem:[#allocation19 + $0x18] sm:$0xff]
        %v4101 = vld [vmem:[#allocation19 + $0x20] sm:$0xff]
        %v4102 = vld [vmem:[#allocation19 + $0x28] sm:$0xff]
        %v4103 = vld [vmem:[#allocation19 + $0x30] sm:$0xff]
        %v4104 = vld [vmem:[#allocation19 + $0x38] sm:$0xff]
        %v4105 = vld [vmem:[#allocation19 + $0x40] sm:$0xff]
        %v4106 = vld [vmem:[#allocation19 + $0x48] sm:$0xff]
        %v4107 = vld [vmem:[#allocation19 + $0x50] sm:$0xff]
        %v4108 = vld [vmem:[#allocation19 + $0x58] sm:$0xff]
        %v4109 = vld [vmem:[#allocation19 + $0x60] sm:$0xff]
        %v4110 = vld [vmem:[#allocation19 + $0x68] sm:$0xff]
        %v4111 = vld [vmem:[#allocation19 + $0x70] sm:$0xff]
        %v4112 = vld [vmem:[#allocation19 + $0x78] sm:$0xff]
        %v4113 = vld [vmem:[#allocation19 + $0x80] sm:$0xff]
        %v4114 = vld [vmem:[#allocation19 + $0x88] sm:$0xff]
        %v4115 = vld [vmem:[#allocation19 + $0x90] sm:$0xff]
        %v4116 = vld [vmem:[#allocation19 + $0x98] sm:$0xff]
        %v4117 = vld [vmem:[#allocation19 + $0xa0] sm:$0xff]
        %v4118 = vld [vmem:[#allocation19 + $0xa8] sm:$0xff]
        %v4119 = vld [vmem:[#allocation19 + $0xb0] sm:$0xff]
        %v4120 = vld [vmem:[#allocation19 + $0xb8] sm:$0xff]
        %v4121 = vld [vmem:[#allocation19 + $0xc0] sm:$0xff]
        %v4122 = vld [vmem:[#allocation19 + $0xc8] sm:$0xff]
        %v4123 = vld [vmem:[#allocation19 + $0xd0] sm:$0xff]
        %v4124 = vld [vmem:[#allocation19 + $0xd8] sm:$0xff]
        %v4125 = vld [vmem:[#allocation19 + $0xe0] sm:$0xff]
        %v4126 = vld [vmem:[#allocation19 + $0xe8] sm:$0xff]
        %v4127 = vld [vmem:[#allocation19 + $0xf0] sm:$0xff]
        %v4128 = vld [vmem:[#allocation19 + $0xf8] sm:$0xff]
        %v4129 = vld [vmem:[#allocation19 + $0x100] sm:$0xff]
        %v4130 = vld [vmem:[#allocation19 + $0x108] sm:$0xff]
        %v4131 = vld [vmem:[#allocation19 + $0x110] sm:$0xff]
        %v4132 = vld [vmem:[#allocation19 + $0x118] sm:$0xff]
        %v4133 = vld [vmem:[#allocation19 + $0x120] sm:$0xff]
        %v4134 = vld [vmem:[#allocation19 + $0x128] sm:$0xff]
        %v4135 = vld [vmem:[#allocation19 + $0x130] sm:$0xff]
        %v4136 = vld [vmem:[#allocation19 + $0x138] sm:$0xff]
        %v4137 = vld [vmem:[#allocation19 + $0x140] sm:$0xff]
        %v4138 = vld [vmem:[#allocation19 + $0x148] sm:$0xff]
        %v4139 = vld [vmem:[#allocation19 + $0x150] sm:$0xff]
        %v4140 = vld [vmem:[#allocation19 + $0x158] sm:$0xff]
        %v4141 = vld [vmem:[#allocation19 + $0x160] sm:$0xff]
        %v4142 = vld [vmem:[#allocation19 + $0x168] sm:$0xff]
        %v4143 = vld [vmem:[#allocation19 + $0x170] sm:$0xff]
        %v4144 = vld [vmem:[#allocation19 + $0x178] sm:$0xff]
        %v4145 = vld [vmem:[#allocation19 + $0x180] sm:$0xff]
        %v4146 = vld [vmem:[#allocation19 + $0x188] sm:$0xff]
        %v4147 = vld [vmem:[#allocation19 + $0x190] sm:$0xff]
        %v4148 = vld [vmem:[#allocation19 + $0x198] sm:$0xff]
        %v4149 = vld [vmem:[#allocation19 + $0x1a0] sm:$0xff]
        %v4150 = vld [vmem:[#allocation19 + $0x1a8] sm:$0xff]
        %v4151 = vld [vmem:[#allocation19 + $0x1b0] sm:$0xff]
        %v4152 = vld [vmem:[#allocation19 + $0x1b8] sm:$0xff]
        %v4153 = vld [vmem:[#allocation19 + $0x1c0] sm:$0xff]
        %v4154 = vld [vmem:[#allocation19 + $0x1c8] sm:$0xff]
        %v4155 = vld [vmem:[#allocation19 + $0x1d0] sm:$0xff]
        %v4156 = vld [vmem:[#allocation19 + $0x1d8] sm:$0xff]
        %v4157 = vld [vmem:[#allocation19 + $0x1e0] sm:$0xff]
        %v4158 = vld [vmem:[#allocation19 + $0x1e8] sm:$0xff]
        %v4159 = vld [vmem:[#allocation19 + $0x1f0] sm:$0xff]
        %v4160 = vld [vmem:[#allocation19 + $0x1f8] sm:$0xff]
        %v4161 = vld [vmem:[%s18] sm:$0x3]
        %v4163 = vlaneseq
        %v4164 = vshrl.u32 %v4163, 7
        %v4165 = vsub.s32 0, %v4164
        %v4166 = vrot.slane %v4161, %v4165
        %v4167 = vlaneseq
        %v4168 = vshrl.u32 %v4167, 7
        %v4169 = vsub.s32 1, %v4168
        %v4170 = vrot.slane %v4161, %v4169
        %v4237 = vunpack.c.l.b16 %v4097
        %v4238 = vunpack.c.h.b16 %v4097
        %v4239 = vunpack.c.l.b16 %v4098
        %v4240 = vunpack.c.h.b16 %v4098
        %v4241 = vunpack.c.l.b16 %v4099
        %v4242 = vunpack.c.h.b16 %v4099
        %v4243 = vunpack.c.l.b16 %v4100
        %v4244 = vunpack.c.h.b16 %v4100
        %v4245 = vunpack.c.l.b16 %v4101
        %v4246 = vunpack.c.h.b16 %v4101
        %v4247 = vunpack.c.l.b16 %v4102
        %v4248 = vunpack.c.h.b16 %v4102
        %v4249 = vunpack.c.l.b16 %v4103
        %v4250 = vunpack.c.h.b16 %v4103
        %v4251 = vunpack.c.l.b16 %v4104
        %v4252 = vunpack.c.h.b16 %v4104
        %v4253 = vunpack.c.l.b16 %v4105
        %v4254 = vunpack.c.h.b16 %v4105
        %v4255 = vunpack.c.l.b16 %v4106
        %v4256 = vunpack.c.h.b16 %v4106
        %v4257 = vunpack.c.l.b16 %v4107
        %v4258 = vunpack.c.h.b16 %v4107
        %v4259 = vunpack.c.l.b16 %v4108
        %v4260 = vunpack.c.h.b16 %v4108
        %v4261 = vunpack.c.l.b16 %v4109
        %v4262 = vunpack.c.h.b16 %v4109
        %v4263 = vunpack.c.l.b16 %v4110
        %v4264 = vunpack.c.h.b16 %v4110
        %v4265 = vunpack.c.l.b16 %v4111
        %v4266 = vunpack.c.h.b16 %v4111
        %v4267 = vunpack.c.l.b16 %v4112
        %v4268 = vunpack.c.h.b16 %v4112
        %v4269 = vunpack.c.l.b16 %v4113
        %v4270 = vunpack.c.h.b16 %v4113
        %v4271 = vunpack.c.l.b16 %v4114
        %v4272 = vunpack.c.h.b16 %v4114
        %v4273 = vunpack.c.l.b16 %v4115
        %v4274 = vunpack.c.h.b16 %v4115
        %v4275 = vunpack.c.l.b16 %v4116
        %v4276 = vunpack.c.h.b16 %v4116
        %v4277 = vunpack.c.l.b16 %v4117
        %v4278 = vunpack.c.h.b16 %v4117
        %v4279 = vunpack.c.l.b16 %v4118
        %v4280 = vunpack.c.h.b16 %v4118
        %v4281 = vunpack.c.l.b16 %v4119
        %v4282 = vunpack.c.h.b16 %v4119
        %v4283 = vunpack.c.l.b16 %v4120
        %v4284 = vunpack.c.h.b16 %v4120
        %v4285 = vunpack.c.l.b16 %v4121
        %v4286 = vunpack.c.h.b16 %v4121
        %v4287 = vunpack.c.l.b16 %v4122
        %v4288 = vunpack.c.h.b16 %v4122
        %v4289 = vunpack.c.l.b16 %v4123
        %v4290 = vunpack.c.h.b16 %v4123
        %v4291 = vunpack.c.l.b16 %v4124
        %v4292 = vunpack.c.h.b16 %v4124
        %v4293 = vunpack.c.l.b16 %v4125
        %v4294 = vunpack.c.h.b16 %v4125
        %v4295 = vunpack.c.l.b16 %v4126
        %v4296 = vunpack.c.h.b16 %v4126
        %v4297 = vunpack.c.l.b16 %v4127
        %v4298 = vunpack.c.h.b16 %v4127
        %v4299 = vunpack.c.l.b16 %v4128
        %v4300 = vunpack.c.h.b16 %v4128
        %v4301 = vunpack.c.l.b16 %v4129
        %v4302 = vunpack.c.h.b16 %v4129
        %v4303 = vunpack.c.l.b16 %v4130
        %v4304 = vunpack.c.h.b16 %v4130
        %v4305 = vunpack.c.l.b16 %v4131
        %v4306 = vunpack.c.h.b16 %v4131
        %v4307 = vunpack.c.l.b16 %v4132
        %v4308 = vunpack.c.h.b16 %v4132
        %v4309 = vunpack.c.l.b16 %v4133
        %v4310 = vunpack.c.h.b16 %v4133
        %v4311 = vunpack.c.l.b16 %v4134
        %v4312 = vunpack.c.h.b16 %v4134
        %v4313 = vunpack.c.l.b16 %v4135
        %v4314 = vunpack.c.h.b16 %v4135
        %v4315 = vunpack.c.l.b16 %v4136
        %v4316 = vunpack.c.h.b16 %v4136
        %v4317 = vunpack.c.l.b16 %v4137
        %v4318 = vunpack.c.h.b16 %v4137
        %v4319 = vunpack.c.l.b16 %v4138
        %v4320 = vunpack.c.h.b16 %v4138
        %v4321 = vunpack.c.l.b16 %v4139
        %v4322 = vunpack.c.h.b16 %v4139
        %v4323 = vunpack.c.l.b16 %v4140
        %v4324 = vunpack.c.h.b16 %v4140
        %v4325 = vunpack.c.l.b16 %v4141
        %v4326 = vunpack.c.h.b16 %v4141
        %v4327 = vunpack.c.l.b16 %v4142
        %v4328 = vunpack.c.h.b16 %v4142
        %v4329 = vunpack.c.l.b16 %v4143
        %v4330 = vunpack.c.h.b16 %v4143
        %v4331 = vunpack.c.l.b16 %v4144
        %v4332 = vunpack.c.h.b16 %v4144
        %v4333 = vunpack.c.l.b16 %v4145
        %v4334 = vunpack.c.h.b16 %v4145
        %v4335 = vunpack.c.l.b16 %v4146
        %v4336 = vunpack.c.h.b16 %v4146
        %v4337 = vunpack.c.l.b16 %v4147
        %v4338 = vunpack.c.h.b16 %v4147
        %v4339 = vunpack.c.l.b16 %v4148
        %v4340 = vunpack.c.h.b16 %v4148
        %v4341 = vunpack.c.l.b16 %v4149
        %v4342 = vunpack.c.h.b16 %v4149
        %v4343 = vunpack.c.l.b16 %v4150
        %v4344 = vunpack.c.h.b16 %v4150
        %v4345 = vunpack.c.l.b16 %v4151
        %v4346 = vunpack.c.h.b16 %v4151
        %v4347 = vunpack.c.l.b16 %v4152
        %v4348 = vunpack.c.h.b16 %v4152
        %v4349 = vunpack.c.l.b16 %v4153
        %v4350 = vunpack.c.h.b16 %v4153
        %v4351 = vunpack.c.l.b16 %v4154
        %v4352 = vunpack.c.h.b16 %v4154
        %v4353 = vunpack.c.l.b16 %v4155
        %v4354 = vunpack.c.h.b16 %v4155
        %v4355 = vunpack.c.l.b16 %v4156
        %v4356 = vunpack.c.h.b16 %v4156
        %v4357 = vunpack.c.l.b16 %v4157
        %v4358 = vunpack.c.h.b16 %v4157
        %v4359 = vunpack.c.l.b16 %v4158
        %v4360 = vunpack.c.h.b16 %v4158
        %v4361 = vunpack.c.l.b16 %v4159
        %v4362 = vunpack.c.h.b16 %v4159
        %v4363 = vunpack.c.l.b16 %v4160
        %v4364 = vunpack.c.h.b16 %v4160
        %v4365 = vpack.c.b16 %v4239, %v4237
        %v4366 = vpack.c.b16 %v4240, %v4238
        %v4367 = vpack.c.b16 %v4243, %v4241
        %v4368 = vpack.c.b16 %v4244, %v4242
        %v4369 = vpack.c.b16 %v4247, %v4245
        %v4370 = vpack.c.b16 %v4248, %v4246
        %v4371 = vpack.c.b16 %v4251, %v4249
        %v4372 = vpack.c.b16 %v4252, %v4250
        %v4373 = vpack.c.b16 %v4255, %v4253
        %v4374 = vpack.c.b16 %v4256, %v4254
        %v4375 = vpack.c.b16 %v4259, %v4257
        %v4376 = vpack.c.b16 %v4260, %v4258
        %v4377 = vpack.c.b16 %v4263, %v4261
        %v4378 = vpack.c.b16 %v4264, %v4262
        %v4379 = vpack.c.b16 %v4267, %v4265
        %v4380 = vpack.c.b16 %v4268, %v4266
        %v4381 = vpack.c.b16 %v4271, %v4269
        %v4382 = vpack.c.b16 %v4272, %v4270
        %v4383 = vpack.c.b16 %v4275, %v4273
        %v4384 = vpack.c.b16 %v4276, %v4274
        %v4385 = vpack.c.b16 %v4279, %v4277
        %v4386 = vpack.c.b16 %v4280, %v4278
        %v4387 = vpack.c.b16 %v4283, %v4281
        %v4388 = vpack.c.b16 %v4284, %v4282
        %v4389 = vpack.c.b16 %v4287, %v4285
        %v4390 = vpack.c.b16 %v4288, %v4286
        %v4391 = vpack.c.b16 %v4291, %v4289
        %v4392 = vpack.c.b16 %v4292, %v4290
        %v4393 = vpack.c.b16 %v4295, %v4293
        %v4394 = vpack.c.b16 %v4296, %v4294
        %v4395 = vpack.c.b16 %v4299, %v4297
        %v4396 = vpack.c.b16 %v4300, %v4298
        %v4397 = vpack.c.b16 %v4303, %v4301
        %v4398 = vpack.c.b16 %v4304, %v4302
        %v4399 = vpack.c.b16 %v4307, %v4305
        %v4400 = vpack.c.b16 %v4308, %v4306
        %v4401 = vpack.c.b16 %v4311, %v4309
        %v4402 = vpack.c.b16 %v4312, %v4310
        %v4403 = vpack.c.b16 %v4315, %v4313
        %v4404 = vpack.c.b16 %v4316, %v4314
        %v4405 = vpack.c.b16 %v4319, %v4317
        %v4406 = vpack.c.b16 %v4320, %v4318
        %v4407 = vpack.c.b16 %v4323, %v4321
        %v4408 = vpack.c.b16 %v4324, %v4322
        %v4409 = vpack.c.b16 %v4327, %v4325
        %v4410 = vpack.c.b16 %v4328, %v4326
        %v4411 = vpack.c.b16 %v4331, %v4329
        %v4412 = vpack.c.b16 %v4332, %v4330
        %v4413 = vpack.c.b16 %v4335, %v4333
        %v4414 = vpack.c.b16 %v4336, %v4334
        %v4415 = vpack.c.b16 %v4339, %v4337
        %v4416 = vpack.c.b16 %v4340, %v4338
        %v4417 = vpack.c.b16 %v4343, %v4341
        %v4418 = vpack.c.b16 %v4344, %v4342
        %v4419 = vpack.c.b16 %v4347, %v4345
        %v4420 = vpack.c.b16 %v4348, %v4346
        %v4421 = vpack.c.b16 %v4351, %v4349
        %v4422 = vpack.c.b16 %v4352, %v4350
        %v4423 = vpack.c.b16 %v4355, %v4353
        %v4424 = vpack.c.b16 %v4356, %v4354
        %v4425 = vpack.c.b16 %v4359, %v4357
        %v4426 = vpack.c.b16 %v4360, %v4358
        %v4427 = vpack.c.b16 %v4363, %v4361
        %v4428 = vpack.c.b16 %v4364, %v4362
        %4493 = vmatprep.subr.bf16.mxu0 %v4380
        %4494 = vmatpush1.bf16.msra.mxu0 %v4379
        %4495 = vmatprep.subr.bf16.mxu0 %v4378
        %4496 = vmatpush1.bf16.msra.mxu0 %v4377
        %4497 = vmatprep.subr.bf16.mxu0 %v4376
        %4498 = vmatpush1.bf16.msra.mxu0 %v4375
        %4499 = vmatprep.subr.bf16.mxu0 %v4374
        %4500 = vmatpush1.bf16.msra.mxu0 %v4373
        %4501 = vmatprep.subr.bf16.mxu0 %v4372
        %4502 = vmatpush1.bf16.msra.mxu0 %v4371
        %4503 = vmatprep.subr.bf16.mxu0 %v4370
        %4504 = vmatpush1.bf16.msra.mxu0 %v4369
        %4505 = vmatprep.subr.bf16.mxu0 %v4368
        %4506 = vmatpush1.bf16.msra.mxu0 %v4367
        %4507 = vmatprep.subr.bf16.mxu0 %v4366
        %4508 = vmatpush1.bf16.msra.mxu0 %v4365
        %4509 = vmatprep.subr.bf16.mxu0 %v4396
        %4510 = vmatpush2.bf16.msra.mxu0 %v4395
        %4511 = vmatprep.subr.bf16.mxu0 %v4394
        %4512 = vmatpush2.bf16.msra.mxu0 %v4393
        %4513 = vmatprep.subr.bf16.mxu0 %v4392
        %4514 = vmatpush2.bf16.msra.mxu0 %v4391
        %4515 = vmatprep.subr.bf16.mxu0 %v4390
        %4516 = vmatpush2.bf16.msra.mxu0 %v4389
        %4517 = vmatprep.subr.bf16.mxu0 %v4388
        %4518 = vmatpush2.bf16.msra.mxu0 %v4387
        %4519 = vmatprep.subr.bf16.mxu0 %v4386
        %4520 = vmatpush2.bf16.msra.mxu0 %v4385
        %4521 = vmatprep.subr.bf16.mxu0 %v4384
        %4522 = vmatpush2.bf16.msra.mxu0 %v4383
        %4523 = vmatprep.subr.bf16.mxu0 %v4382
        %4524 = vmatpush2.bf16.msra.mxu0 %v4381
        %4525 = vmatprep.mubr.bf16.mxu0 %v4066
        %4526 = vmatmul.mubr.bf16.gmra.mxu0 %v4065
        %v4527 = vpop.f32.mrf.mxu0
        %v4528 = vadd.f32 %v4166, %v4527
        %v4529 = vpop.f32.mrf.mxu0
        %v4530 = vadd.f32 %v4170, %v4529
        %v4531 = vpop.f32.mrf.mxu0
        %v4532 = vadd.f32 %v4166, %v4531
        %v4533 = vpop.f32.mrf.mxu0
        %v4534 = vadd.f32 %v4170, %v4533
        %4535 = vmatprep.mubr.bf16.mxu0 %v4070
        %4536 = vmatmul.mubr.bf16.gmra.mxu0 %v4069
        %v4537 = vpop.f32.mrf.mxu0
        %v4538 = vadd.f32 %v4166, %v4537
        %v4539 = vpop.f32.mrf.mxu0
        %v4540 = vadd.f32 %v4170, %v4539
        %v4541 = vpop.f32.mrf.mxu0
        %v4542 = vadd.f32 %v4166, %v4541
        %v4543 = vpop.f32.mrf.mxu0
        %v4544 = vadd.f32 %v4170, %v4543
        %4545 = vmatprep.mubr.bf16.mxu0 %v4074
        %4546 = vmatmul.mubr.bf16.gmra.mxu0 %v4073
        %v4547 = vpop.f32.mrf.mxu0
        %v4548 = vadd.f32 %v4166, %v4547
        %v4549 = vpop.f32.mrf.mxu0
        %v4550 = vadd.f32 %v4170, %v4549
        %v4551 = vpop.f32.mrf.mxu0
        %v4552 = vadd.f32 %v4166, %v4551
        %v4553 = vpop.f32.mrf.mxu0
        %v4554 = vadd.f32 %v4170, %v4553
        %4555 = vmatprep.mubr.bf16.mxu0 %v4078
        %4556 = vmatmul.mubr.bf16.gmra.mxu0 %v4077
        %v4557 = vpop.f32.mrf.mxu0
        %v4558 = vadd.f32 %v4166, %v4557
        %v4559 = vpop.f32.mrf.mxu0
        %v4560 = vadd.f32 %v4170, %v4559
        %v4561 = vpop.f32.mrf.mxu0
        %v4562 = vadd.f32 %v4166, %v4561
        %v4563 = vpop.f32.mrf.mxu0
        %v4564 = vadd.f32 %v4170, %v4563
        %4565 = vmatprep.mubr.bf16.mxu0 %v4082
        %4566 = vmatmul.mubr.bf16.gmra.mxu0 %v4081
        %v4567 = vpop.f32.mrf.mxu0
        %v4568 = vadd.f32 %v4166, %v4567
        %v4569 = vpop.f32.mrf.mxu0
        %v4570 = vadd.f32 %v4170, %v4569
        %v4571 = vpop.f32.mrf.mxu0
        %v4572 = vadd.f32 %v4166, %v4571
        %v4573 = vpop.f32.mrf.mxu0
        %v4574 = vadd.f32 %v4170, %v4573
        %4575 = vmatprep.mubr.bf16.mxu0 %v4086
        %4576 = vmatmul.mubr.bf16.gmra.mxu0 %v4085
        %v4577 = vpop.f32.mrf.mxu0
        %v4578 = vadd.f32 %v4166, %v4577
        %v4579 = vpop.f32.mrf.mxu0
        %v4580 = vadd.f32 %v4170, %v4579
        %v4581 = vpop.f32.mrf.mxu0
        %v4582 = vadd.f32 %v4166, %v4581
        %v4583 = vpop.f32.mrf.mxu0
        %v4584 = vadd.f32 %v4170, %v4583
        %4585 = vmatprep.mubr.bf16.mxu0 %v4090
        %4586 = vmatmul.mubr.bf16.gmra.mxu0 %v4089
        %v4587 = vpop.f32.mrf.mxu0
        %v4588 = vadd.f32 %v4166, %v4587
        %v4589 = vpop.f32.mrf.mxu0
        %v4590 = vadd.f32 %v4170, %v4589
        %v4591 = vpop.f32.mrf.mxu0
        %v4592 = vadd.f32 %v4166, %v4591
        %v4593 = vpop.f32.mrf.mxu0
        %v4594 = vadd.f32 %v4170, %v4593
        %4595 = vmatprep.mubr.bf16.mxu0 %v4094
        %4596 = vmatmul.mubr.bf16.gmra.mxu0 %v4093
        %v4597 = vpop.f32.mrf.mxu0
        %v4598 = vadd.f32 %v4166, %v4597
        %v4599 = vpop.f32.mrf.mxu0
        %v4600 = vadd.f32 %v4170, %v4599
        %v4601 = vpop.f32.mrf.mxu0
        %v4602 = vadd.f32 %v4166, %v4601
        %v4603 = vpop.f32.mrf.mxu0
        %v4604 = vadd.f32 %v4170, %v4603
        %4605 = vdwg.mxu0
        %4606 = vmatprep.subr.bf16.mxu0 %v4412
        %4607 = vmatpush1.bf16.msra.mxu0 %v4411
        %4608 = vmatprep.subr.bf16.mxu0 %v4410
        %4609 = vmatpush1.bf16.msra.mxu0 %v4409
        %4610 = vmatprep.subr.bf16.mxu0 %v4408
        %4611 = vmatpush1.bf16.msra.mxu0 %v4407
        %4612 = vmatprep.subr.bf16.mxu0 %v4406
        %4613 = vmatpush1.bf16.msra.mxu0 %v4405
        %4614 = vmatprep.subr.bf16.mxu0 %v4404
        %4615 = vmatpush1.bf16.msra.mxu0 %v4403
        %4616 = vmatprep.subr.bf16.mxu0 %v4402
        %4617 = vmatpush1.bf16.msra.mxu0 %v4401
        %4618 = vmatprep.subr.bf16.mxu0 %v4400
        %4619 = vmatpush1.bf16.msra.mxu0 %v4399
        %4620 = vmatprep.subr.bf16.mxu0 %v4398
        %4621 = vmatpush1.bf16.msra.mxu0 %v4397
        %4622 = vmatprep.subr.bf16.mxu0 %v4428
        %4623 = vmatpush2.bf16.msra.mxu0 %v4427
        %4624 = vmatprep.subr.bf16.mxu0 %v4426
        %4625 = vmatpush2.bf16.msra.mxu0 %v4425
        %4626 = vmatprep.subr.bf16.mxu0 %v4424
        %4627 = vmatpush2.bf16.msra.mxu0 %v4423
        %4628 = vmatprep.subr.bf16.mxu0 %v4422
        %4629 = vmatpush2.bf16.msra.mxu0 %v4421
        %4630 = vmatprep.subr.bf16.mxu0 %v4420
        %4631 = vmatpush2.bf16.msra.mxu0 %v4419
        %4632 = vmatprep.subr.bf16.mxu0 %v4418
        %4633 = vmatpush2.bf16.msra.mxu0 %v4417
        %4634 = vmatprep.subr.bf16.mxu0 %v4416
        %4635 = vmatpush2.bf16.msra.mxu0 %v4415
        %4636 = vmatprep.subr.bf16.mxu0 %v4414
        %4637 = vmatpush2.bf16.msra.mxu0 %v4413
        %4638 = vmatprep.mubr.bf16.mxu0 %v4068
        %4639 = vmatmul.mubr.bf16.gmra.mxu0 %v4067
        %v4640 = vpop.f32.mrf.mxu0
        %v4641 = vadd.f32 %v4528, %v4640
        %v4642 = vpop.f32.mrf.mxu0
        %v4643 = vadd.f32 %v4530, %v4642
        %v4644 = vpop.f32.mrf.mxu0
        %v4645 = vadd.f32 %v4532, %v4644
        %v4646 = vpop.f32.mrf.mxu0
        %v4647 = vadd.f32 %v4534, %v4646
        %4648 = vmatprep.mubr.bf16.mxu0 %v4072
        %4649 = vmatmul.mubr.bf16.gmra.mxu0 %v4071
        %v4650 = vpop.f32.mrf.mxu0
        %v4651 = vadd.f32 %v4538, %v4650
        %v4652 = vpop.f32.mrf.mxu0
        %v4653 = vadd.f32 %v4540, %v4652
        %v4654 = vpop.f32.mrf.mxu0
        %v4655 = vadd.f32 %v4542, %v4654
        %v4656 = vpop.f32.mrf.mxu0
        %v4657 = vadd.f32 %v4544, %v4656
        %4658 = vmatprep.mubr.bf16.mxu0 %v4076
        %4659 = vmatmul.mubr.bf16.gmra.mxu0 %v4075
        %v4660 = vpop.f32.mrf.mxu0
        %v4661 = vadd.f32 %v4548, %v4660
        %v4662 = vpop.f32.mrf.mxu0
        %v4663 = vadd.f32 %v4550, %v4662
        %v4664 = vpop.f32.mrf.mxu0
        %v4665 = vadd.f32 %v4552, %v4664
        %v4666 = vpop.f32.mrf.mxu0
        %v4667 = vadd.f32 %v4554, %v4666
        %4668 = vmatprep.mubr.bf16.mxu0 %v4080
        %4669 = vmatmul.mubr.bf16.gmra.mxu0 %v4079
        %v4670 = vpop.f32.mrf.mxu0
        %v4671 = vadd.f32 %v4558, %v4670
        %v4672 = vpop.f32.mrf.mxu0
        %v4673 = vadd.f32 %v4560, %v4672
        %v4674 = vpop.f32.mrf.mxu0
        %v4675 = vadd.f32 %v4562, %v4674
        %v4676 = vpop.f32.mrf.mxu0
        %v4677 = vadd.f32 %v4564, %v4676
        %4678 = vmatprep.mubr.bf16.mxu0 %v4084
        %4679 = vmatmul.mubr.bf16.gmra.mxu0 %v4083
        %v4680 = vpop.f32.mrf.mxu0
        %v4681 = vadd.f32 %v4568, %v4680
        %v4682 = vpop.f32.mrf.mxu0
        %v4683 = vadd.f32 %v4570, %v4682
        %v4684 = vpop.f32.mrf.mxu0
        %v4685 = vadd.f32 %v4572, %v4684
        %v4686 = vpop.f32.mrf.mxu0
        %v4687 = vadd.f32 %v4574, %v4686
        %4688 = vmatprep.mubr.bf16.mxu0 %v4088
        %4689 = vmatmul.mubr.bf16.gmra.mxu0 %v4087
        %v4690 = vpop.f32.mrf.mxu0
        %v4691 = vadd.f32 %v4578, %v4690
        %v4692 = vpop.f32.mrf.mxu0
        %v4693 = vadd.f32 %v4580, %v4692
        %v4694 = vpop.f32.mrf.mxu0
        %v4695 = vadd.f32 %v4582, %v4694
        %v4696 = vpop.f32.mrf.mxu0
        %v4697 = vadd.f32 %v4584, %v4696
        %4698 = vmatprep.mubr.bf16.mxu0 %v4092
        %4699 = vmatmul.mubr.bf16.gmra.mxu0 %v4091
        %v4700 = vpop.f32.mrf.mxu0
        %v4701 = vadd.f32 %v4588, %v4700
        %v4702 = vpop.f32.mrf.mxu0
        %v4703 = vadd.f32 %v4590, %v4702
        %v4704 = vpop.f32.mrf.mxu0
        %v4705 = vadd.f32 %v4592, %v4704
        %v4706 = vpop.f32.mrf.mxu0
        %v4707 = vadd.f32 %v4594, %v4706
        %4708 = vmatprep.mubr.bf16.mxu0 %v4096
        %4709 = vmatmul.mubr.bf16.gmra.mxu0 %v4095
        %v4710 = vpop.f32.mrf.mxu0
        %v4711 = vadd.f32 %v4598, %v4710
        %v4712 = vpop.f32.mrf.mxu0
        %v4713 = vadd.f32 %v4600, %v4712
        %v4714 = vpop.f32.mrf.mxu0
        %v4715 = vadd.f32 %v4602, %v4714
        %v4716 = vpop.f32.mrf.mxu0
        %v4717 = vadd.f32 %v4604, %v4716
        %4718 = vdwg.mxu0
        %4719 = vst [vmem:[%s764] sm:$0xff] %v4641
        %4720 = vst [vmem:[%s764 + $0x8] sm:$0xff] %v4643
        %4721 = vst [vmem:[%s764 + $0x10] sm:$0xff] %v4645
        %4722 = vst [vmem:[%s764 + $0x18] sm:$0xff] %v4647
        %4723 = vst [vmem:[%s764 + $0x20] sm:$0xff] %v4651
        %4724 = vst [vmem:[%s764 + $0x28] sm:$0xff] %v4653
        %4725 = vst [vmem:[%s764 + $0x30] sm:$0xff] %v4655
        %4726 = vst [vmem:[%s764 + $0x38] sm:$0xff] %v4657
        %4727 = vst [vmem:[%s764 + $0x40] sm:$0xff] %v4661
        %4728 = vst [vmem:[%s764 + $0x48] sm:$0xff] %v4663
        %4729 = vst [vmem:[%s764 + $0x50] sm:$0xff] %v4665
        %4730 = vst [vmem:[%s764 + $0x58] sm:$0xff] %v4667
        %4731 = vst [vmem:[%s764 + $0x60] sm:$0xff] %v4671
        %4732 = vst [vmem:[%s764 + $0x68] sm:$0xff] %v4673
        %4733 = vst [vmem:[%s764 + $0x70] sm:$0xff] %v4675
        %4734 = vst [vmem:[%s764 + $0x78] sm:$0xff] %v4677
        %4735 = vst [vmem:[%s764 + $0x80] sm:$0xff] %v4681
        %4736 = vst [vmem:[%s764 + $0x88] sm:$0xff] %v4683
        %4737 = vst [vmem:[%s764 + $0x90] sm:$0xff] %v4685
        %4738 = vst [vmem:[%s764 + $0x98] sm:$0xff] %v4687
        %4739 = vst [vmem:[%s764 + $0xa0] sm:$0xff] %v4691
        %4740 = vst [vmem:[%s764 + $0xa8] sm:$0xff] %v4693
        %4741 = vst [vmem:[%s764 + $0xb0] sm:$0xff] %v4695
        %4742 = vst [vmem:[%s764 + $0xb8] sm:$0xff] %v4697
        %4743 = vst [vmem:[%s764 + $0xc0] sm:$0xff] %v4701
        %4744 = vst [vmem:[%s764 + $0xc8] sm:$0xff] %v4703
        %4745 = vst [vmem:[%s764 + $0xd0] sm:$0xff] %v4705
        %4746 = vst [vmem:[%s764 + $0xd8] sm:$0xff] %v4707
        %4747 = vst [vmem:[%s764 + $0xe0] sm:$0xff] %v4711
        %4748 = vst [vmem:[%s764 + $0xe8] sm:$0xff] %v4713
        %4749 = vst [vmem:[%s764 + $0xf0] sm:$0xff] %v4715
        %4750 = vst [vmem:[%s764 + $0xf8] sm:$0xff] %v4717
        %s4751 = sand.u32 %s453, 1
        %s4752 = scalar_lea.sflag [#allocation4], %s4751
        %s4753 = sand.u32 %s453, 1
        %s4754 = smul.addr %s4753, 256
        %s4755 = scalar_lea.vmem [#allocation20], %s4754
        // Predicated region
        $region141: #{tpu_custom_call.1} parent=95 // pred_check
          %p4756 = pneg %p463
        $region142: #{tpu_custom_call.1} parent=95 // pred_check_branch
          %4758 = sbr.rel (%p4756) target = $region144
        $region143: #{tpu_custom_call.1} parent=95 // pred_region
          %s4759 = smul.u32 16, %s41
          %s4761 = ssub.s32 4096, 4096
          %4762 = vsyncadd %s4752, %s4761
          %s4763 = smul.addr %s4759, 2
          %s4764 = smul.addr %s4763, 128
          %s4765 = scalar_lea.hbm %s19, %s4764
          %s4766 = sshll.u32 %s4755, 4
          %s4767 = int_to_ptr.vmem [resolvable:$true] %s4766
          %4772 = dma.vmem_to_hbm [thread:$0]  %s4767, 4096, %s4765, %s4752, 256, 256, 16
        $region144: #{tpu_custom_call.1} parent=95 // pred_fallthru
          _
      $region96: #{tpu_custom_call.1} parent=5 // pred_fallthru
        _
      %p4773 = scmp.le.s32.totalorder 2, %s36
      // Predicated region
      $region145: #{tpu_custom_call.1} parent=5 // pred_check
        %p4774 = pneg %p4773
      $region146: #{tpu_custom_call.1} parent=5 // pred_check_branch
        %4776 = sbr.rel (%p4774) target = $region148
      $region147: #{tpu_custom_call.1} parent=5 // pred_region
        %s4777 = ssub.s32 %s36, 2
        // Predicated region
        $region149: #{tpu_custom_call.1} parent=147 // pred_check
          %p4778 = pneg %p469
        $region150: #{tpu_custom_call.1} parent=147 // pred_check_branch
          %4780 = sbr.rel (%p4778) target = $region152
        $region151: #{tpu_custom_call.1} parent=147 // pred_region
          %s4781 = sand.u32 %s454, 1
          %s4782 = scalar_lea.sflag [#allocation4], %s4781
          %s4783 = sand.u32 %s454, 1
          %s4784 = smul.addr %s4783, 256
          %s4785 = scalar_lea.vmem [#allocation20], %s4784
          %4786 = dma.done %s4782, 4096
        $region152: #{tpu_custom_call.1} parent=147 // pred_fallthru
          _
      $region148: #{tpu_custom_call.1} parent=5 // pred_fallthru
        _
    $region6: #{tpu_custom_call.1} parent=1 // loop_footer
      %s40 = sadd.s32 1, %s36
    $region7: #{tpu_custom_call.1} parent=1 // loop_footer_branch
      %35 = sbr.rel target = $region3
    $region8: #{tpu_custom_call.1} parent=1 // loop_exit
      _
    %4787 = vsyncpa [#allocation3], 1
    %s4788 = scalar_lea.sflag [#allocation3], 1
    %4789 = vsyncpa %s4788, 1
    %4790 = vsyncpa [#allocation6], 1
    %4791 = vsyncpa [#allocation9], 1
    %4792 = vsyncpa [#allocation12], 1
    %4793 = vsyncpa [#allocation15], 1
    %4794 = vsyncpa [#allocation18], 1
    %4795 = vsyncpa [#allocation4], 1
    %s4796 = scalar_lea.sflag [#allocation4], 1
    %4797 = vsyncpa %s4796, 1

</llo_original>
